<compile_context>
chip_gen: v6e
topology: v6e:2x2x1
jax: 0.10.0
libtpu: 0.0.40
codegen_flags: <defaults>
</compile_context>

<pallas_src>
import functools
import math

import jax
import jax.numpy as jnp
from jax.experimental import pallas as pl
from jax.experimental.pallas import tpu as pltpu

BN_EPS = 1e-5

# Matmul-operand dtype.  bf16 feeds the MXU at full rate on v5e/v6e/v7x and
# halves weight DMA bytes; accumulation stays f32 via preferred_element_type.
# Set to jnp.float32 for exact-fp32 matmuls.
MXU_DTYPE = jnp.bfloat16


# ----------------------------- in-kernel helpers -----------------------------

def _erf(x):
    # Abramowitz & Stegun 7.1.26 rational approximation (|err| < 1.5e-7, ~fp32
    # eps), built from VPU/EUP-friendly ops so the GELU matches PyTorch's
    # exact (erf-based) nn.GELU to float32 precision.
    # TODO(synk): switch to jax.lax.erf for bit-exact parity once Mosaic lowers erf_p.
    p = 0.3275911
    a1, a2, a3, a4, a5 = (0.254829592, -0.284496736, 1.421413741,
                          -1.453152027, 1.061405429)
    s = jnp.where(x < 0.0, -1.0, 1.0)
    ax = jnp.abs(x)
    t = 1.0 / (1.0 + p * ax)
    poly = ((((a5 * t + a4) * t + a3) * t + a2) * t + a1) * t
    return s * (1.0 - poly * jnp.exp(-ax * ax))


def _gelu_exact(x):
    return 0.5 * x * (1.0 + _erf(x * 0.7071067811865476))


def _bn_normalize(h2d):
    # BatchNorm1d training-mode statistics over all B*S rows per channel
    # (biased variance).  The affine (gamma, beta) is folded into the weights
    # of the matmul that follows, so only the normalization happens here.
    mean = jnp.mean(h2d, axis=0, keepdims=True)
    var = jnp.mean(jnp.square(h2d - mean), axis=0, keepdims=True)
    return (h2d - mean) * jax.lax.rsqrt(var + BN_EPS)


# --------------------------------- fused kernel --------------------------------

def _encoder_kernel(x_ref, pw_ref, pb_ref,
                    wq_ref, bq_ref, wk_ref, bk_ref, wv_ref, bv_ref,
                    wo_ref, w1_ref, b1_ref, w2_ref, b2_ref,
                    out_ref, x1_ref, x2_ref,
                    *, num_heads, batch, seq):
    layer = pl.program_id(0)
    rows, embed = x1_ref.shape
    dh = embed // num_heads
    scale = 1.0 / math.sqrt(dh)

    # Layer 0: init projection, then x -> cat([x, x], -1)  <=>  x1 = x2 = x.
    @pl.when(layer == 0)
    def _init():
        x0 = jnp.dot(x_ref[...].astype(MXU_DTYPE), pw_ref[...],
                     preferred_element_type=jnp.float32) + pb_ref[...]
        x1_ref[...] = x0
        x2_ref[...] = x0

    x1 = x1_ref[...]
    x2 = x2_ref[...]

    # ---- f(x2): BatchNorm1d (affine folded into W_q/k/v) + MHA(bias=False) ----
    hn = _bn_normalize(x2).astype(MXU_DTYPE)                     # (R, E)
    f_out = jnp.zeros((rows, embed), jnp.float32)
    for h in range(num_heads):          # static unroll; per-head, lane-aligned weights
        q = (jnp.dot(hn, wq_ref[h], preferred_element_type=jnp.float32)
             + bq_ref[h]).reshape(batch, seq, dh)
        k = (jnp.dot(hn, wk_ref[h], preferred_element_type=jnp.float32)
             + bk_ref[h]).reshape(batch, seq, dh)
        v = (jnp.dot(hn, wv_ref[h], preferred_element_type=jnp.float32)
             + bv_ref[h]).reshape(batch, seq, dh)
        s = jnp.einsum('bqd,bkd->bqk', q.astype(MXU_DTYPE), k.astype(MXU_DTYPE),
                       preferred_element_type=jnp.float32) * scale
        s = s - jnp.max(s, axis=-1, keepdims=True)
        p = jnp.exp(s)
        p = p * pl.reciprocal(jnp.sum(p, axis=-1, keepdims=True), approx=True)
        ctx = jnp.einsum('bqk,bkd->bqd', p.astype(MXU_DTYPE), v.astype(MXU_DTYPE),
                         preferred_element_type=jnp.float32)
        # Head output folded straight into the output projection: no concat,
        # no lane shuffles — just an (R,dh)x(dh,E) accumulate.
        f_out = f_out + jnp.dot(ctx.reshape(rows, dh).astype(MXU_DTYPE),
                                wo_ref[h], preferred_element_type=jnp.float32)
    y1 = x1 + f_out                      # residual add in-kernel

    # ---- g(y1): BatchNorm1d (folded into W1) -> Linear -> GELU -> Linear ----
    hn2 = _bn_normalize(y1).astype(MXU_DTYPE)
    t = jnp.dot(hn2, w1_ref[...], preferred_element_type=jnp.float32) + b1_ref[...]
    t = _gelu_exact(t)
    g_out = jnp.dot(t.astype(MXU_DTYPE), w2_ref[...],
                    preferred_element_type=jnp.float32) + b2_ref[...]
    y2 = x2 + g_out                      # residual add in-kernel

    # Carry the reversible state in VMEM scratch across the layer grid.
    x1_ref[...] = y1
    x2_ref[...] = y2

    # output = second half of the final reversible state.
    @pl.when(layer == pl.num_programs(0) - 1)
    def _finalize():
        out_ref[...] = y2


# ---------------------------- parameter packing --------------------------------

def _pack_params(params, num_heads):
    """Stack per-layer weights along a leading L axis, split Q/K/V and the out
    projection per head, and fold each BatchNorm affine into the matmul that
    follows:  (x_hat*g + b) @ W == x_hat @ (diag(g) @ W) + b @ W."""
    E = params['proj_w'].shape[1]
    H = num_heads
    dh = E // H

    def per_head_cols(w):   # (E, E) -> (H, E, dh): output columns per head
        return jnp.stack([w[:, h * dh:(h + 1) * dh] for h in range(H)], axis=0)

    def per_head_rows(w):   # (E, E) -> (H, dh, E): input rows (ctx features) per head
        return jnp.stack([w[h * dh:(h + 1) * dh, :] for h in range(H)], axis=0)

    names = ('wq', 'bq', 'wk', 'bk', 'wv', 'bv', 'wo', 'w1', 'b1', 'w2', 'b2')
    stacks = {n: [] for n in names}
    for lyr in params['layers']:
        g_mha = lyr['mha_bn_w'].reshape(-1)
        b_mha = lyr['mha_bn_b'].reshape(-1)
        wqkv = lyr['w_qkv']                           # (E, 3E): [q | k | v]
        for tag, off in (('q', 0), ('k', E), ('v', 2 * E)):
            w = wqkv[:, off:off + E]
            stacks['w' + tag].append(per_head_cols(g_mha[:, None] * w))
            stacks['b' + tag].append((b_mha @ w).reshape(H, 1, dh))
        stacks['wo'].append(per_head_rows(lyr['w_out']))

        g_ff = lyr['ff_bn_w'].reshape(-1)
        b_ff = lyr['ff_bn_b'].reshape(-1)
        stacks['w1'].append(g_ff[:, None] * lyr['ff_w1'])
        stacks['b1'].append((lyr['ff_b1'].reshape(-1)
                             + b_ff @ lyr['ff_w1']).reshape(1, -1))
        stacks['w2'].append(lyr['ff_w2'])
        stacks['b2'].append(lyr['ff_b2'].reshape(1, -1))

    def stk(name, dtype):
        return jnp.stack(stacks[name]).astype(dtype)

    f32 = jnp.float32
    return dict(
        proj_w=params['proj_w'].astype(MXU_DTYPE),
        proj_b=params['proj_b'].astype(f32),
        wq=stk('wq', MXU_DTYPE), bq=stk('bq', f32),
        wk=stk('wk', MXU_DTYPE), bk=stk('bk', f32),
        wv=stk('wv', MXU_DTYPE), bv=stk('bv', f32),
        wo=stk('wo', MXU_DTYPE),
        w1=stk('w1', MXU_DTYPE), b1=stk('b1', f32),
        w2=stk('w2', MXU_DTYPE), b2=stk('b2', f32),
    )


# ------------------------------ forward (wrapper) -------------------------------

def rev_mha_encoder_forward(x, params, *, num_heads):
    B, S, Din = x.shape
    E = params['proj_w'].shape[1]
    assert E % num_heads == 0, "embedding_dim must be divisible by n_heads"
    L = len(params['layers'])
    Inter = params['layers'][0]['ff_w1'].shape[1]
    H = num_heads
    dh = E // H
    R = B * S

    p = _pack_params(params, num_heads)
    x2d = x.reshape(R, Din)              # flat (B*S, Din) activation slab

    grid_spec = pltpu.PrefetchScalarGridSpec(
        num_scalar_prefetch=0,
        grid=(L,),
        in_specs=[
            pl.BlockSpec((R, Din), lambda l: (0, 0)),                  # x (layer 0)
            pl.BlockSpec((Din, E), lambda l: (0, 0)),                  # proj_w
            pl.BlockSpec((1, E), lambda l: (0, 0)),                    # proj_b
            pl.BlockSpec((None, H, E, dh), lambda l: (l, 0, 0, 0)),    # wq
            pl.BlockSpec((None, H, 1, dh), lambda l: (l, 0, 0, 0)),    # bq
            pl.BlockSpec((None, H, E, dh), lambda l: (l, 0, 0, 0)),    # wk
            pl.BlockSpec((None, H, 1, dh), lambda l: (l, 0, 0, 0)),    # bk
            pl.BlockSpec((None, H, E, dh), lambda l: (l, 0, 0, 0)),    # wv
            pl.BlockSpec((None, H, 1, dh), lambda l: (l, 0, 0, 0)),    # bv
            pl.BlockSpec((None, H, dh, E), lambda l: (l, 0, 0, 0)),    # wo
            pl.BlockSpec((None, E, Inter), lambda l: (l, 0, 0)),       # ff w1
            pl.BlockSpec((None, 1, Inter), lambda l: (l, 0, 0)),       # ff b1
            pl.BlockSpec((None, Inter, E), lambda l: (l, 0, 0)),       # ff w2
            pl.BlockSpec((None, 1, E), lambda l: (l, 0, 0)),           # ff b2
        ],
        out_specs=pl.BlockSpec((R, E), lambda l: (0, 0)),              # VMEM-resident
        scratch_shapes=[pltpu.VMEM((R, E), jnp.float32),               # x1
                        pltpu.VMEM((R, E), jnp.float32)],              # x2
    )
    kernel = functools.partial(_encoder_kernel, num_heads=num_heads,
                               batch=B, seq=S)
    out2d = pl.pallas_call(
        kernel,
        out_shape=jax.ShapeDtypeStruct((R, E), jnp.float32),
        grid_spec=grid_spec,
        compiler_params=pltpu.CompilerParams(
            dimension_semantics=("arbitrary",),       # layer axis carries state
            vmem_limit_bytes=32 * 1024 * 1024),       # safe on v5e/v6e/v7x
    )(x2d, p['proj_w'], p['proj_b'],
      p['wq'], p['bq'], p['wk'], p['bk'], p['wv'], p['bv'], p['wo'],
      p['w1'], p['b1'], p['w2'], p['b2'])
    return out2d.reshape(B, S, E)


# ------------------------------ parameter init ----------------------------------

def init_params(key, *, n_layers, embedding_dim, input_dim, intermediate_dim):
    keys = jax.random.split(key, 1 + 4 * n_layers)

    def lin(k, fan_in, fan_out):
        # PyTorch nn.Linear-style uniform init; weight stored pre-transposed
        # as (in, out) for the kernels.
        bound = 1.0 / math.sqrt(fan_in)
        kw, kb = jax.random.split(k)
        w = jax.random.uniform(kw, (fan_in, fan_out), jnp.float32, -bound, bound)
        b = jax.random.uniform(kb, (1, fan_out), jnp.float32, -bound, bound)
        return w, b

    proj_w, proj_b = lin(keys[0], input_dim, embedding_dim)

    layers = []
    for i in range(n_layers):
        k_qkv, k_out, k_ff1, k_ff2 = keys[1 + 4 * i: 1 + 4 * (i + 1)]
        # MHA in_proj: xavier-uniform over the (3E, E) tensor, bias=False.
        lim = math.sqrt(6.0 / (embedding_dim + 3 * embedding_dim))
        w_qkv = jax.random.uniform(
            k_qkv, (embedding_dim, 3 * embedding_dim), jnp.float32, -lim, lim)
        lim_o = 1.0 / math.sqrt(embedding_dim)
        w_out = jax.random.uniform(
            k_out, (embedding_dim, embedding_dim), jnp.float32, -lim_o, lim_o)
        ff_w1, ff_b1 = lin(k_ff1, embedding_dim, intermediate_dim)
        ff_w2, ff_b2 = lin(k_ff2, intermediate_dim, embedding_dim)
        layers.append(dict(
            mha_bn_w=jnp.ones((1, embedding_dim), jnp.float32),   # BN weight=1
            mha_bn_b=jnp.zeros((1, embedding_dim), jnp.float32),  # BN bias=0
            w_qkv=w_qkv, w_out=w_out,
            ff_bn_w=jnp.ones((1, embedding_dim), jnp.float32),
            ff_bn_b=jnp.zeros((1, embedding_dim), jnp.float32),
            ff_w1=ff_w1, ff_b1=ff_b1, ff_w2=ff_w2, ff_b2=ff_b2))
    return dict(proj_w=proj_w, proj_b=proj_b, layers=layers)


# ----------------------------------- main ----------------------------------------

if __name__ == "__main__":
    B, S = 2, 8
    input_dim, embedding_dim, intermediate_dim = 16, 32, 64
    n_layers, n_heads = 2, 4

    key = jax.random.PRNGKey(0)
    kx, kp = jax.random.split(key)
    x = jax.random.normal(kx, (B, S, input_dim), jnp.float32)
    params = init_params(kp, n_layers=n_layers, embedding_dim=embedding_dim,
                         input_dim=input_dim, intermediate_dim=intermediate_dim)

    out = rev_mha_encoder_forward(x, params, num_heads=n_heads)
    out = jax.block_until_ready(out)
    assert out.shape == (B, S, embedding_dim) and out.dtype == jnp.float32
    print("KERNEL_OK")
</pallas_src>

<mosaic_0001>
module attributes {stable_mosaic.version = 11 : i64} {
  func.func @_encoder_kernel(%arg0: i32, %arg1: memref<16x16xf32, #tpu.memory_space<vmem>>, %arg2: memref<16x32xbf16, #tpu.memory_space<vmem>>, %arg3: memref<1x32xf32, #tpu.memory_space<vmem>>, %arg4: memref<1x4x32x8xbf16, #tpu.memory_space<vmem>>, %arg5: memref<1x4x1x8xf32, #tpu.memory_space<vmem>>, %arg6: memref<1x4x32x8xbf16, #tpu.memory_space<vmem>>, %arg7: memref<1x4x1x8xf32, #tpu.memory_space<vmem>>, %arg8: memref<1x4x32x8xbf16, #tpu.memory_space<vmem>>, %arg9: memref<1x4x1x8xf32, #tpu.memory_space<vmem>>, %arg10: memref<1x4x8x32xbf16, #tpu.memory_space<vmem>>, %arg11: memref<1x32x64xbf16, #tpu.memory_space<vmem>>, %arg12: memref<1x1x64xf32, #tpu.memory_space<vmem>>, %arg13: memref<1x64x32xbf16, #tpu.memory_space<vmem>>, %arg14: memref<1x1x32xf32, #tpu.memory_space<vmem>>, %arg15: memref<16x32xf32, #tpu.memory_space<vmem>>, %arg16: memref<16x32xf32, #tpu.memory_space<vmem>>, %arg17: memref<16x32xf32, #tpu.memory_space<vmem>>) attributes {dimension_semantics = [#tpu.dimension_semantics<arbitrary>], iteration_bounds = array<i64: 2>, scalar_prefetch = 0 : i64, scratch_operands = 2 : i64, tpu.core_type = #tpu.core_type<tc>, window_params = [{pipeline_mode = #tpu.pipeline_mode<synchronous>, transform_indices = @transform_0, window_bounds = array<i64: 16, 16>}, {pipeline_mode = #tpu.pipeline_mode<synchronous>, transform_indices = @transform_1, window_bounds = array<i64: 16, 32>}, {pipeline_mode = #tpu.pipeline_mode<synchronous>, transform_indices = @transform_2, window_bounds = array<i64: 1, 32>}, {transform_indices = @transform_3, window_bounds = array<i64: 1, 4, 32, 8>}, {transform_indices = @transform_4, window_bounds = array<i64: 1, 4, 1, 8>}, {transform_indices = @transform_5, window_bounds = array<i64: 1, 4, 32, 8>}, {transform_indices = @transform_6, window_bounds = array<i64: 1, 4, 1, 8>}, {transform_indices = @transform_7, window_bounds = array<i64: 1, 4, 32, 8>}, {transform_indices = @transform_8, window_bounds = array<i64: 1, 4, 1, 8>}, {transform_indices = @transform_9, window_bounds = array<i64: 1, 4, 8, 32>}, {transform_indices = @transform_10, window_bounds = array<i64: 1, 32, 64>}, {transform_indices = @transform_11, window_bounds = array<i64: 1, 1, 64>}, {transform_indices = @transform_12, window_bounds = array<i64: 1, 64, 32>}, {transform_indices = @transform_13, window_bounds = array<i64: 1, 1, 32>}, {pipeline_mode = #tpu.pipeline_mode<synchronous>, transform_indices = @transform_14, window_bounds = array<i64: 16, 32>}]} {
    %c0_i32 = arith.constant 0 : i32
    %0 = arith.cmpi eq, %arg0, %c0_i32 : i32
    %1 = arith.extui %0 : i1 to i32
    %c0_i32_0 = arith.constant 0 : i32
    %2 = arith.cmpi ne, %1, %c0_i32_0 : i32
    scf.if %2 {
      %c0_194 = arith.constant 0 : index
      %c0_195 = arith.constant 0 : index
      %299 = vector.load %arg1[%c0_194, %c0_195] : memref<16x16xf32, #tpu.memory_space<vmem>>, vector<16x16xf32>
      %300 = arith.truncf %299 : vector<16x16xf32> to vector<16x16xbf16>
      %c0_196 = arith.constant 0 : index
      %c0_197 = arith.constant 0 : index
      %301 = vector.load %arg2[%c0_196, %c0_197] : memref<16x32xbf16, #tpu.memory_space<vmem>>, vector<16x32xbf16>
      %cst_198 = arith.constant dense<0.000000e+00> : vector<16x32xf32>
      %302 = tpu.matmul %300, %301, %cst_198 {dimension_numbers = #tpu.dot_dimension_numbers<[1], [0], [0], [1], [0, 0, 1, 1], [], []>} : vector<16x16xbf16>, vector<16x32xbf16>, vector<16x32xf32> -> vector<16x32xf32>
      %c0_199 = arith.constant 0 : index
      %c0_200 = arith.constant 0 : index
      %303 = vector.load %arg3[%c0_199, %c0_200] : memref<1x32xf32, #tpu.memory_space<vmem>>, vector<1x32xf32>
      %304 = vector.broadcast %303 : vector<1x32xf32> to vector<16x32xf32>
      %305 = arith.addf %302, %304 : vector<16x32xf32>
      %c0_201 = arith.constant 0 : index
      %c0_202 = arith.constant 0 : index
      %306 = vector.load %arg16[%c0_201, %c0_202] : memref<16x32xf32, #tpu.memory_space<vmem>>, vector<16x32xf32>
      tpu.vector_store %arg16[%c0_201, %c0_202], %305 {strides = array<i32>} : memref<16x32xf32, #tpu.memory_space<vmem>>, vector<16x32xf32>,
      %c0_203 = arith.constant 0 : index
      %c0_204 = arith.constant 0 : index
      %307 = vector.load %arg17[%c0_203, %c0_204] : memref<16x32xf32, #tpu.memory_space<vmem>>, vector<16x32xf32>
      tpu.vector_store %arg17[%c0_203, %c0_204], %305 {strides = array<i32>} : memref<16x32xf32, #tpu.memory_space<vmem>>, vector<16x32xf32>,
    } else {
    }
    %c0 = arith.constant 0 : index
    %c0_1 = arith.constant 0 : index
    %3 = vector.load %arg16[%c0, %c0_1] : memref<16x32xf32, #tpu.memory_space<vmem>>, vector<16x32xf32>
    %c0_2 = arith.constant 0 : index
    %c0_3 = arith.constant 0 : index
    %4 = vector.load %arg17[%c0_2, %c0_3] : memref<16x32xf32, #tpu.memory_space<vmem>>, vector<16x32xf32>
    %cst = arith.constant dense<0.000000e+00> : vector<32xf32>
    %5 = vector.multi_reduction <add>, %4, %cst [0] : vector<16x32xf32> to vector<32xf32>
    %6 = vector.shape_cast %5 : vector<32xf32> to vector<1x32xf32>
    %cst_4 = arith.constant 1.600000e+01 : f32
    %7 = vector.broadcast %cst_4 : f32 to vector<1x32xf32>
    %8 = arith.divf %6, %7 : vector<1x32xf32>
    %9 = vector.broadcast %8 : vector<1x32xf32> to vector<16x32xf32>
    %10 = arith.subf %4, %9 : vector<16x32xf32>
    %11 = arith.mulf %10, %10 : vector<16x32xf32>
    %cst_5 = arith.constant dense<0.000000e+00> : vector<32xf32>
    %12 = vector.multi_reduction <add>, %11, %cst_5 [0] : vector<16x32xf32> to vector<32xf32>
    %13 = vector.shape_cast %12 : vector<32xf32> to vector<1x32xf32>
    %cst_6 = arith.constant 1.600000e+01 : f32
    %14 = vector.broadcast %cst_6 : f32 to vector<1x32xf32>
    %15 = arith.divf %13, %14 : vector<1x32xf32>
    %16 = vector.broadcast %8 : vector<1x32xf32> to vector<16x32xf32>
    %17 = arith.subf %4, %16 : vector<16x32xf32>
    %cst_7 = arith.constant 9.99999974E-6 : f32
    %18 = vector.broadcast %cst_7 : f32 to vector<1x32xf32>
    %19 = arith.addf %15, %18 : vector<1x32xf32>
    %20 = math.rsqrt %19 : vector<1x32xf32>
    %21 = vector.broadcast %20 : vector<1x32xf32> to vector<16x32xf32>
    %22 = arith.mulf %17, %21 : vector<16x32xf32>
    %23 = arith.truncf %22 : vector<16x32xf32> to vector<16x32xbf16>
    %cst_8 = arith.constant 0.000000e+00 : f32
    %24 = vector.broadcast %cst_8 : f32 to vector<16x32xf32>
    %c0_9 = arith.constant 0 : index
    %c0_10 = arith.constant 0 : index
    %c0_11 = arith.constant 0 : index
    %c0_12 = arith.constant 0 : index
    %25 = vector.load %arg4[%c0_9, %c0_10, %c0_11, %c0_12] : memref<1x4x32x8xbf16, #tpu.memory_space<vmem>>, vector<1x1x32x8xbf16>
    %26 = vector.shape_cast %25 : vector<1x1x32x8xbf16> to vector<32x8xbf16>
    %cst_13 = arith.constant dense<0.000000e+00> : vector<16x8xf32>
    %27 = tpu.matmul %23, %26, %cst_13 {dimension_numbers = #tpu.dot_dimension_numbers<[1], [0], [0], [1], [0, 0, 1, 1], [], []>} : vector<16x32xbf16>, vector<32x8xbf16>, vector<16x8xf32> -> vector<16x8xf32>
    %c0_14 = arith.constant 0 : index
    %c0_15 = arith.constant 0 : index
    %c0_16 = arith.constant 0 : index
    %c0_17 = arith.constant 0 : index
    %28 = vector.load %arg5[%c0_14, %c0_15, %c0_16, %c0_17] : memref<1x4x1x8xf32, #tpu.memory_space<vmem>>, vector<1x1x1x8xf32>
    %29 = vector.shape_cast %28 : vector<1x1x1x8xf32> to vector<1x8xf32>
    %30 = vector.broadcast %29 : vector<1x8xf32> to vector<16x8xf32>
    %31 = arith.addf %27, %30 : vector<16x8xf32>
    %32 = vector.shape_cast %31 : vector<16x8xf32> to vector<2x8x8xf32>
    %c0_18 = arith.constant 0 : index
    %c0_19 = arith.constant 0 : index
    %c0_20 = arith.constant 0 : index
    %c0_21 = arith.constant 0 : index
    %33 = vector.load %arg6[%c0_18, %c0_19, %c0_20, %c0_21] : memref<1x4x32x8xbf16, #tpu.memory_space<vmem>>, vector<1x1x32x8xbf16>
    %34 = vector.shape_cast %33 : vector<1x1x32x8xbf16> to vector<32x8xbf16>
    %cst_22 = arith.constant dense<0.000000e+00> : vector<16x8xf32>
    %35 = tpu.matmul %23, %34, %cst_22 {dimension_numbers = #tpu.dot_dimension_numbers<[1], [0], [0], [1], [0, 0, 1, 1], [], []>} : vector<16x32xbf16>, vector<32x8xbf16>, vector<16x8xf32> -> vector<16x8xf32>
    %c0_23 = arith.constant 0 : index
    %c0_24 = arith.constant 0 : index
    %c0_25 = arith.constant 0 : index
    %c0_26 = arith.constant 0 : index
    %36 = vector.load %arg7[%c0_23, %c0_24, %c0_25, %c0_26] : memref<1x4x1x8xf32, #tpu.memory_space<vmem>>, vector<1x1x1x8xf32>
    %37 = vector.shape_cast %36 : vector<1x1x1x8xf32> to vector<1x8xf32>
    %38 = vector.broadcast %37 : vector<1x8xf32> to vector<16x8xf32>
    %39 = arith.addf %35, %38 : vector<16x8xf32>
    %40 = vector.shape_cast %39 : vector<16x8xf32> to vector<2x8x8xf32>
    %c0_27 = arith.constant 0 : index
    %c0_28 = arith.constant 0 : index
    %c0_29 = arith.constant 0 : index
    %c0_30 = arith.constant 0 : index
    %41 = vector.load %arg8[%c0_27, %c0_28, %c0_29, %c0_30] : memref<1x4x32x8xbf16, #tpu.memory_space<vmem>>, vector<1x1x32x8xbf16>
    %42 = vector.shape_cast %41 : vector<1x1x32x8xbf16> to vector<32x8xbf16>
    %cst_31 = arith.constant dense<0.000000e+00> : vector<16x8xf32>
    %43 = tpu.matmul %23, %42, %cst_31 {dimension_numbers = #tpu.dot_dimension_numbers<[1], [0], [0], [1], [0, 0, 1, 1], [], []>} : vector<16x32xbf16>, vector<32x8xbf16>, vector<16x8xf32> -> vector<16x8xf32>
    %c0_32 = arith.constant 0 : index
    %c0_33 = arith.constant 0 : index
    %c0_34 = arith.constant 0 : index
    %c0_35 = arith.constant 0 : index
    %44 = vector.load %arg9[%c0_32, %c0_33, %c0_34, %c0_35] : memref<1x4x1x8xf32, #tpu.memory_space<vmem>>, vector<1x1x1x8xf32>
    %45 = vector.shape_cast %44 : vector<1x1x1x8xf32> to vector<1x8xf32>
    %46 = vector.broadcast %45 : vector<1x8xf32> to vector<16x8xf32>
    %47 = arith.addf %43, %46 : vector<16x8xf32>
    %48 = vector.shape_cast %47 : vector<16x8xf32> to vector<2x8x8xf32>
    %49 = arith.truncf %32 : vector<2x8x8xf32> to vector<2x8x8xbf16>
    %50 = arith.truncf %40 : vector<2x8x8xf32> to vector<2x8x8xbf16>
    "tpu.trace_start"() <{level = 10 : i32, message = "bqd,bkd->bqk"}> : () -> ()
    %cst_36 = arith.constant dense<0.000000e+00> : vector<2x8x8xf32>
    %51 = tpu.matmul %49, %50, %cst_36 {dimension_numbers = #tpu.dot_dimension_numbers<[2], [2], [1], [1], [0, 0, 0, 1, 1, 1], [0], [0]>} : vector<2x8x8xbf16>, vector<2x8x8xbf16>, vector<2x8x8xf32> -> vector<2x8x8xf32>
    "tpu.trace_stop"() : () -> ()
    %cst_37 = arith.constant 0.353553385 : f32
    %52 = vector.broadcast %cst_37 : f32 to vector<2x8x8xf32>
    %53 = arith.mulf %51, %52 : vector<2x8x8xf32>
    %cst_38 = arith.constant dense<0xFF800000> : vector<2x8xf32>
    %54 = vector.multi_reduction <maximumf>, %53, %cst_38 [2] : vector<2x8x8xf32> to vector<2x8xf32>
    %55 = vector.shape_cast %54 : vector<2x8xf32> to vector<2x8x1xf32>
    %56 = vector.broadcast %55 : vector<2x8x1xf32> to vector<2x8x8xf32>
    %57 = arith.subf %53, %56 : vector<2x8x8xf32>
    %58 = math.exp %57 : vector<2x8x8xf32>
    %cst_39 = arith.constant dense<0.000000e+00> : vector<2x8xf32>
    %59 = vector.multi_reduction <add>, %58, %cst_39 [2] : vector<2x8x8xf32> to vector<2x8xf32>
    %60 = vector.shape_cast %59 : vector<2x8xf32> to vector<2x8x1xf32>
    %61 = tpu.reciprocal %60 {approx = true} : vector<2x8x1xf32> -> vector<2x8x1xf32>
    %62 = vector.broadcast %61 : vector<2x8x1xf32> to vector<2x8x8xf32>
    %63 = arith.mulf %58, %62 : vector<2x8x8xf32>
    %64 = arith.truncf %63 : vector<2x8x8xf32> to vector<2x8x8xbf16>
    %65 = arith.truncf %48 : vector<2x8x8xf32> to vector<2x8x8xbf16>
    "tpu.trace_start"() <{level = 10 : i32, message = "bqk,bkd->bqd"}> : () -> ()
    %cst_40 = arith.constant dense<0.000000e+00> : vector<2x8x8xf32>
    %66 = tpu.matmul %64, %65, %cst_40 {dimension_numbers = #tpu.dot_dimension_numbers<[2], [1], [1], [2], [0, 0, 0, 1, 1, 2], [0], [0]>} : vector<2x8x8xbf16>, vector<2x8x8xbf16>, vector<2x8x8xf32> -> vector<2x8x8xf32>
    "tpu.trace_stop"() : () -> ()
    %67 = vector.shape_cast %66 : vector<2x8x8xf32> to vector<16x8xf32>
    %68 = arith.truncf %67 : vector<16x8xf32> to vector<16x8xbf16>
    %c0_41 = arith.constant 0 : index
    %c0_42 = arith.constant 0 : index
    %c0_43 = arith.constant 0 : index
    %c0_44 = arith.constant 0 : index
    %69 = vector.load %arg10[%c0_41, %c0_42, %c0_43, %c0_44] : memref<1x4x8x32xbf16, #tpu.memory_space<vmem>>, vector<1x1x8x32xbf16>
    %70 = vector.shape_cast %69 : vector<1x1x8x32xbf16> to vector<8x32xbf16>
    %cst_45 = arith.constant dense<0.000000e+00> : vector<16x32xf32>
    %71 = tpu.matmul %68, %70, %cst_45 {dimension_numbers = #tpu.dot_dimension_numbers<[1], [0], [0], [1], [0, 0, 1, 1], [], []>} : vector<16x8xbf16>, vector<8x32xbf16>, vector<16x32xf32> -> vector<16x32xf32>
    %72 = arith.addf %24, %71 : vector<16x32xf32>
    %c0_46 = arith.constant 0 : index
    %c1 = arith.constant 1 : index
    %c0_47 = arith.constant 0 : index
    %c0_48 = arith.constant 0 : index
    %73 = vector.load %arg4[%c0_46, %c1, %c0_47, %c0_48] : memref<1x4x32x8xbf16, #tpu.memory_space<vmem>>, vector<1x1x32x8xbf16>
    %74 = vector.shape_cast %73 : vector<1x1x32x8xbf16> to vector<32x8xbf16>
    %cst_49 = arith.constant dense<0.000000e+00> : vector<16x8xf32>
    %75 = tpu.matmul %23, %74, %cst_49 {dimension_numbers = #tpu.dot_dimension_numbers<[1], [0], [0], [1], [0, 0, 1, 1], [], []>} : vector<16x32xbf16>, vector<32x8xbf16>, vector<16x8xf32> -> vector<16x8xf32>
    %c0_50 = arith.constant 0 : index
    %c1_51 = arith.constant 1 : index
    %c0_52 = arith.constant 0 : index
    %c0_53 = arith.constant 0 : index
    %76 = vector.load %arg5[%c0_50, %c1_51, %c0_52, %c0_53] : memref<1x4x1x8xf32, #tpu.memory_space<vmem>>, vector<1x1x1x8xf32>
    %77 = vector.shape_cast %76 : vector<1x1x1x8xf32> to vector<1x8xf32>
    %78 = vector.broadcast %77 : vector<1x8xf32> to vector<16x8xf32>
    %79 = arith.addf %75, %78 : vector<16x8xf32>
    %80 = vector.shape_cast %79 : vector<16x8xf32> to vector<2x8x8xf32>
    %c0_54 = arith.constant 0 : index
    %c1_55 = arith.constant 1 : index
    %c0_56 = arith.constant 0 : index
    %c0_57 = arith.constant 0 : index
    %81 = vector.load %arg6[%c0_54, %c1_55, %c0_56, %c0_57] : memref<1x4x32x8xbf16, #tpu.memory_space<vmem>>, vector<1x1x32x8xbf16>
    %82 = vector.shape_cast %81 : vector<1x1x32x8xbf16> to vector<32x8xbf16>
    %cst_58 = arith.constant dense<0.000000e+00> : vector<16x8xf32>
    %83 = tpu.matmul %23, %82, %cst_58 {dimension_numbers = #tpu.dot_dimension_numbers<[1], [0], [0], [1], [0, 0, 1, 1], [], []>} : vector<16x32xbf16>, vector<32x8xbf16>, vector<16x8xf32> -> vector<16x8xf32>
    %c0_59 = arith.constant 0 : index
    %c1_60 = arith.constant 1 : index
    %c0_61 = arith.constant 0 : index
    %c0_62 = arith.constant 0 : index
    %84 = vector.load %arg7[%c0_59, %c1_60, %c0_61, %c0_62] : memref<1x4x1x8xf32, #tpu.memory_space<vmem>>, vector<1x1x1x8xf32>
    %85 = vector.shape_cast %84 : vector<1x1x1x8xf32> to vector<1x8xf32>
    %86 = vector.broadcast %85 : vector<1x8xf32> to vector<16x8xf32>
    %87 = arith.addf %83, %86 : vector<16x8xf32>
    %88 = vector.shape_cast %87 : vector<16x8xf32> to vector<2x8x8xf32>
    %c0_63 = arith.constant 0 : index
    %c1_64 = arith.constant 1 : index
    %c0_65 = arith.constant 0 : index
    %c0_66 = arith.constant 0 : index
    %89 = vector.load %arg8[%c0_63, %c1_64, %c0_65, %c0_66] : memref<1x4x32x8xbf16, #tpu.memory_space<vmem>>, vector<1x1x32x8xbf16>
    %90 = vector.shape_cast %89 : vector<1x1x32x8xbf16> to vector<32x8xbf16>
    %cst_67 = arith.constant dense<0.000000e+00> : vector<16x8xf32>
    %91 = tpu.matmul %23, %90, %cst_67 {dimension_numbers = #tpu.dot_dimension_numbers<[1], [0], [0], [1], [0, 0, 1, 1], [], []>} : vector<16x32xbf16>, vector<32x8xbf16>, vector<16x8xf32> -> vector<16x8xf32>
    %c0_68 = arith.constant 0 : index
    %c1_69 = arith.constant 1 : index
    %c0_70 = arith.constant 0 : index
    %c0_71 = arith.constant 0 : index
    %92 = vector.load %arg9[%c0_68, %c1_69, %c0_70, %c0_71] : memref<1x4x1x8xf32, #tpu.memory_space<vmem>>, vector<1x1x1x8xf32>
    %93 = vector.shape_cast %92 : vector<1x1x1x8xf32> to vector<1x8xf32>
    %94 = vector.broadcast %93 : vector<1x8xf32> to vector<16x8xf32>
    %95 = arith.addf %91, %94 : vector<16x8xf32>
    %96 = vector.shape_cast %95 : vector<16x8xf32> to vector<2x8x8xf32>
    %97 = arith.truncf %80 : vector<2x8x8xf32> to vector<2x8x8xbf16>
    %98 = arith.truncf %88 : vector<2x8x8xf32> to vector<2x8x8xbf16>
    "tpu.trace_start"() <{level = 10 : i32, message = "bqd,bkd->bqk"}> : () -> ()
    %cst_72 = arith.constant dense<0.000000e+00> : vector<2x8x8xf32>
    %99 = tpu.matmul %97, %98, %cst_72 {dimension_numbers = #tpu.dot_dimension_numbers<[2], [2], [1], [1], [0, 0, 0, 1, 1, 1], [0], [0]>} : vector<2x8x8xbf16>, vector<2x8x8xbf16>, vector<2x8x8xf32> -> vector<2x8x8xf32>
    "tpu.trace_stop"() : () -> ()
    %cst_73 = arith.constant 0.353553385 : f32
    %100 = vector.broadcast %cst_73 : f32 to vector<2x8x8xf32>
    %101 = arith.mulf %99, %100 : vector<2x8x8xf32>
    %cst_74 = arith.constant dense<0xFF800000> : vector<2x8xf32>
    %102 = vector.multi_reduction <maximumf>, %101, %cst_74 [2] : vector<2x8x8xf32> to vector<2x8xf32>
    %103 = vector.shape_cast %102 : vector<2x8xf32> to vector<2x8x1xf32>
    %104 = vector.broadcast %103 : vector<2x8x1xf32> to vector<2x8x8xf32>
    %105 = arith.subf %101, %104 : vector<2x8x8xf32>
    %106 = math.exp %105 : vector<2x8x8xf32>
    %cst_75 = arith.constant dense<0.000000e+00> : vector<2x8xf32>
    %107 = vector.multi_reduction <add>, %106, %cst_75 [2] : vector<2x8x8xf32> to vector<2x8xf32>
    %108 = vector.shape_cast %107 : vector<2x8xf32> to vector<2x8x1xf32>
    %109 = tpu.reciprocal %108 {approx = true} : vector<2x8x1xf32> -> vector<2x8x1xf32>
    %110 = vector.broadcast %109 : vector<2x8x1xf32> to vector<2x8x8xf32>
    %111 = arith.mulf %106, %110 : vector<2x8x8xf32>
    %112 = arith.truncf %111 : vector<2x8x8xf32> to vector<2x8x8xbf16>
    %113 = arith.truncf %96 : vector<2x8x8xf32> to vector<2x8x8xbf16>
    "tpu.trace_start"() <{level = 10 : i32, message = "bqk,bkd->bqd"}> : () -> ()
    %cst_76 = arith.constant dense<0.000000e+00> : vector<2x8x8xf32>
    %114 = tpu.matmul %112, %113, %cst_76 {dimension_numbers = #tpu.dot_dimension_numbers<[2], [1], [1], [2], [0, 0, 0, 1, 1, 2], [0], [0]>} : vector<2x8x8xbf16>, vector<2x8x8xbf16>, vector<2x8x8xf32> -> vector<2x8x8xf32>
    "tpu.trace_stop"() : () -> ()
    %115 = vector.shape_cast %114 : vector<2x8x8xf32> to vector<16x8xf32>
    %116 = arith.truncf %115 : vector<16x8xf32> to vector<16x8xbf16>
    %c0_77 = arith.constant 0 : index
    %c1_78 = arith.constant 1 : index
    %c0_79 = arith.constant 0 : index
    %c0_80 = arith.constant 0 : index
    %117 = vector.load %arg10[%c0_77, %c1_78, %c0_79, %c0_80] : memref<1x4x8x32xbf16, #tpu.memory_space<vmem>>, vector<1x1x8x32xbf16>
    %118 = vector.shape_cast %117 : vector<1x1x8x32xbf16> to vector<8x32xbf16>
    %cst_81 = arith.constant dense<0.000000e+00> : vector<16x32xf32>
    %119 = tpu.matmul %116, %118, %cst_81 {dimension_numbers = #tpu.dot_dimension_numbers<[1], [0], [0], [1], [0, 0, 1, 1], [], []>} : vector<16x8xbf16>, vector<8x32xbf16>, vector<16x32xf32> -> vector<16x32xf32>
    %120 = arith.addf %72, %119 : vector<16x32xf32>
    %c0_82 = arith.constant 0 : index
    %c2 = arith.constant 2 : index
    %c0_83 = arith.constant 0 : index
    %c0_84 = arith.constant 0 : index
    %121 = vector.load %arg4[%c0_82, %c2, %c0_83, %c0_84] : memref<1x4x32x8xbf16, #tpu.memory_space<vmem>>, vector<1x1x32x8xbf16>
    %122 = vector.shape_cast %121 : vector<1x1x32x8xbf16> to vector<32x8xbf16>
    %cst_85 = arith.constant dense<0.000000e+00> : vector<16x8xf32>
    %123 = tpu.matmul %23, %122, %cst_85 {dimension_numbers = #tpu.dot_dimension_numbers<[1], [0], [0], [1], [0, 0, 1, 1], [], []>} : vector<16x32xbf16>, vector<32x8xbf16>, vector<16x8xf32> -> vector<16x8xf32>
    %c0_86 = arith.constant 0 : index
    %c2_87 = arith.constant 2 : index
    %c0_88 = arith.constant 0 : index
    %c0_89 = arith.constant 0 : index
    %124 = vector.load %arg5[%c0_86, %c2_87, %c0_88, %c0_89] : memref<1x4x1x8xf32, #tpu.memory_space<vmem>>, vector<1x1x1x8xf32>
    %125 = vector.shape_cast %124 : vector<1x1x1x8xf32> to vector<1x8xf32>
    %126 = vector.broadcast %125 : vector<1x8xf32> to vector<16x8xf32>
    %127 = arith.addf %123, %126 : vector<16x8xf32>
    %128 = vector.shape_cast %127 : vector<16x8xf32> to vector<2x8x8xf32>
    %c0_90 = arith.constant 0 : index
    %c2_91 = arith.constant 2 : index
    %c0_92 = arith.constant 0 : index
    %c0_93 = arith.constant 0 : index
    %129 = vector.load %arg6[%c0_90, %c2_91, %c0_92, %c0_93] : memref<1x4x32x8xbf16, #tpu.memory_space<vmem>>, vector<1x1x32x8xbf16>
    %130 = vector.shape_cast %129 : vector<1x1x32x8xbf16> to vector<32x8xbf16>
    %cst_94 = arith.constant dense<0.000000e+00> : vector<16x8xf32>
    %131 = tpu.matmul %23, %130, %cst_94 {dimension_numbers = #tpu.dot_dimension_numbers<[1], [0], [0], [1], [0, 0, 1, 1], [], []>} : vector<16x32xbf16>, vector<32x8xbf16>, vector<16x8xf32> -> vector<16x8xf32>
    %c0_95 = arith.constant 0 : index
    %c2_96 = arith.constant 2 : index
    %c0_97 = arith.constant 0 : index
    %c0_98 = arith.constant 0 : index
    %132 = vector.load %arg7[%c0_95, %c2_96, %c0_97, %c0_98] : memref<1x4x1x8xf32, #tpu.memory_space<vmem>>, vector<1x1x1x8xf32>
    %133 = vector.shape_cast %132 : vector<1x1x1x8xf32> to vector<1x8xf32>
    %134 = vector.broadcast %133 : vector<1x8xf32> to vector<16x8xf32>
    %135 = arith.addf %131, %134 : vector<16x8xf32>
    %136 = vector.shape_cast %135 : vector<16x8xf32> to vector<2x8x8xf32>
    %c0_99 = arith.constant 0 : index
    %c2_100 = arith.constant 2 : index
    %c0_101 = arith.constant 0 : index
    %c0_102 = arith.constant 0 : index
    %137 = vector.load %arg8[%c0_99, %c2_100, %c0_101, %c0_102] : memref<1x4x32x8xbf16, #tpu.memory_space<vmem>>, vector<1x1x32x8xbf16>
    %138 = vector.shape_cast %137 : vector<1x1x32x8xbf16> to vector<32x8xbf16>
    %cst_103 = arith.constant dense<0.000000e+00> : vector<16x8xf32>
    %139 = tpu.matmul %23, %138, %cst_103 {dimension_numbers = #tpu.dot_dimension_numbers<[1], [0], [0], [1], [0, 0, 1, 1], [], []>} : vector<16x32xbf16>, vector<32x8xbf16>, vector<16x8xf32> -> vector<16x8xf32>
    %c0_104 = arith.constant 0 : index
    %c2_105 = arith.constant 2 : index
    %c0_106 = arith.constant 0 : index
    %c0_107 = arith.constant 0 : index
    %140 = vector.load %arg9[%c0_104, %c2_105, %c0_106, %c0_107] : memref<1x4x1x8xf32, #tpu.memory_space<vmem>>, vector<1x1x1x8xf32>
    %141 = vector.shape_cast %140 : vector<1x1x1x8xf32> to vector<1x8xf32>
    %142 = vector.broadcast %141 : vector<1x8xf32> to vector<16x8xf32>
    %143 = arith.addf %139, %142 : vector<16x8xf32>
    %144 = vector.shape_cast %143 : vector<16x8xf32> to vector<2x8x8xf32>
    %145 = arith.truncf %128 : vector<2x8x8xf32> to vector<2x8x8xbf16>
    %146 = arith.truncf %136 : vector<2x8x8xf32> to vector<2x8x8xbf16>
    "tpu.trace_start"() <{level = 10 : i32, message = "bqd,bkd->bqk"}> : () -> ()
    %cst_108 = arith.constant dense<0.000000e+00> : vector<2x8x8xf32>
    %147 = tpu.matmul %145, %146, %cst_108 {dimension_numbers = #tpu.dot_dimension_numbers<[2], [2], [1], [1], [0, 0, 0, 1, 1, 1], [0], [0]>} : vector<2x8x8xbf16>, vector<2x8x8xbf16>, vector<2x8x8xf32> -> vector<2x8x8xf32>
    "tpu.trace_stop"() : () -> ()
    %cst_109 = arith.constant 0.353553385 : f32
    %148 = vector.broadcast %cst_109 : f32 to vector<2x8x8xf32>
    %149 = arith.mulf %147, %148 : vector<2x8x8xf32>
    %cst_110 = arith.constant dense<0xFF800000> : vector<2x8xf32>
    %150 = vector.multi_reduction <maximumf>, %149, %cst_110 [2] : vector<2x8x8xf32> to vector<2x8xf32>
    %151 = vector.shape_cast %150 : vector<2x8xf32> to vector<2x8x1xf32>
    %152 = vector.broadcast %151 : vector<2x8x1xf32> to vector<2x8x8xf32>
    %153 = arith.subf %149, %152 : vector<2x8x8xf32>
    %154 = math.exp %153 : vector<2x8x8xf32>
    %cst_111 = arith.constant dense<0.000000e+00> : vector<2x8xf32>
    %155 = vector.multi_reduction <add>, %154, %cst_111 [2] : vector<2x8x8xf32> to vector<2x8xf32>
    %156 = vector.shape_cast %155 : vector<2x8xf32> to vector<2x8x1xf32>
    %157 = tpu.reciprocal %156 {approx = true} : vector<2x8x1xf32> -> vector<2x8x1xf32>
    %158 = vector.broadcast %157 : vector<2x8x1xf32> to vector<2x8x8xf32>
    %159 = arith.mulf %154, %158 : vector<2x8x8xf32>
    %160 = arith.truncf %159 : vector<2x8x8xf32> to vector<2x8x8xbf16>
    %161 = arith.truncf %144 : vector<2x8x8xf32> to vector<2x8x8xbf16>
    "tpu.trace_start"() <{level = 10 : i32, message = "bqk,bkd->bqd"}> : () -> ()
    %cst_112 = arith.constant dense<0.000000e+00> : vector<2x8x8xf32>
    %162 = tpu.matmul %160, %161, %cst_112 {dimension_numbers = #tpu.dot_dimension_numbers<[2], [1], [1], [2], [0, 0, 0, 1, 1, 2], [0], [0]>} : vector<2x8x8xbf16>, vector<2x8x8xbf16>, vector<2x8x8xf32> -> vector<2x8x8xf32>
    "tpu.trace_stop"() : () -> ()
    %163 = vector.shape_cast %162 : vector<2x8x8xf32> to vector<16x8xf32>
    %164 = arith.truncf %163 : vector<16x8xf32> to vector<16x8xbf16>
    %c0_113 = arith.constant 0 : index
    %c2_114 = arith.constant 2 : index
    %c0_115 = arith.constant 0 : index
    %c0_116 = arith.constant 0 : index
    %165 = vector.load %arg10[%c0_113, %c2_114, %c0_115, %c0_116] : memref<1x4x8x32xbf16, #tpu.memory_space<vmem>>, vector<1x1x8x32xbf16>
    %166 = vector.shape_cast %165 : vector<1x1x8x32xbf16> to vector<8x32xbf16>
    %cst_117 = arith.constant dense<0.000000e+00> : vector<16x32xf32>
    %167 = tpu.matmul %164, %166, %cst_117 {dimension_numbers = #tpu.dot_dimension_numbers<[1], [0], [0], [1], [0, 0, 1, 1], [], []>} : vector<16x8xbf16>, vector<8x32xbf16>, vector<16x32xf32> -> vector<16x32xf32>
    %168 = arith.addf %120, %167 : vector<16x32xf32>
    %c0_118 = arith.constant 0 : index
    %c3 = arith.constant 3 : index
    %c0_119 = arith.constant 0 : index
    %c0_120 = arith.constant 0 : index
    %169 = vector.load %arg4[%c0_118, %c3, %c0_119, %c0_120] : memref<1x4x32x8xbf16, #tpu.memory_space<vmem>>, vector<1x1x32x8xbf16>
    %170 = vector.shape_cast %169 : vector<1x1x32x8xbf16> to vector<32x8xbf16>
    %cst_121 = arith.constant dense<0.000000e+00> : vector<16x8xf32>
    %171 = tpu.matmul %23, %170, %cst_121 {dimension_numbers = #tpu.dot_dimension_numbers<[1], [0], [0], [1], [0, 0, 1, 1], [], []>} : vector<16x32xbf16>, vector<32x8xbf16>, vector<16x8xf32> -> vector<16x8xf32>
    %c0_122 = arith.constant 0 : index
    %c3_123 = arith.constant 3 : index
    %c0_124 = arith.constant 0 : index
    %c0_125 = arith.constant 0 : index
    %172 = vector.load %arg5[%c0_122, %c3_123, %c0_124, %c0_125] : memref<1x4x1x8xf32, #tpu.memory_space<vmem>>, vector<1x1x1x8xf32>
    %173 = vector.shape_cast %172 : vector<1x1x1x8xf32> to vector<1x8xf32>
    %174 = vector.broadcast %173 : vector<1x8xf32> to vector<16x8xf32>
    %175 = arith.addf %171, %174 : vector<16x8xf32>
    %176 = vector.shape_cast %175 : vector<16x8xf32> to vector<2x8x8xf32>
    %c0_126 = arith.constant 0 : index
    %c3_127 = arith.constant 3 : index
    %c0_128 = arith.constant 0 : index
    %c0_129 = arith.constant 0 : index
    %177 = vector.load %arg6[%c0_126, %c3_127, %c0_128, %c0_129] : memref<1x4x32x8xbf16, #tpu.memory_space<vmem>>, vector<1x1x32x8xbf16>
    %178 = vector.shape_cast %177 : vector<1x1x32x8xbf16> to vector<32x8xbf16>
    %cst_130 = arith.constant dense<0.000000e+00> : vector<16x8xf32>
    %179 = tpu.matmul %23, %178, %cst_130 {dimension_numbers = #tpu.dot_dimension_numbers<[1], [0], [0], [1], [0, 0, 1, 1], [], []>} : vector<16x32xbf16>, vector<32x8xbf16>, vector<16x8xf32> -> vector<16x8xf32>
    %c0_131 = arith.constant 0 : index
    %c3_132 = arith.constant 3 : index
    %c0_133 = arith.constant 0 : index
    %c0_134 = arith.constant 0 : index
    %180 = vector.load %arg7[%c0_131, %c3_132, %c0_133, %c0_134] : memref<1x4x1x8xf32, #tpu.memory_space<vmem>>, vector<1x1x1x8xf32>
    %181 = vector.shape_cast %180 : vector<1x1x1x8xf32> to vector<1x8xf32>
    %182 = vector.broadcast %181 : vector<1x8xf32> to vector<16x8xf32>
    %183 = arith.addf %179, %182 : vector<16x8xf32>
    %184 = vector.shape_cast %183 : vector<16x8xf32> to vector<2x8x8xf32>
    %c0_135 = arith.constant 0 : index
    %c3_136 = arith.constant 3 : index
    %c0_137 = arith.constant 0 : index
    %c0_138 = arith.constant 0 : index
    %185 = vector.load %arg8[%c0_135, %c3_136, %c0_137, %c0_138] : memref<1x4x32x8xbf16, #tpu.memory_space<vmem>>, vector<1x1x32x8xbf16>
    %186 = vector.shape_cast %185 : vector<1x1x32x8xbf16> to vector<32x8xbf16>
    %cst_139 = arith.constant dense<0.000000e+00> : vector<16x8xf32>
    %187 = tpu.matmul %23, %186, %cst_139 {dimension_numbers = #tpu.dot_dimension_numbers<[1], [0], [0], [1], [0, 0, 1, 1], [], []>} : vector<16x32xbf16>, vector<32x8xbf16>, vector<16x8xf32> -> vector<16x8xf32>
    %c0_140 = arith.constant 0 : index
    %c3_141 = arith.constant 3 : index
    %c0_142 = arith.constant 0 : index
    %c0_143 = arith.constant 0 : index
    %188 = vector.load %arg9[%c0_140, %c3_141, %c0_142, %c0_143] : memref<1x4x1x8xf32, #tpu.memory_space<vmem>>, vector<1x1x1x8xf32>
    %189 = vector.shape_cast %188 : vector<1x1x1x8xf32> to vector<1x8xf32>
    %190 = vector.broadcast %189 : vector<1x8xf32> to vector<16x8xf32>
    %191 = arith.addf %187, %190 : vector<16x8xf32>
    %192 = vector.shape_cast %191 : vector<16x8xf32> to vector<2x8x8xf32>
    %193 = arith.truncf %176 : vector<2x8x8xf32> to vector<2x8x8xbf16>
    %194 = arith.truncf %184 : vector<2x8x8xf32> to vector<2x8x8xbf16>
    "tpu.trace_start"() <{level = 10 : i32, message = "bqd,bkd->bqk"}> : () -> ()
    %cst_144 = arith.constant dense<0.000000e+00> : vector<2x8x8xf32>
    %195 = tpu.matmul %193, %194, %cst_144 {dimension_numbers = #tpu.dot_dimension_numbers<[2], [2], [1], [1], [0, 0, 0, 1, 1, 1], [0], [0]>} : vector<2x8x8xbf16>, vector<2x8x8xbf16>, vector<2x8x8xf32> -> vector<2x8x8xf32>
    "tpu.trace_stop"() : () -> ()
    %cst_145 = arith.constant 0.353553385 : f32
    %196 = vector.broadcast %cst_145 : f32 to vector<2x8x8xf32>
    %197 = arith.mulf %195, %196 : vector<2x8x8xf32>
    %cst_146 = arith.constant dense<0xFF800000> : vector<2x8xf32>
    %198 = vector.multi_reduction <maximumf>, %197, %cst_146 [2] : vector<2x8x8xf32> to vector<2x8xf32>
    %199 = vector.shape_cast %198 : vector<2x8xf32> to vector<2x8x1xf32>
    %200 = vector.broadcast %199 : vector<2x8x1xf32> to vector<2x8x8xf32>
    %201 = arith.subf %197, %200 : vector<2x8x8xf32>
    %202 = math.exp %201 : vector<2x8x8xf32>
    %cst_147 = arith.constant dense<0.000000e+00> : vector<2x8xf32>
    %203 = vector.multi_reduction <add>, %202, %cst_147 [2] : vector<2x8x8xf32> to vector<2x8xf32>
    %204 = vector.shape_cast %203 : vector<2x8xf32> to vector<2x8x1xf32>
    %205 = tpu.reciprocal %204 {approx = true} : vector<2x8x1xf32> -> vector<2x8x1xf32>
    %206 = vector.broadcast %205 : vector<2x8x1xf32> to vector<2x8x8xf32>
    %207 = arith.mulf %202, %206 : vector<2x8x8xf32>
    %208 = arith.truncf %207 : vector<2x8x8xf32> to vector<2x8x8xbf16>
    %209 = arith.truncf %192 : vector<2x8x8xf32> to vector<2x8x8xbf16>
    "tpu.trace_start"() <{level = 10 : i32, message = "bqk,bkd->bqd"}> : () -> ()
    %cst_148 = arith.constant dense<0.000000e+00> : vector<2x8x8xf32>
    %210 = tpu.matmul %208, %209, %cst_148 {dimension_numbers = #tpu.dot_dimension_numbers<[2], [1], [1], [2], [0, 0, 0, 1, 1, 2], [0], [0]>} : vector<2x8x8xbf16>, vector<2x8x8xbf16>, vector<2x8x8xf32> -> vector<2x8x8xf32>
    "tpu.trace_stop"() : () -> ()
    %211 = vector.shape_cast %210 : vector<2x8x8xf32> to vector<16x8xf32>
    %212 = arith.truncf %211 : vector<16x8xf32> to vector<16x8xbf16>
    %c0_149 = arith.constant 0 : index
    %c3_150 = arith.constant 3 : index
    %c0_151 = arith.constant 0 : index
    %c0_152 = arith.constant 0 : index
    %213 = vector.load %arg10[%c0_149, %c3_150, %c0_151, %c0_152] : memref<1x4x8x32xbf16, #tpu.memory_space<vmem>>, vector<1x1x8x32xbf16>
    %214 = vector.shape_cast %213 : vector<1x1x8x32xbf16> to vector<8x32xbf16>
    %cst_153 = arith.constant dense<0.000000e+00> : vector<16x32xf32>
    %215 = tpu.matmul %212, %214, %cst_153 {dimension_numbers = #tpu.dot_dimension_numbers<[1], [0], [0], [1], [0, 0, 1, 1], [], []>} : vector<16x8xbf16>, vector<8x32xbf16>, vector<16x32xf32> -> vector<16x32xf32>
    %216 = arith.addf %168, %215 : vector<16x32xf32>
    %217 = arith.addf %3, %216 : vector<16x32xf32>
    %cst_154 = arith.constant dense<0.000000e+00> : vector<32xf32>
    %218 = vector.multi_reduction <add>, %217, %cst_154 [0] : vector<16x32xf32> to vector<32xf32>
    %219 = vector.shape_cast %218 : vector<32xf32> to vector<1x32xf32>
    %cst_155 = arith.constant 1.600000e+01 : f32
    %220 = vector.broadcast %cst_155 : f32 to vector<1x32xf32>
    %221 = arith.divf %219, %220 : vector<1x32xf32>
    %222 = vector.broadcast %221 : vector<1x32xf32> to vector<16x32xf32>
    %223 = arith.subf %217, %222 : vector<16x32xf32>
    %224 = arith.mulf %223, %223 : vector<16x32xf32>
    %cst_156 = arith.constant dense<0.000000e+00> : vector<32xf32>
    %225 = vector.multi_reduction <add>, %224, %cst_156 [0] : vector<16x32xf32> to vector<32xf32>
    %226 = vector.shape_cast %225 : vector<32xf32> to vector<1x32xf32>
    %cst_157 = arith.constant 1.600000e+01 : f32
    %227 = vector.broadcast %cst_157 : f32 to vector<1x32xf32>
    %228 = arith.divf %226, %227 : vector<1x32xf32>
    %229 = vector.broadcast %221 : vector<1x32xf32> to vector<16x32xf32>
    %230 = arith.subf %217, %229 : vector<16x32xf32>
    %cst_158 = arith.constant 9.99999974E-6 : f32
    %231 = vector.broadcast %cst_158 : f32 to vector<1x32xf32>
    %232 = arith.addf %228, %231 : vector<1x32xf32>
    %233 = math.rsqrt %232 : vector<1x32xf32>
    %234 = vector.broadcast %233 : vector<1x32xf32> to vector<16x32xf32>
    %235 = arith.mulf %230, %234 : vector<16x32xf32>
    %236 = arith.truncf %235 : vector<16x32xf32> to vector<16x32xbf16>
    %c0_159 = arith.constant 0 : index
    %c0_160 = arith.constant 0 : index
    %c0_161 = arith.constant 0 : index
    %237 = vector.load %arg11[%c0_159, %c0_160, %c0_161] : memref<1x32x64xbf16, #tpu.memory_space<vmem>>, vector<1x32x64xbf16>
    %238 = vector.shape_cast %237 : vector<1x32x64xbf16> to vector<32x64xbf16>
    %cst_162 = arith.constant dense<0.000000e+00> : vector<16x64xf32>
    %239 = tpu.matmul %236, %238, %cst_162 {dimension_numbers = #tpu.dot_dimension_numbers<[1], [0], [0], [1], [0, 0, 1, 1], [], []>} : vector<16x32xbf16>, vector<32x64xbf16>, vector<16x64xf32> -> vector<16x64xf32>
    %c0_163 = arith.constant 0 : index
    %c0_164 = arith.constant 0 : index
    %c0_165 = arith.constant 0 : index
    %240 = vector.load %arg12[%c0_163, %c0_164, %c0_165] : memref<1x1x64xf32, #tpu.memory_space<vmem>>, vector<1x1x64xf32>
    %241 = vector.shape_cast %240 : vector<1x1x64xf32> to vector<1x64xf32>
    %242 = vector.broadcast %241 : vector<1x64xf32> to vector<16x64xf32>
    %243 = arith.addf %239, %242 : vector<16x64xf32>
    %cst_166 = arith.constant 5.000000e-01 : f32
    %244 = vector.broadcast %cst_166 : f32 to vector<16x64xf32>
    %245 = arith.mulf %244, %243 : vector<16x64xf32>
    %cst_167 = arith.constant 0.707106769 : f32
    %246 = vector.broadcast %cst_167 : f32 to vector<16x64xf32>
    %247 = arith.mulf %243, %246 : vector<16x64xf32>
    %cst_168 = arith.constant 0.000000e+00 : f32
    %248 = vector.broadcast %cst_168 : f32 to vector<16x64xf32>
    %249 = arith.cmpf olt, %247, %248 : vector<16x64xf32>
    %cst_169 = arith.constant -1.000000e+00 : f32
    %cst_170 = arith.constant 1.000000e+00 : f32
    %250 = vector.broadcast %cst_169 : f32 to vector<16x64xf32>
    %251 = vector.broadcast %cst_170 : f32 to vector<16x64xf32>
    %252 = arith.select %249, %250, %251 : vector<16x64xi1>, vector<16x64xf32>
    %253 = math.absf %247 : vector<16x64xf32>
    %cst_171 = arith.constant 0.327591091 : f32
    %254 = vector.broadcast %cst_171 : f32 to vector<16x64xf32>
    %255 = arith.mulf %254, %253 : vector<16x64xf32>
    %cst_172 = arith.constant 1.000000e+00 : f32
    %256 = vector.broadcast %cst_172 : f32 to vector<16x64xf32>
    %257 = arith.addf %256, %255 : vector<16x64xf32>
    %cst_173 = arith.constant 1.000000e+00 : f32
    %258 = vector.broadcast %cst_173 : f32 to vector<16x64xf32>
    %259 = arith.divf %258, %257 : vector<16x64xf32>
    %cst_174 = arith.constant 1.06140542 : f32
    %260 = vector.broadcast %cst_174 : f32 to vector<16x64xf32>
    %261 = arith.mulf %260, %259 : vector<16x64xf32>
    %cst_175 = arith.constant -1.45315206 : f32
    %262 = vector.broadcast %cst_175 : f32 to vector<16x64xf32>
    %263 = arith.addf %261, %262 : vector<16x64xf32>
    %264 = arith.mulf %263, %259 : vector<16x64xf32>
    %cst_176 = arith.constant 1.42141378 : f32
    %265 = vector.broadcast %cst_176 : f32 to vector<16x64xf32>
    %266 = arith.addf %264, %265 : vector<16x64xf32>
    %267 = arith.mulf %266, %259 : vector<16x64xf32>
    %cst_177 = arith.constant -0.284496725 : f32
    %268 = vector.broadcast %cst_177 : f32 to vector<16x64xf32>
    %269 = arith.addf %267, %268 : vector<16x64xf32>
    %270 = arith.mulf %269, %259 : vector<16x64xf32>
    %cst_178 = arith.constant 0.254829586 : f32
    %271 = vector.broadcast %cst_178 : f32 to vector<16x64xf32>
    %272 = arith.addf %270, %271 : vector<16x64xf32>
    %273 = arith.mulf %272, %259 : vector<16x64xf32>
    %cst_179 = arith.constant 0.000000e+00 : f32
    %274 = vector.broadcast %cst_179 : f32 to vector<16x64xf32>
    %275 = arith.subf %274, %253 : vector<16x64xf32>
    %276 = arith.mulf %275, %253 : vector<16x64xf32>
    %277 = math.exp %276 : vector<16x64xf32>
    %278 = arith.mulf %273, %277 : vector<16x64xf32>
    %cst_180 = arith.constant 1.000000e+00 : f32
    %279 = vector.broadcast %cst_180 : f32 to vector<16x64xf32>
    %280 = arith.subf %279, %278 : vector<16x64xf32>
    %281 = arith.mulf %252, %280 : vector<16x64xf32>
    %cst_181 = arith.constant 1.000000e+00 : f32
    %282 = vector.broadcast %cst_181 : f32 to vector<16x64xf32>
    %283 = arith.addf %282, %281 : vector<16x64xf32>
    %284 = arith.mulf %245, %283 : vector<16x64xf32>
    %285 = arith.truncf %284 : vector<16x64xf32> to vector<16x64xbf16>
    %c0_182 = arith.constant 0 : index
    %c0_183 = arith.constant 0 : index
    %c0_184 = arith.constant 0 : index
    %286 = vector.load %arg13[%c0_182, %c0_183, %c0_184] : memref<1x64x32xbf16, #tpu.memory_space<vmem>>, vector<1x64x32xbf16>
    %287 = vector.shape_cast %286 : vector<1x64x32xbf16> to vector<64x32xbf16>
    %cst_185 = arith.constant dense<0.000000e+00> : vector<16x32xf32>
    %288 = tpu.matmul %285, %287, %cst_185 {dimension_numbers = #tpu.dot_dimension_numbers<[1], [0], [0], [1], [0, 0, 1, 1], [], []>} : vector<16x64xbf16>, vector<64x32xbf16>, vector<16x32xf32> -> vector<16x32xf32>
    %c0_186 = arith.constant 0 : index
    %c0_187 = arith.constant 0 : index
    %c0_188 = arith.constant 0 : index
    %289 = vector.load %arg14[%c0_186, %c0_187, %c0_188] : memref<1x1x32xf32, #tpu.memory_space<vmem>>, vector<1x1x32xf32>
    %290 = vector.shape_cast %289 : vector<1x1x32xf32> to vector<1x32xf32>
    %291 = vector.broadcast %290 : vector<1x32xf32> to vector<16x32xf32>
    %292 = arith.addf %288, %291 : vector<16x32xf32>
    %293 = arith.addf %4, %292 : vector<16x32xf32>
    %c0_189 = arith.constant 0 : index
    %c0_190 = arith.constant 0 : index
    %294 = vector.load %arg16[%c0_189, %c0_190] : memref<16x32xf32, #tpu.memory_space<vmem>>, vector<16x32xf32>
    tpu.vector_store %arg16[%c0_189, %c0_190], %217 {strides = array<i32>} : memref<16x32xf32, #tpu.memory_space<vmem>>, vector<16x32xf32>,
    %c0_191 = arith.constant 0 : index
    %c0_192 = arith.constant 0 : index
    %295 = vector.load %arg17[%c0_191, %c0_192] : memref<16x32xf32, #tpu.memory_space<vmem>>, vector<16x32xf32>
    tpu.vector_store %arg17[%c0_191, %c0_192], %293 {strides = array<i32>} : memref<16x32xf32, #tpu.memory_space<vmem>>, vector<16x32xf32>,
    %c1_i32 = arith.constant 1 : i32
    %296 = arith.cmpi eq, %arg0, %c1_i32 : i32
    %297 = arith.extui %296 : i1 to i32
    %c0_i32_193 = arith.constant 0 : i32
    %298 = arith.cmpi ne, %297, %c0_i32_193 : i32
    scf.if %298 {
      %c0_194 = arith.constant 0 : index
      %c0_195 = arith.constant 0 : index
      %299 = vector.load %arg15[%c0_194, %c0_195] : memref<16x32xf32, #tpu.memory_space<vmem>>, vector<16x32xf32>
      tpu.vector_store %arg15[%c0_194, %c0_195], %293 {strides = array<i32>} : memref<16x32xf32, #tpu.memory_space<vmem>>, vector<16x32xf32>,
    } else {
    }
    return
  }
  func.func @transform_0(%arg0: i32) -> (i32, i32) {
    %c0_i32 = arith.constant 0 : i32
    %c0_i32_0 = arith.constant 0 : i32
    %c0_i32_1 = arith.constant 0 : i32
    return %c0_i32, %c0_i32_0 : i32, i32
  }
  func.func @transform_1(%arg0: i32) -> (i32, i32) {
    %c0_i32 = arith.constant 0 : i32
    %c0_i32_0 = arith.constant 0 : i32
    %c0_i32_1 = arith.constant 0 : i32
    return %c0_i32, %c0_i32_0 : i32, i32
  }
  func.func @transform_2(%arg0: i32) -> (i32, i32) {
    %c0_i32 = arith.constant 0 : i32
    %c0_i32_0 = arith.constant 0 : i32
    %c0_i32_1 = arith.constant 0 : i32
    return %c0_i32, %c0_i32_0 : i32, i32
  }
  func.func @transform_3(%arg0: i32) -> (i32, i32, i32, i32) {
    %c0_i32 = arith.constant 0 : i32
    %c0_i32_0 = arith.constant 0 : i32
    %c0_i32_1 = arith.constant 0 : i32
    %c0_i32_2 = arith.constant 0 : i32
    return %arg0, %c0_i32, %c0_i32_0, %c0_i32_1 : i32, i32, i32, i32
  }
  func.func @transform_4(%arg0: i32) -> (i32, i32, i32, i32) {
    %c0_i32 = arith.constant 0 : i32
    %c0_i32_0 = arith.constant 0 : i32
    %c0_i32_1 = arith.constant 0 : i32
    %c0_i32_2 = arith.constant 0 : i32
    return %arg0, %c0_i32, %c0_i32_0, %c0_i32_1 : i32, i32, i32, i32
  }
  func.func @transform_5(%arg0: i32) -> (i32, i32, i32, i32) {
    %c0_i32 = arith.constant 0 : i32
    %c0_i32_0 = arith.constant 0 : i32
    %c0_i32_1 = arith.constant 0 : i32
    %c0_i32_2 = arith.constant 0 : i32
    return %arg0, %c0_i32, %c0_i32_0, %c0_i32_1 : i32, i32, i32, i32
  }
  func.func @transform_6(%arg0: i32) -> (i32, i32, i32, i32) {
    %c0_i32 = arith.constant 0 : i32
    %c0_i32_0 = arith.constant 0 : i32
    %c0_i32_1 = arith.constant 0 : i32
    %c0_i32_2 = arith.constant 0 : i32
    return %arg0, %c0_i32, %c0_i32_0, %c0_i32_1 : i32, i32, i32, i32
  }
  func.func @transform_7(%arg0: i32) -> (i32, i32, i32, i32) {
    %c0_i32 = arith.constant 0 : i32
    %c0_i32_0 = arith.constant 0 : i32
    %c0_i32_1 = arith.constant 0 : i32
    %c0_i32_2 = arith.constant 0 : i32
    return %arg0, %c0_i32, %c0_i32_0, %c0_i32_1 : i32, i32, i32, i32
  }
  func.func @transform_8(%arg0: i32) -> (i32, i32, i32, i32) {
    %c0_i32 = arith.constant 0 : i32
    %c0_i32_0 = arith.constant 0 : i32
    %c0_i32_1 = arith.constant 0 : i32
    %c0_i32_2 = arith.constant 0 : i32
    return %arg0, %c0_i32, %c0_i32_0, %c0_i32_1 : i32, i32, i32, i32
  }
  func.func @transform_9(%arg0: i32) -> (i32, i32, i32, i32) {
    %c0_i32 = arith.constant 0 : i32
    %c0_i32_0 = arith.constant 0 : i32
    %c0_i32_1 = arith.constant 0 : i32
    %c0_i32_2 = arith.constant 0 : i32
    return %arg0, %c0_i32, %c0_i32_0, %c0_i32_1 : i32, i32, i32, i32
  }
  func.func @transform_10(%arg0: i32) -> (i32, i32, i32) {
    %c0_i32 = arith.constant 0 : i32
    %c0_i32_0 = arith.constant 0 : i32
    %c0_i32_1 = arith.constant 0 : i32
    return %arg0, %c0_i32, %c0_i32_0 : i32, i32, i32
  }
  func.func @transform_11(%arg0: i32) -> (i32, i32, i32) {
    %c0_i32 = arith.constant 0 : i32
    %c0_i32_0 = arith.constant 0 : i32
    %c0_i32_1 = arith.constant 0 : i32
    return %arg0, %c0_i32, %c0_i32_0 : i32, i32, i32
  }
  func.func @transform_12(%arg0: i32) -> (i32, i32, i32) {
    %c0_i32 = arith.constant 0 : i32
    %c0_i32_0 = arith.constant 0 : i32
    %c0_i32_1 = arith.constant 0 : i32
    return %arg0, %c0_i32, %c0_i32_0 : i32, i32, i32
  }
  func.func @transform_13(%arg0: i32) -> (i32, i32, i32) {
    %c0_i32 = arith.constant 0 : i32
    %c0_i32_0 = arith.constant 0 : i32
    %c0_i32_1 = arith.constant 0 : i32
    return %arg0, %c0_i32, %c0_i32_0 : i32, i32, i32
  }
  func.func @transform_14(%arg0: i32) -> (i32, i32) {
    %c0_i32 = arith.constant 0 : i32
    %c0_i32_0 = arith.constant 0 : i32
    %c0_i32_1 = arith.constant 0 : i32
    return %c0_i32, %c0_i32_0 : i32, i32
  }
}

</mosaic_0001>

<llo_original>
// kernel: tpu_custom_call.1
$region0: #{tpu_custom_call.1}
  #allocation0 [shape = 'u32[]', space=smem, size = 0x4, offset = 0x4, fixed_abs, tag = 'smem constant byte address 0x4 - core index']
  #allocation1 [shape = 'u32[144,128]{1,0:T(1,128)}', space=vmem, size = 0x12000, scoped, tag = 'internal scratch']
  #allocation2 [shape = 'f32[16,32]{1,0:T(8,128)}', space=vmem, size = 0x2000, scoped, tag = 'scratch operand']
  #allocation3 [shape = 'f32[16,32]{1,0:T(8,128)}', space=vmem, size = 0x2000, scoped, tag = 'scratch operand']
  %s0 = inlined_call_operand.vmem [shape: f32[16,16], index: 0, kind: input, shape index: {}]
  %s1 = inlined_call_operand.vmem [shape: bf16[16,32], index: 1, kind: input, shape index: {}]
  %s2 = inlined_call_operand.vmem [shape: f32[1,32], index: 2, kind: input, shape index: {}]
  %s3 = inlined_call_operand.vmem [shape: bf16[2,4,32,8], index: 3, kind: input, shape index: {}]
  %s4 = inlined_call_operand.vmem [shape: f32[2,4,1,8], index: 4, kind: input, shape index: {}]
  %s5 = inlined_call_operand.vmem [shape: bf16[2,4,32,8], index: 5, kind: input, shape index: {}]
  %s6 = inlined_call_operand.vmem [shape: f32[2,4,1,8], index: 6, kind: input, shape index: {}]
  %s7 = inlined_call_operand.vmem [shape: bf16[2,4,32,8], index: 7, kind: input, shape index: {}]
  %s8 = inlined_call_operand.vmem [shape: f32[2,4,1,8], index: 8, kind: input, shape index: {}]
  %s9 = inlined_call_operand.vmem [shape: bf16[2,4,8,32], index: 9, kind: input, shape index: {}]
  %s10 = inlined_call_operand.vmem [shape: bf16[2,32,64], index: 10, kind: input, shape index: {}]
  %s11 = inlined_call_operand.vmem [shape: f32[2,1,64], index: 11, kind: input, shape index: {}]
  %s12 = inlined_call_operand.vmem [shape: bf16[2,64,32], index: 12, kind: input, shape index: {}]
  %s13 = inlined_call_operand.vmem [shape: f32[2,1,32], index: 13, kind: input, shape index: {}]
  %s14 = inlined_call_operand.hbm [shape: f32[16,32], index: 14, kind: output, shape index: {}]
  %s15 = sld [smem:[#allocation0]]
  $region97: #{tpu_custom_call.1} parent=0
    _
  %s17 = ssub.s32 1, %s15
  %s18 = scalar_select 0, %s17, %s15
  $region1: #{tpu_custom_call.1} parent=0
    #allocation4 [shape = 'u8[8192]{0}', space=vmem, size = 0x2000, scoped, tag = 'output window, operand 0, single buffered']
    #allocation5 [shape = 's32[2]{0}', space=sflag, size = 0x8, scoped, tag = 'scoped memory for tpu_custom_call.1']
    %19 = vsyncpa [#allocation5], 0
    loop: start=0, step=1, limit=4
    $region2: #{tpu_custom_call.1} parent=1 // loop_pre_header
      _
    $region3: #{tpu_custom_call.1} parent=1 // loop_header
      %s21 = sphi 0, %s25
      %p22 = scmp.ge.s32.totalorder %s21, 4
      %s29 = sphi 0, %s29
      %s31 = sphi 0, %s29
      %s32 = sphi 0, %s31
      %s46 = sphi 0, %s32
      %s50 = sphi 0, %s50
      %s52 = sphi 0, %s50
      %s53 = sphi 0, %s52
      %s67 = sphi 0, %s53
      %s71 = sphi 0, %s71
      %s73 = sphi 0, %s71
      %s74 = sphi 0, %s73
      %s88 = sphi 0, %s74
      %s94 = sphi 0, %s96
      %s97 = sphi 0, %s94
      %s98 = sphi 0, %s97
      %s114 = sphi 0, %s98
      %s120 = sphi 0, %s122
      %s123 = sphi 0, %s120
      %s124 = sphi 0, %s123
      %s140 = sphi 0, %s124
      %s146 = sphi 0, %s148
      %s149 = sphi 0, %s146
      %s150 = sphi 0, %s149
      %s166 = sphi 0, %s150
      %s172 = sphi 0, %s174
      %s175 = sphi 0, %s172
      %s176 = sphi 0, %s175
      %s192 = sphi 0, %s176
      %s198 = sphi 0, %s200
      %s201 = sphi 0, %s198
      %s202 = sphi 0, %s201
      %s218 = sphi 0, %s202
      %s224 = sphi 0, %s226
      %s227 = sphi 0, %s224
      %s228 = sphi 0, %s227
      %s244 = sphi 0, %s228
      %s250 = sphi 0, %s252
      %s253 = sphi 0, %s250
      %s254 = sphi 0, %s253
      %s270 = sphi 0, %s254
      %s276 = sphi 0, %s278
      %s279 = sphi 0, %s276
      %s280 = sphi 0, %s279
      %s296 = sphi 0, %s280
      %s302 = sphi 0, %s304
      %s305 = sphi 0, %s302
      %s306 = sphi 0, %s305
      %s322 = sphi 0, %s306
      %s328 = sphi 0, %s330
      %s331 = sphi 0, %s328
      %s332 = sphi 0, %s331
      %s348 = sphi 0, %s332
      %s354 = sphi 0, %s356
      %s357 = sphi 0, %s354
      %s358 = sphi 0, %s357
      %s374 = sphi 0, %s358
      %s378 = sphi 0, %s378
      %s380 = sphi 0, %s378
      %s381 = sphi 0, %s380
      %s395 = sphi 0, %s381
    $region4: #{tpu_custom_call.1} parent=1 // loop_header_branch
      %24 = sbr.rel (%p22) target = $region8
    $region5: #{tpu_custom_call.1} parent=1 // loop_body
      %s26 = ssub.s32 %s21, 1
      %s27 = ssub.s32 %s21, 2
      %s28 = sadd.s32 %s21, 1
      %s30 = sadd.s32 %s29, 1
      %p33 = scmp.eq.s32.totalorder %s21, 1
      %p34 = scmp.ne.s32.totalorder %s29, %s31
      %p35 = scmp.eq.s32.totalorder %s21, 0
      %p36 = por %p34, %p35
      %p37 = scmp.ne.s32.totalorder %s29, %s31
      %p38 = scmp.eq.s32.totalorder %s26, 1
      %p39 = por %p37, %p38
      %p40 = scmp.ne.s32.totalorder %s31, %s32
      %p41 = scmp.eq.s32.totalorder %s26, 0
      %p42 = por %p40, %p41
      %p43 = scmp.ne.s32.totalorder %s31, %s32
      %p44 = scmp.eq.s32.totalorder %s27, 1
      %p45 = por %p43, %p44
      %p47 = scmp.ne.s32.totalorder %s32, %s46
      %p48 = scmp.eq.s32.totalorder %s27, 0
      %p49 = por %p47, %p48
      %s51 = sadd.s32 %s50, 1
      %p54 = scmp.eq.s32.totalorder %s21, 1
      %p55 = scmp.ne.s32.totalorder %s50, %s52
      %p56 = scmp.eq.s32.totalorder %s21, 0
      %p57 = por %p55, %p56
      %p58 = scmp.ne.s32.totalorder %s50, %s52
      %p59 = scmp.eq.s32.totalorder %s26, 1
      %p60 = por %p58, %p59
      %p61 = scmp.ne.s32.totalorder %s52, %s53
      %p62 = scmp.eq.s32.totalorder %s26, 0
      %p63 = por %p61, %p62
      %p64 = scmp.ne.s32.totalorder %s52, %s53
      %p65 = scmp.eq.s32.totalorder %s27, 1
      %p66 = por %p64, %p65
      %p68 = scmp.ne.s32.totalorder %s53, %s67
      %p69 = scmp.eq.s32.totalorder %s27, 0
      %p70 = por %p68, %p69
      %s72 = sadd.s32 %s71, 1
      %p75 = scmp.eq.s32.totalorder %s21, 1
      %p76 = scmp.ne.s32.totalorder %s71, %s73
      %p77 = scmp.eq.s32.totalorder %s21, 0
      %p78 = por %p76, %p77
      %p79 = scmp.ne.s32.totalorder %s71, %s73
      %p80 = scmp.eq.s32.totalorder %s26, 1
      %p81 = por %p79, %p80
      %p82 = scmp.ne.s32.totalorder %s73, %s74
      %p83 = scmp.eq.s32.totalorder %s26, 0
      %p84 = por %p82, %p83
      %p85 = scmp.ne.s32.totalorder %s73, %s74
      %p86 = scmp.eq.s32.totalorder %s27, 1
      %p87 = por %p85, %p86
      %p89 = scmp.ne.s32.totalorder %s74, %s88
      %p90 = scmp.eq.s32.totalorder %s27, 0
      %p91 = por %p89, %p90
      %s92 = ssub.s32 %s21, %s28
      %p93 = scmp.eq.s32.totalorder %s92, 0
      %s95 = sadd.s32 %s94, 1
      %s96 = scalar_select %p93, %s94, %s95
      %p99 = pneg %p93
      %p100 = scmp.eq.s32.totalorder %s21, 1
      %p101 = por %p99, %p100
      %p102 = scmp.ne.s32.totalorder %s94, %s97
      %p103 = scmp.eq.s32.totalorder %s21, 0
      %p104 = por %p102, %p103
      %p105 = scmp.ne.s32.totalorder %s94, %s97
      %p106 = scmp.eq.s32.totalorder %s26, 1
      %p107 = por %p105, %p106
      %p108 = scmp.ne.s32.totalorder %s97, %s98
      %p109 = scmp.eq.s32.totalorder %s26, 0
      %p110 = por %p108, %p109
      %p111 = scmp.ne.s32.totalorder %s97, %s98
      %p112 = scmp.eq.s32.totalorder %s27, 1
      %p113 = por %p111, %p112
      %p115 = scmp.ne.s32.totalorder %s98, %s114
      %p116 = scmp.eq.s32.totalorder %s27, 0
      %p117 = por %p115, %p116
      %s118 = ssub.s32 %s21, %s28
      %p119 = scmp.eq.s32.totalorder %s118, 0
      %s121 = sadd.s32 %s120, 1
      %s122 = scalar_select %p119, %s120, %s121
      %p125 = pneg %p119
      %p126 = scmp.eq.s32.totalorder %s21, 1
      %p127 = por %p125, %p126
      %p128 = scmp.ne.s32.totalorder %s120, %s123
      %p129 = scmp.eq.s32.totalorder %s21, 0
      %p130 = por %p128, %p129
      %p131 = scmp.ne.s32.totalorder %s120, %s123
      %p132 = scmp.eq.s32.totalorder %s26, 1
      %p133 = por %p131, %p132
      %p134 = scmp.ne.s32.totalorder %s123, %s124
      %p135 = scmp.eq.s32.totalorder %s26, 0
      %p136 = por %p134, %p135
      %p137 = scmp.ne.s32.totalorder %s123, %s124
      %p138 = scmp.eq.s32.totalorder %s27, 1
      %p139 = por %p137, %p138
      %p141 = scmp.ne.s32.totalorder %s124, %s140
      %p142 = scmp.eq.s32.totalorder %s27, 0
      %p143 = por %p141, %p142
      %s144 = ssub.s32 %s21, %s28
      %p145 = scmp.eq.s32.totalorder %s144, 0
      %s147 = sadd.s32 %s146, 1
      %s148 = scalar_select %p145, %s146, %s147
      %p151 = pneg %p145
      %p152 = scmp.eq.s32.totalorder %s21, 1
      %p153 = por %p151, %p152
      %p154 = scmp.ne.s32.totalorder %s146, %s149
      %p155 = scmp.eq.s32.totalorder %s21, 0
      %p156 = por %p154, %p155
      %p157 = scmp.ne.s32.totalorder %s146, %s149
      %p158 = scmp.eq.s32.totalorder %s26, 1
      %p159 = por %p157, %p158
      %p160 = scmp.ne.s32.totalorder %s149, %s150
      %p161 = scmp.eq.s32.totalorder %s26, 0
      %p162 = por %p160, %p161
      %p163 = scmp.ne.s32.totalorder %s149, %s150
      %p164 = scmp.eq.s32.totalorder %s27, 1
      %p165 = por %p163, %p164
      %p167 = scmp.ne.s32.totalorder %s150, %s166
      %p168 = scmp.eq.s32.totalorder %s27, 0
      %p169 = por %p167, %p168
      %s170 = ssub.s32 %s21, %s28
      %p171 = scmp.eq.s32.totalorder %s170, 0
      %s173 = sadd.s32 %s172, 1
      %s174 = scalar_select %p171, %s172, %s173
      %p177 = pneg %p171
      %p178 = scmp.eq.s32.totalorder %s21, 1
      %p179 = por %p177, %p178
      %p180 = scmp.ne.s32.totalorder %s172, %s175
      %p181 = scmp.eq.s32.totalorder %s21, 0
      %p182 = por %p180, %p181
      %p183 = scmp.ne.s32.totalorder %s172, %s175
      %p184 = scmp.eq.s32.totalorder %s26, 1
      %p185 = por %p183, %p184
      %p186 = scmp.ne.s32.totalorder %s175, %s176
      %p187 = scmp.eq.s32.totalorder %s26, 0
      %p188 = por %p186, %p187
      %p189 = scmp.ne.s32.totalorder %s175, %s176
      %p190 = scmp.eq.s32.totalorder %s27, 1
      %p191 = por %p189, %p190
      %p193 = scmp.ne.s32.totalorder %s176, %s192
      %p194 = scmp.eq.s32.totalorder %s27, 0
      %p195 = por %p193, %p194
      %s196 = ssub.s32 %s21, %s28
      %p197 = scmp.eq.s32.totalorder %s196, 0
      %s199 = sadd.s32 %s198, 1
      %s200 = scalar_select %p197, %s198, %s199
      %p203 = pneg %p197
      %p204 = scmp.eq.s32.totalorder %s21, 1
      %p205 = por %p203, %p204
      %p206 = scmp.ne.s32.totalorder %s198, %s201
      %p207 = scmp.eq.s32.totalorder %s21, 0
      %p208 = por %p206, %p207
      %p209 = scmp.ne.s32.totalorder %s198, %s201
      %p210 = scmp.eq.s32.totalorder %s26, 1
      %p211 = por %p209, %p210
      %p212 = scmp.ne.s32.totalorder %s201, %s202
      %p213 = scmp.eq.s32.totalorder %s26, 0
      %p214 = por %p212, %p213
      %p215 = scmp.ne.s32.totalorder %s201, %s202
      %p216 = scmp.eq.s32.totalorder %s27, 1
      %p217 = por %p215, %p216
      %p219 = scmp.ne.s32.totalorder %s202, %s218
      %p220 = scmp.eq.s32.totalorder %s27, 0
      %p221 = por %p219, %p220
      %s222 = ssub.s32 %s21, %s28
      %p223 = scmp.eq.s32.totalorder %s222, 0
      %s225 = sadd.s32 %s224, 1
      %s226 = scalar_select %p223, %s224, %s225
      %p229 = pneg %p223
      %p230 = scmp.eq.s32.totalorder %s21, 1
      %p231 = por %p229, %p230
      %p232 = scmp.ne.s32.totalorder %s224, %s227
      %p233 = scmp.eq.s32.totalorder %s21, 0
      %p234 = por %p232, %p233
      %p235 = scmp.ne.s32.totalorder %s224, %s227
      %p236 = scmp.eq.s32.totalorder %s26, 1
      %p237 = por %p235, %p236
      %p238 = scmp.ne.s32.totalorder %s227, %s228
      %p239 = scmp.eq.s32.totalorder %s26, 0
      %p240 = por %p238, %p239
      %p241 = scmp.ne.s32.totalorder %s227, %s228
      %p242 = scmp.eq.s32.totalorder %s27, 1
      %p243 = por %p241, %p242
      %p245 = scmp.ne.s32.totalorder %s228, %s244
      %p246 = scmp.eq.s32.totalorder %s27, 0
      %p247 = por %p245, %p246
      %s248 = ssub.s32 %s21, %s28
      %p249 = scmp.eq.s32.totalorder %s248, 0
      %s251 = sadd.s32 %s250, 1
      %s252 = scalar_select %p249, %s250, %s251
      %p255 = pneg %p249
      %p256 = scmp.eq.s32.totalorder %s21, 1
      %p257 = por %p255, %p256
      %p258 = scmp.ne.s32.totalorder %s250, %s253
      %p259 = scmp.eq.s32.totalorder %s21, 0
      %p260 = por %p258, %p259
      %p261 = scmp.ne.s32.totalorder %s250, %s253
      %p262 = scmp.eq.s32.totalorder %s26, 1
      %p263 = por %p261, %p262
      %p264 = scmp.ne.s32.totalorder %s253, %s254
      %p265 = scmp.eq.s32.totalorder %s26, 0
      %p266 = por %p264, %p265
      %p267 = scmp.ne.s32.totalorder %s253, %s254
      %p268 = scmp.eq.s32.totalorder %s27, 1
      %p269 = por %p267, %p268
      %p271 = scmp.ne.s32.totalorder %s254, %s270
      %p272 = scmp.eq.s32.totalorder %s27, 0
      %p273 = por %p271, %p272
      %s274 = ssub.s32 %s21, %s28
      %p275 = scmp.eq.s32.totalorder %s274, 0
      %s277 = sadd.s32 %s276, 1
      %s278 = scalar_select %p275, %s276, %s277
      %p281 = pneg %p275
      %p282 = scmp.eq.s32.totalorder %s21, 1
      %p283 = por %p281, %p282
      %p284 = scmp.ne.s32.totalorder %s276, %s279
      %p285 = scmp.eq.s32.totalorder %s21, 0
      %p286 = por %p284, %p285
      %p287 = scmp.ne.s32.totalorder %s276, %s279
      %p288 = scmp.eq.s32.totalorder %s26, 1
      %p289 = por %p287, %p288
      %p290 = scmp.ne.s32.totalorder %s279, %s280
      %p291 = scmp.eq.s32.totalorder %s26, 0
      %p292 = por %p290, %p291
      %p293 = scmp.ne.s32.totalorder %s279, %s280
      %p294 = scmp.eq.s32.totalorder %s27, 1
      %p295 = por %p293, %p294
      %p297 = scmp.ne.s32.totalorder %s280, %s296
      %p298 = scmp.eq.s32.totalorder %s27, 0
      %p299 = por %p297, %p298
      %s300 = ssub.s32 %s21, %s28
      %p301 = scmp.eq.s32.totalorder %s300, 0
      %s303 = sadd.s32 %s302, 1
      %s304 = scalar_select %p301, %s302, %s303
      %p307 = pneg %p301
      %p308 = scmp.eq.s32.totalorder %s21, 1
      %p309 = por %p307, %p308
      %p310 = scmp.ne.s32.totalorder %s302, %s305
      %p311 = scmp.eq.s32.totalorder %s21, 0
      %p312 = por %p310, %p311
      %p313 = scmp.ne.s32.totalorder %s302, %s305
      %p314 = scmp.eq.s32.totalorder %s26, 1
      %p315 = por %p313, %p314
      %p316 = scmp.ne.s32.totalorder %s305, %s306
      %p317 = scmp.eq.s32.totalorder %s26, 0
      %p318 = por %p316, %p317
      %p319 = scmp.ne.s32.totalorder %s305, %s306
      %p320 = scmp.eq.s32.totalorder %s27, 1
      %p321 = por %p319, %p320
      %p323 = scmp.ne.s32.totalorder %s306, %s322
      %p324 = scmp.eq.s32.totalorder %s27, 0
      %p325 = por %p323, %p324
      %s326 = ssub.s32 %s21, %s28
      %p327 = scmp.eq.s32.totalorder %s326, 0
      %s329 = sadd.s32 %s328, 1
      %s330 = scalar_select %p327, %s328, %s329
      %p333 = pneg %p327
      %p334 = scmp.eq.s32.totalorder %s21, 1
      %p335 = por %p333, %p334
      %p336 = scmp.ne.s32.totalorder %s328, %s331
      %p337 = scmp.eq.s32.totalorder %s21, 0
      %p338 = por %p336, %p337
      %p339 = scmp.ne.s32.totalorder %s328, %s331
      %p340 = scmp.eq.s32.totalorder %s26, 1
      %p341 = por %p339, %p340
      %p342 = scmp.ne.s32.totalorder %s331, %s332
      %p343 = scmp.eq.s32.totalorder %s26, 0
      %p344 = por %p342, %p343
      %p345 = scmp.ne.s32.totalorder %s331, %s332
      %p346 = scmp.eq.s32.totalorder %s27, 1
      %p347 = por %p345, %p346
      %p349 = scmp.ne.s32.totalorder %s332, %s348
      %p350 = scmp.eq.s32.totalorder %s27, 0
      %p351 = por %p349, %p350
      %s352 = ssub.s32 %s21, %s28
      %p353 = scmp.eq.s32.totalorder %s352, 0
      %s355 = sadd.s32 %s354, 1
      %s356 = scalar_select %p353, %s354, %s355
      %p359 = pneg %p353
      %p360 = scmp.eq.s32.totalorder %s21, 1
      %p361 = por %p359, %p360
      %p362 = scmp.ne.s32.totalorder %s354, %s357
      %p363 = scmp.eq.s32.totalorder %s21, 0
      %p364 = por %p362, %p363
      %p365 = scmp.ne.s32.totalorder %s354, %s357
      %p366 = scmp.eq.s32.totalorder %s26, 1
      %p367 = por %p365, %p366
      %p368 = scmp.ne.s32.totalorder %s357, %s358
      %p369 = scmp.eq.s32.totalorder %s26, 0
      %p370 = por %p368, %p369
      %p371 = scmp.ne.s32.totalorder %s357, %s358
      %p372 = scmp.eq.s32.totalorder %s27, 1
      %p373 = por %p371, %p372
      %p375 = scmp.ne.s32.totalorder %s358, %s374
      %p376 = scmp.eq.s32.totalorder %s27, 0
      %p377 = por %p375, %p376
      %s379 = sadd.s32 %s378, 1
      %p382 = scmp.eq.s32.totalorder %s21, 1
      %p383 = scmp.ne.s32.totalorder %s378, %s380
      %p384 = scmp.eq.s32.totalorder %s21, 0
      %p385 = por %p383, %p384
      %p386 = scmp.ne.s32.totalorder %s378, %s380
      %p387 = scmp.eq.s32.totalorder %s26, 1
      %p388 = por %p386, %p387
      %p389 = scmp.ne.s32.totalorder %s380, %s381
      %p390 = scmp.eq.s32.totalorder %s26, 0
      %p391 = por %p389, %p390
      %p392 = scmp.ne.s32.totalorder %s380, %s381
      %p393 = scmp.eq.s32.totalorder %s27, 1
      %p394 = por %p392, %p393
      %p396 = scmp.ne.s32.totalorder %s381, %s395
      %p397 = scmp.eq.s32.totalorder %s27, 0
      %p398 = por %p396, %p397
      %p399 = scmp.le.s32.totalorder 1, %s21
      %p400 = scmp.lt.s32.totalorder %s21, 3
      %p401 = pnand %p399, %p400
      %p402 = pneg %p401
      // Predicated region
      $region9: #{tpu_custom_call.1} parent=5 // pred_check
        _
      $region10: #{tpu_custom_call.1} parent=5 // pred_check_branch
        %404 = sbr.rel (%p401) target = $region12
      $region11: #{tpu_custom_call.1} parent=5 // pred_region
        %s405 = ssub.s32 %s21, 1
        // Predicated region
        $region13: #{tpu_custom_call.1} parent=11 // pred_check
          %p406 = pneg %p42
        $region14: #{tpu_custom_call.1} parent=11 // pred_check_branch
          %408 = sbr.rel (%p406) target = $region16
        $region15: #{tpu_custom_call.1} parent=11 // pred_region
          _
        $region16: #{tpu_custom_call.1} parent=11 // pred_fallthru
          _
        // Predicated region
        $region17: #{tpu_custom_call.1} parent=11 // pred_check
          %p409 = pneg %p63
        $region18: #{tpu_custom_call.1} parent=11 // pred_check_branch
          %411 = sbr.rel (%p409) target = $region20
        $region19: #{tpu_custom_call.1} parent=11 // pred_region
          _
        $region20: #{tpu_custom_call.1} parent=11 // pred_fallthru
          _
        // Predicated region
        $region21: #{tpu_custom_call.1} parent=11 // pred_check
          %p412 = pneg %p84
        $region22: #{tpu_custom_call.1} parent=11 // pred_check_branch
          %414 = sbr.rel (%p412) target = $region24
        $region23: #{tpu_custom_call.1} parent=11 // pred_region
          _
        $region24: #{tpu_custom_call.1} parent=11 // pred_fallthru
          _
      $region12: #{tpu_custom_call.1} parent=5 // pred_fallthru
        _
      %p415 = scmp.lt.s32.totalorder %s21, 2
      // Predicated region
      $region25: #{tpu_custom_call.1} parent=5 // pred_check
        %p416 = pneg %p415
      $region26: #{tpu_custom_call.1} parent=5 // pred_check_branch
        %418 = sbr.rel (%p416) target = $region28
      $region27: #{tpu_custom_call.1} parent=5 // pred_region
        // Predicated region
        $region29: #{tpu_custom_call.1} parent=27 // pred_check
          %p419 = pneg %p104
        $region30: #{tpu_custom_call.1} parent=27 // pred_check_branch
          %421 = sbr.rel (%p419) target = $region32
        $region31: #{tpu_custom_call.1} parent=27 // pred_region
          %p422 = scmp.lt.s32.totalorder %s21, 1
          %s423 = scalar_select %p422, %s21, 1
          %s424 = smul.addr %s423, 16
          %s425 = smul.addr %s424, 4
          %s426 = scalar_lea.vmem %s3, %s425
        $region32: #{tpu_custom_call.1} parent=27 // pred_fallthru
          _
        // Predicated region
        $region33: #{tpu_custom_call.1} parent=27 // pred_check
          %p427 = pneg %p130
        $region34: #{tpu_custom_call.1} parent=27 // pred_check_branch
          %429 = sbr.rel (%p427) target = $region36
        $region35: #{tpu_custom_call.1} parent=27 // pred_region
          %p430 = scmp.lt.s32.totalorder %s21, 1
          %s431 = scalar_select %p430, %s21, 1
          %s432 = smul.addr %s431, 4
          %s433 = scalar_lea.vmem %s4, %s432
        $region36: #{tpu_custom_call.1} parent=27 // pred_fallthru
          _
        // Predicated region
        $region37: #{tpu_custom_call.1} parent=27 // pred_check
          %p434 = pneg %p156
        $region38: #{tpu_custom_call.1} parent=27 // pred_check_branch
          %436 = sbr.rel (%p434) target = $region40
        $region39: #{tpu_custom_call.1} parent=27 // pred_region
          %p437 = scmp.lt.s32.totalorder %s21, 1
          %s438 = scalar_select %p437, %s21, 1
          %s439 = smul.addr %s438, 16
          %s440 = smul.addr %s439, 4
          %s441 = scalar_lea.vmem %s5, %s440
        $region40: #{tpu_custom_call.1} parent=27 // pred_fallthru
          _
        // Predicated region
        $region41: #{tpu_custom_call.1} parent=27 // pred_check
          %p442 = pneg %p182
        $region42: #{tpu_custom_call.1} parent=27 // pred_check_branch
          %444 = sbr.rel (%p442) target = $region44
        $region43: #{tpu_custom_call.1} parent=27 // pred_region
          %p445 = scmp.lt.s32.totalorder %s21, 1
          %s446 = scalar_select %p445, %s21, 1
          %s447 = smul.addr %s446, 4
          %s448 = scalar_lea.vmem %s6, %s447
        $region44: #{tpu_custom_call.1} parent=27 // pred_fallthru
          _
        // Predicated region
        $region45: #{tpu_custom_call.1} parent=27 // pred_check
          %p449 = pneg %p208
        $region46: #{tpu_custom_call.1} parent=27 // pred_check_branch
          %451 = sbr.rel (%p449) target = $region48
        $region47: #{tpu_custom_call.1} parent=27 // pred_region
          %p452 = scmp.lt.s32.totalorder %s21, 1
          %s453 = scalar_select %p452, %s21, 1
          %s454 = smul.addr %s453, 16
          %s455 = smul.addr %s454, 4
          %s456 = scalar_lea.vmem %s7, %s455
        $region48: #{tpu_custom_call.1} parent=27 // pred_fallthru
          _
        // Predicated region
        $region49: #{tpu_custom_call.1} parent=27 // pred_check
          %p457 = pneg %p234
        $region50: #{tpu_custom_call.1} parent=27 // pred_check_branch
          %459 = sbr.rel (%p457) target = $region52
        $region51: #{tpu_custom_call.1} parent=27 // pred_region
          %p460 = scmp.lt.s32.totalorder %s21, 1
          %s461 = scalar_select %p460, %s21, 1
          %s462 = smul.addr %s461, 4
          %s463 = scalar_lea.vmem %s8, %s462
        $region52: #{tpu_custom_call.1} parent=27 // pred_fallthru
          _
        // Predicated region
        $region53: #{tpu_custom_call.1} parent=27 // pred_check
          %p464 = pneg %p260
        $region54: #{tpu_custom_call.1} parent=27 // pred_check_branch
          %466 = sbr.rel (%p464) target = $region56
        $region55: #{tpu_custom_call.1} parent=27 // pred_region
          %p467 = scmp.lt.s32.totalorder %s21, 1
          %s468 = scalar_select %p467, %s21, 1
          %s469 = smul.addr %s468, 4
          %s470 = smul.addr %s469, 4
          %s471 = scalar_lea.vmem %s9, %s470
        $region56: #{tpu_custom_call.1} parent=27 // pred_fallthru
          _
        // Predicated region
        $region57: #{tpu_custom_call.1} parent=27 // pred_check
          %p472 = pneg %p286
        $region58: #{tpu_custom_call.1} parent=27 // pred_check_branch
          %474 = sbr.rel (%p472) target = $region60
        $region59: #{tpu_custom_call.1} parent=27 // pred_region
          %p475 = scmp.lt.s32.totalorder %s21, 1
          %s476 = scalar_select %p475, %s21, 1
          %s477 = smul.addr %s476, 4
          %s478 = smul.addr %s477, 4
          %s479 = scalar_lea.vmem %s10, %s478
        $region60: #{tpu_custom_call.1} parent=27 // pred_fallthru
          _
        // Predicated region
        $region61: #{tpu_custom_call.1} parent=27 // pred_check
          %p480 = pneg %p312
        $region62: #{tpu_custom_call.1} parent=27 // pred_check_branch
          %482 = sbr.rel (%p480) target = $region64
        $region63: #{tpu_custom_call.1} parent=27 // pred_region
          %p483 = scmp.lt.s32.totalorder %s21, 1
          %s484 = scalar_select %p483, %s21, 1
          %s485 = scalar_lea.vmem %s11, %s484
        $region64: #{tpu_custom_call.1} parent=27 // pred_fallthru
          _
        // Predicated region
        $region65: #{tpu_custom_call.1} parent=27 // pred_check
          %p486 = pneg %p338
        $region66: #{tpu_custom_call.1} parent=27 // pred_check_branch
          %488 = sbr.rel (%p486) target = $region68
        $region67: #{tpu_custom_call.1} parent=27 // pred_region
          %p489 = scmp.lt.s32.totalorder %s21, 1
          %s490 = scalar_select %p489, %s21, 1
          %s491 = smul.addr %s490, 8
          %s492 = smul.addr %s491, 4
          %s493 = scalar_lea.vmem %s12, %s492
        $region68: #{tpu_custom_call.1} parent=27 // pred_fallthru
          _
        // Predicated region
        $region69: #{tpu_custom_call.1} parent=27 // pred_check
          %p494 = pneg %p364
        $region70: #{tpu_custom_call.1} parent=27 // pred_check_branch
          %496 = sbr.rel (%p494) target = $region72
        $region71: #{tpu_custom_call.1} parent=27 // pred_region
          %p497 = scmp.lt.s32.totalorder %s21, 1
          %s498 = scalar_select %p497, %s21, 1
          %s499 = scalar_lea.vmem %s13, %s498
        $region72: #{tpu_custom_call.1} parent=27 // pred_fallthru
          _
      $region28: #{tpu_custom_call.1} parent=5 // pred_fallthru
        _
      %p500 = scmp.le.s32.totalorder 1, %s21
      %p501 = scmp.lt.s32.totalorder %s21, 3
      %p502 = pnand %p500, %p501
      %p503 = pneg %p502
      // Predicated region
      $region73: #{tpu_custom_call.1} parent=5 // pred_check
        _
      $region74: #{tpu_custom_call.1} parent=5 // pred_check_branch
        %505 = sbr.rel (%p502) target = $region76
      $region75: #{tpu_custom_call.1} parent=5 // pred_region
        %s506 = ssub.s32 %s21, 1
        %p507 = pneg %p42
        %p508 = pneg %p39
        %p509 = pneg %p63
        %p510 = pneg %p60
        %p511 = pneg %p84
        %p512 = pneg %p81
        %p513 = scmp.lt.s32.totalorder %s26, 1
        %s514 = scalar_select %p513, %s26, 1
        %s515 = smul.addr %s514, 16
        %s516 = smul.addr %s515, 4
        %s517 = scalar_lea.vmem %s3, %s516
        %p518 = pneg %p110
        %p519 = pneg %p107
        %p520 = scmp.lt.s32.totalorder %s26, 1
        %s521 = scalar_select %p520, %s26, 1
        %s522 = smul.addr %s521, 4
        %s523 = scalar_lea.vmem %s4, %s522
        %p524 = pneg %p136
        %p525 = pneg %p133
        %p526 = scmp.lt.s32.totalorder %s26, 1
        %s527 = scalar_select %p526, %s26, 1
        %s528 = smul.addr %s527, 16
        %s529 = smul.addr %s528, 4
        %s530 = scalar_lea.vmem %s5, %s529
        %p531 = pneg %p162
        %p532 = pneg %p159
        %p533 = scmp.lt.s32.totalorder %s26, 1
        %s534 = scalar_select %p533, %s26, 1
        %s535 = smul.addr %s534, 4
        %s536 = scalar_lea.vmem %s6, %s535
        %p537 = pneg %p188
        %p538 = pneg %p185
        %p539 = scmp.lt.s32.totalorder %s26, 1
        %s540 = scalar_select %p539, %s26, 1
        %s541 = smul.addr %s540, 16
        %s542 = smul.addr %s541, 4
        %s543 = scalar_lea.vmem %s7, %s542
        %p544 = pneg %p214
        %p545 = pneg %p211
        %p546 = scmp.lt.s32.totalorder %s26, 1
        %s547 = scalar_select %p546, %s26, 1
        %s548 = smul.addr %s547, 4
        %s549 = scalar_lea.vmem %s8, %s548
        %p550 = pneg %p240
        %p551 = pneg %p237
        %p552 = scmp.lt.s32.totalorder %s26, 1
        %s553 = scalar_select %p552, %s26, 1
        %s554 = smul.addr %s553, 4
        %s555 = smul.addr %s554, 4
        %s556 = scalar_lea.vmem %s9, %s555
        %p557 = pneg %p266
        %p558 = pneg %p263
        %p559 = scmp.lt.s32.totalorder %s26, 1
        %s560 = scalar_select %p559, %s26, 1
        %s561 = smul.addr %s560, 4
        %s562 = smul.addr %s561, 4
        %s563 = scalar_lea.vmem %s10, %s562
        %p564 = pneg %p292
        %p565 = pneg %p289
        %p566 = scmp.lt.s32.totalorder %s26, 1
        %s567 = scalar_select %p566, %s26, 1
        %s568 = scalar_lea.vmem %s11, %s567
        %p569 = pneg %p318
        %p570 = pneg %p315
        %p571 = scmp.lt.s32.totalorder %s26, 1
        %s572 = scalar_select %p571, %s26, 1
        %s573 = smul.addr %s572, 8
        %s574 = smul.addr %s573, 4
        %s575 = scalar_lea.vmem %s12, %s574
        %p576 = pneg %p344
        %p577 = pneg %p341
        %p578 = scmp.lt.s32.totalorder %s26, 1
        %s579 = scalar_select %p578, %s26, 1
        %s580 = scalar_lea.vmem %s13, %s579
        %p581 = pneg %p370
        %p582 = pneg %p367
        %p583 = pneg %p391
        %p584 = pneg %p388
        %p585 = scmp.lt.s32.totalorder %s26, 1
        %s586 = scalar_select %p585, %s26, 1
        %s587 = smul.addr %s586, 16
        %s588 = smul.addr %s587, 4
        %s589 = scalar_lea.vmem %s3, %s588
        %p590 = scmp.lt.s32.totalorder %s26, 1
        %s591 = scalar_select %p590, %s26, 1
        %s592 = smul.addr %s591, 4
        %s593 = scalar_lea.vmem %s4, %s592
        %p594 = scmp.lt.s32.totalorder %s26, 1
        %s595 = scalar_select %p594, %s26, 1
        %s596 = smul.addr %s595, 16
        %s597 = smul.addr %s596, 4
        %s598 = scalar_lea.vmem %s5, %s597
        %p599 = scmp.lt.s32.totalorder %s26, 1
        %s600 = scalar_select %p599, %s26, 1
        %s601 = smul.addr %s600, 4
        %s602 = scalar_lea.vmem %s6, %s601
        %p603 = scmp.lt.s32.totalorder %s26, 1
        %s604 = scalar_select %p603, %s26, 1
        %s605 = smul.addr %s604, 16
        %s606 = smul.addr %s605, 4
        %s607 = scalar_lea.vmem %s7, %s606
        %p608 = scmp.lt.s32.totalorder %s26, 1
        %s609 = scalar_select %p608, %s26, 1
        %s610 = smul.addr %s609, 4
        %s611 = scalar_lea.vmem %s8, %s610
        %p612 = scmp.lt.s32.totalorder %s26, 1
        %s613 = scalar_select %p612, %s26, 1
        %s614 = smul.addr %s613, 4
        %s615 = smul.addr %s614, 4
        %s616 = scalar_lea.vmem %s9, %s615
        %p617 = scmp.lt.s32.totalorder %s26, 1
        %s618 = scalar_select %p617, %s26, 1
        %s619 = smul.addr %s618, 4
        %s620 = smul.addr %s619, 4
        %s621 = scalar_lea.vmem %s10, %s620
        %p622 = scmp.lt.s32.totalorder %s26, 1
        %s623 = scalar_select %p622, %s26, 1
        %s624 = scalar_lea.vmem %s11, %s623
        %p625 = scmp.lt.s32.totalorder %s26, 1
        %s626 = scalar_select %p625, %s26, 1
        %s627 = smul.addr %s626, 8
        %s628 = smul.addr %s627, 4
        %s629 = scalar_lea.vmem %s12, %s628
        %p630 = scmp.lt.s32.totalorder %s26, 1
        %s631 = scalar_select %p630, %s26, 1
        %s632 = scalar_lea.vmem %s13, %s631
        %p634 = scmp.eq.s32.totalorder %s26, 0
        // Predicated region
        $region77: #{tpu_custom_call.1} parent=75 // pred_check
          %p635 = pneg %p634
        $region78: #{tpu_custom_call.1} parent=75 // pred_check_branch
          %637 = sbr.rel (%p635) target = $region80
        $region79: #{tpu_custom_call.1} parent=75 // pred_region
          %v638 = vld [vmem:[%s0] sm:$0xff]
          %v639 = vld [vmem:[%s0 + $0x8] sm:$0xff]
          %v640 = vpack.c.bf16 %v639, %v638
          %v641 = vld [vmem:[%s1] sm:$0xf]
          %v642 = vld [vmem:[%s1 + $0x4] sm:$0xf]
          %v643 = vld [vmem:[%s2] sm:$0x1]
          %v645 = vlaneseq
          %v646 = vshrl.u32 %v645, 7
          %v647 = vsub.s32 0, %v646
          %v648 = vrot.slane %v643, %v647
          %v652 = vunpack.c.l.b16 %v641
          %v653 = vunpack.c.l.b16 %v642
          %v654 = vpack.c.b16 %v653, %v652
          %vm656 = vcmask 130048
          %v658 = vsel %vm656, %v640, 0
          %660 = vmatprep.subr.bf16.mxu0 0
          %661 = vmatpush1.bf16.msra.mxu0 0
          %662 = vmatprep.subr.bf16.mxu0 0
          %663 = vmatpush1.bf16.msra.mxu0 0
          %664 = vmatprep.subr.bf16.mxu0 0
          %665 = vmatpush1.bf16.msra.mxu0 0
          %666 = vmatprep.subr.bf16.mxu0 0
          %667 = vmatpush1.bf16.msra.mxu0 0
          %668 = vmatprep.subr.bf16.mxu0 0
          %669 = vmatpush1.bf16.msra.mxu0 0
          %670 = vmatprep.subr.bf16.mxu0 0
          %671 = vmatpush1.bf16.msra.mxu0 0
          %672 = vmatprep.subr.bf16.mxu0 0
          %673 = vmatpush1.bf16.msra.mxu0 0
          %674 = vmatprep.subr.bf16.mxu0 0
          %675 = vmatpush1.bf16.msra.mxu0 %v654
          %676 = vmatprep.subr.bf16.mxu0 0
          %677 = vmatpush2.bf16.msra.mxu0 0
          %678 = vmatprep.subr.bf16.mxu0 0
          %679 = vmatpush2.bf16.msra.mxu0 0
          %680 = vmatprep.subr.bf16.mxu0 0
          %681 = vmatpush2.bf16.msra.mxu0 0
          %682 = vmatprep.subr.bf16.mxu0 0
          %683 = vmatpush2.bf16.msra.mxu0 0
          %684 = vmatprep.subr.bf16.mxu0 0
          %685 = vmatpush2.bf16.msra.mxu0 0
          %686 = vmatprep.subr.bf16.mxu0 0
          %687 = vmatpush2.bf16.msra.mxu0 0
          %688 = vmatprep.subr.bf16.mxu0 0
          %689 = vmatpush2.bf16.msra.mxu0 0
          %690 = vmatprep.subr.bf16.mxu0 0
          %691 = vmatpush2.bf16.msra.mxu0 0
          %692 = vmatprep.mubr.bf16.mxu0 0
          %693 = vmatmul.mubr.bf16.gmra.mxu0 %v658
          %v694 = vpop.f32.mrf.mxu0
          %v695 = vadd.f32 %v648, %v694
          %v696 = vpop.f32.mrf.mxu0
          %v697 = vpop.f32.mrf.mxu0
          %v698 = vadd.f32 %v648, %v697
          %v699 = vpop.f32.mrf.mxu0
          %700 = vdwg.mxu0
          %vm701 = vcmask 261120
          %702 = vst.msk [vmem:[#allocation2] sm:$0xff] %vm701, %v695
          %703 = vst.msk [vmem:[#allocation2 + $0x8] sm:$0xff] %vm701, %v698
          %704 = vst.msk [vmem:[#allocation3] sm:$0xff] %vm701, %v695
          %705 = vst.msk [vmem:[#allocation3 + $0x8] sm:$0xff] %vm701, %v698
        $region80: #{tpu_custom_call.1} parent=75 // pred_fallthru
          _
        %v706 = vld [vmem:[#allocation2] sm:$0xff]
        %v707 = vld [vmem:[#allocation2 + $0x8] sm:$0xff]
        %v708 = vld [vmem:[#allocation3] sm:$0xff]
        %v709 = vld [vmem:[#allocation3 + $0x8] sm:$0xff]
        %vm710 = vcmask 261120
        %v711 = vsel %vm710, %v708, 0.0
        %v712 = vsel %vm710, %v709, 0.0
        %v713 = vadd.f32 %v711, %v712
        %v714 = vrot.slane %v713, 4
        %v715 = vadd.f32 %v713, %v714
        %v716 = vrot.slane %v715, 2
        %v717 = vadd.f32 %v715, %v716
        %v718 = vrot.slane %v717, 1
        %v719 = vadd.f32 %v717, %v718
        %v720 = vrcp.pop 16.0
        %v721 = vmul.f32 %v719, %v720
        %v722 = vsub.f32 %v708, %v721
        %v723 = vsub.f32 %v709, %v721
        %v724 = vmul.f32 %v722, %v722
        %v725 = vmul.f32 %v723, %v723
        %v726 = vsel %vm710, %v724, 0.0
        %v727 = vsel %vm710, %v725, 0.0
        %v728 = vadd.f32 %v726, %v727
        %v729 = vrot.slane %v728, 4
        %v730 = vadd.f32 %v728, %v729
        %v731 = vrot.slane %v730, 2
        %v732 = vadd.f32 %v730, %v731
        %v733 = vrot.slane %v732, 1
        %v734 = vadd.f32 %v732, %v733
        %v735 = vmul.f32 %v734, %v720
        %v736 = vadd.f32 %v735, 1e-05
        %v737 = vrsqrt.pop %v736
        %v738 = vmul.f32 %v722, %v737
        %v739 = vmul.f32 %v723, %v737
        %v740 = vpack.c.bf16 %v739, %v738
        %v741 = vld [vmem:[%s589] sm:$0xf]
        %v742 = vld [vmem:[%s589 + $0x4] sm:$0xf]
        %v743 = vld [vmem:[%s589 + $0x8] sm:$0xf]
        %v744 = vld [vmem:[%s589 + $0xc] sm:$0xf]
        %v745 = vld [vmem:[%s593] sm:$0x1]
        %v747 = vlaneseq
        %v748 = vshrl.u32 %v747, 7
        %v749 = vsub.s32 0, %v748
        %v750 = vrot.slane %v745, %v749
        %v756 = vunpack.c.l.b16 %v741
        %v757 = vunpack.c.l.b16 %v742
        %v758 = vunpack.c.l.b16 %v743
        %v759 = vunpack.c.l.b16 %v744
        %v760 = vpack.c.b16 %v757, %v756
        %v761 = vpack.c.b16 %v759, %v758
        %v765 = vsel %vm710, %v740, 0
        %767 = vmatprep.subr.bf16.mxu0 0
        %768 = vmatpush1.bf16.msra.mxu0 0
        %769 = vmatprep.subr.bf16.mxu0 0
        %770 = vmatpush1.bf16.msra.mxu0 0
        %771 = vmatprep.subr.bf16.mxu0 0
        %772 = vmatpush1.bf16.msra.mxu0 0
        %773 = vmatprep.subr.bf16.mxu0 0
        %774 = vmatpush1.bf16.msra.mxu0 0
        %775 = vmatprep.subr.bf16.mxu0 0
        %776 = vmatpush1.bf16.msra.mxu0 0
        %777 = vmatprep.subr.bf16.mxu0 0
        %778 = vmatpush1.bf16.msra.mxu0 0
        %779 = vmatprep.subr.bf16.mxu0 0
        %780 = vmatpush1.bf16.msra.mxu0 %v761
        %781 = vmatprep.subr.bf16.mxu0 0
        %782 = vmatpush1.bf16.msra.mxu0 %v760
        %783 = vmatprep.subr.bf16.mxu0 0
        %784 = vmatpush2.bf16.msra.mxu0 0
        %785 = vmatprep.subr.bf16.mxu0 0
        %786 = vmatpush2.bf16.msra.mxu0 0
        %787 = vmatprep.subr.bf16.mxu0 0
        %788 = vmatpush2.bf16.msra.mxu0 0
        %789 = vmatprep.subr.bf16.mxu0 0
        %790 = vmatpush2.bf16.msra.mxu0 0
        %791 = vmatprep.subr.bf16.mxu0 0
        %792 = vmatpush2.bf16.msra.mxu0 0
        %793 = vmatprep.subr.bf16.mxu0 0
        %794 = vmatpush2.bf16.msra.mxu0 0
        %795 = vmatprep.subr.bf16.mxu0 0
        %796 = vmatpush2.bf16.msra.mxu0 0
        %797 = vmatprep.subr.bf16.mxu0 0
        %798 = vmatpush2.bf16.msra.mxu0 0
        %799 = vmatprep.mubr.bf16.mxu0 0
        %800 = vmatmul.mubr.bf16.gmra.mxu0 %v765
        %v801 = vpop.f32.mrf.mxu0
        %v802 = vadd.f32 %v750, %v801
        %v803 = vpop.f32.mrf.mxu0
        %v804 = vpop.f32.mrf.mxu0
        %v805 = vadd.f32 %v750, %v804
        %v806 = vpop.f32.mrf.mxu0
        %807 = vdwg.mxu0
        %v808 = vld [vmem:[%s598] sm:$0xf]
        %v809 = vld [vmem:[%s598 + $0x4] sm:$0xf]
        %v810 = vld [vmem:[%s598 + $0x8] sm:$0xf]
        %v811 = vld [vmem:[%s598 + $0xc] sm:$0xf]
        %v812 = vld [vmem:[%s602] sm:$0x1]
        %v814 = vlaneseq
        %v815 = vshrl.u32 %v814, 7
        %v816 = vsub.s32 0, %v815
        %v817 = vrot.slane %v812, %v816
        %v823 = vunpack.c.l.b16 %v808
        %v824 = vunpack.c.l.b16 %v809
        %v825 = vunpack.c.l.b16 %v810
        %v826 = vunpack.c.l.b16 %v811
        %v827 = vpack.c.b16 %v824, %v823
        %v828 = vpack.c.b16 %v826, %v825
        %831 = vmatprep.subr.bf16.mxu0 0
        %832 = vmatpush1.bf16.msra.mxu0 0
        %833 = vmatprep.subr.bf16.mxu0 0
        %834 = vmatpush1.bf16.msra.mxu0 0
        %835 = vmatprep.subr.bf16.mxu0 0
        %836 = vmatpush1.bf16.msra.mxu0 0
        %837 = vmatprep.subr.bf16.mxu0 0
        %838 = vmatpush1.bf16.msra.mxu0 0
        %839 = vmatprep.subr.bf16.mxu0 0
        %840 = vmatpush1.bf16.msra.mxu0 0
        %841 = vmatprep.subr.bf16.mxu0 0
        %842 = vmatpush1.bf16.msra.mxu0 0
        %843 = vmatprep.subr.bf16.mxu0 0
        %844 = vmatpush1.bf16.msra.mxu0 %v828
        %845 = vmatprep.subr.bf16.mxu0 0
        %846 = vmatpush1.bf16.msra.mxu0 %v827
        %847 = vmatprep.subr.bf16.mxu0 0
        %848 = vmatpush2.bf16.msra.mxu0 0
        %849 = vmatprep.subr.bf16.mxu0 0
        %850 = vmatpush2.bf16.msra.mxu0 0
        %851 = vmatprep.subr.bf16.mxu0 0
        %852 = vmatpush2.bf16.msra.mxu0 0
        %853 = vmatprep.subr.bf16.mxu0 0
        %854 = vmatpush2.bf16.msra.mxu0 0
        %855 = vmatprep.subr.bf16.mxu0 0
        %856 = vmatpush2.bf16.msra.mxu0 0
        %857 = vmatprep.subr.bf16.mxu0 0
        %858 = vmatpush2.bf16.msra.mxu0 0
        %859 = vmatprep.subr.bf16.mxu0 0
        %860 = vmatpush2.bf16.msra.mxu0 0
        %861 = vmatprep.subr.bf16.mxu0 0
        %862 = vmatpush2.bf16.msra.mxu0 0
        %863 = vmatprep.mubr.bf16.mxu0 0
        %864 = vmatmul.mubr.bf16.gmra.mxu0 %v765
        %v865 = vpop.f32.mrf.mxu0
        %v866 = vadd.f32 %v817, %v865
        %v867 = vpop.f32.mrf.mxu0
        %v868 = vpop.f32.mrf.mxu0
        %v869 = vadd.f32 %v817, %v868
        %v870 = vpop.f32.mrf.mxu0
        %871 = vdwg.mxu0
        %v872 = vld [vmem:[%s607] sm:$0xf]
        %v873 = vld [vmem:[%s607 + $0x4] sm:$0xf]
        %v874 = vld [vmem:[%s607 + $0x8] sm:$0xf]
        %v875 = vld [vmem:[%s607 + $0xc] sm:$0xf]
        %v876 = vld [vmem:[%s611] sm:$0x1]
        %v878 = vlaneseq
        %v879 = vshrl.u32 %v878, 7
        %v880 = vsub.s32 0, %v879
        %v881 = vrot.slane %v876, %v880
        %v887 = vunpack.c.l.b16 %v872
        %v888 = vunpack.c.l.b16 %v873
        %v889 = vunpack.c.l.b16 %v874
        %v890 = vunpack.c.l.b16 %v875
        %v891 = vpack.c.b16 %v888, %v887
        %v892 = vpack.c.b16 %v890, %v889
        %895 = vmatprep.subr.bf16.mxu0 0
        %896 = vmatpush1.bf16.msra.mxu0 0
        %897 = vmatprep.subr.bf16.mxu0 0
        %898 = vmatpush1.bf16.msra.mxu0 0
        %899 = vmatprep.subr.bf16.mxu0 0
        %900 = vmatpush1.bf16.msra.mxu0 0
        %901 = vmatprep.subr.bf16.mxu0 0
        %902 = vmatpush1.bf16.msra.mxu0 0
        %903 = vmatprep.subr.bf16.mxu0 0
        %904 = vmatpush1.bf16.msra.mxu0 0
        %905 = vmatprep.subr.bf16.mxu0 0
        %906 = vmatpush1.bf16.msra.mxu0 0
        %907 = vmatprep.subr.bf16.mxu0 0
        %908 = vmatpush1.bf16.msra.mxu0 %v892
        %909 = vmatprep.subr.bf16.mxu0 0
        %910 = vmatpush1.bf16.msra.mxu0 %v891
        %911 = vmatprep.subr.bf16.mxu0 0
        %912 = vmatpush2.bf16.msra.mxu0 0
        %913 = vmatprep.subr.bf16.mxu0 0
        %914 = vmatpush2.bf16.msra.mxu0 0
        %915 = vmatprep.subr.bf16.mxu0 0
        %916 = vmatpush2.bf16.msra.mxu0 0
        %917 = vmatprep.subr.bf16.mxu0 0
        %918 = vmatpush2.bf16.msra.mxu0 0
        %919 = vmatprep.subr.bf16.mxu0 0
        %920 = vmatpush2.bf16.msra.mxu0 0
        %921 = vmatprep.subr.bf16.mxu0 0
        %922 = vmatpush2.bf16.msra.mxu0 0
        %923 = vmatprep.subr.bf16.mxu0 0
        %924 = vmatpush2.bf16.msra.mxu0 0
        %925 = vmatprep.subr.bf16.mxu0 0
        %926 = vmatpush2.bf16.msra.mxu0 0
        %927 = vmatprep.mubr.bf16.mxu0 0
        %928 = vmatmul.mubr.bf16.gmra.mxu0 %v765
        %v929 = vpop.f32.mrf.mxu0
        %v930 = vadd.f32 %v881, %v929
        %v931 = vpop.f32.mrf.mxu0
        %v932 = vpop.f32.mrf.mxu0
        %v933 = vadd.f32 %v881, %v932
        %v934 = vpop.f32.mrf.mxu0
        %935 = vdwg.mxu0
        %v936 = vpack.c.bf16 %v802, %v802
        %v937 = vpack.c.bf16 %v805, %v805
        %v938 = vpack.c.bf16 %v866, %v866
        %v939 = vpack.c.bf16 %v869, %v869
        %vm940 = vcmask 64512
        %v942 = vsel %vm940, %v936, 0
        %v945 = vsel %vm940, %v938, 0
        %947 = vmatprep.subr.bf16.mxu0 0
        %948 = vmatpush1.bf16.xpose.msra.mxu0 0
        %949 = vmatprep.subr.bf16.mxu0 0
        %950 = vmatpush1.bf16.xpose.msra.mxu0 0
        %951 = vmatprep.subr.bf16.mxu0 0
        %952 = vmatpush1.bf16.xpose.msra.mxu0 0
        %953 = vmatprep.subr.bf16.mxu0 0
        %954 = vmatpush1.bf16.xpose.msra.mxu0 0
        %955 = vmatprep.subr.bf16.mxu0 0
        %956 = vmatpush1.bf16.xpose.msra.mxu0 0
        %957 = vmatprep.subr.bf16.mxu0 0
        %958 = vmatpush1.bf16.xpose.msra.mxu0 0
        %959 = vmatprep.subr.bf16.mxu0 0
        %960 = vmatpush1.bf16.xpose.msra.mxu0 0
        %961 = vmatprep.subr.bf16.mxu0 0
        %962 = vmatpush1.bf16.xpose.msra.mxu0 %v945
        %963 = vmatprep.subr.bf16.mxu0 0
        %964 = vmatpush2.bf16.xpose.msra.mxu0 0
        %965 = vmatprep.subr.bf16.mxu0 0
        %966 = vmatpush2.bf16.xpose.msra.mxu0 0
        %967 = vmatprep.subr.bf16.mxu0 0
        %968 = vmatpush2.bf16.xpose.msra.mxu0 0
        %969 = vmatprep.subr.bf16.mxu0 0
        %970 = vmatpush2.bf16.xpose.msra.mxu0 0
        %971 = vmatprep.subr.bf16.mxu0 0
        %972 = vmatpush2.bf16.xpose.msra.mxu0 0
        %973 = vmatprep.subr.bf16.mxu0 0
        %974 = vmatpush2.bf16.xpose.msra.mxu0 0
        %975 = vmatprep.subr.bf16.mxu0 0
        %976 = vmatpush2.bf16.xpose.msra.mxu0 0
        %977 = vmatprep.subr.bf16.mxu0 0
        %978 = vmatpush2.bf16.xpose.msra.mxu0 0
        %979 = vmatprep.mubr.bf16.mxu0 0
        %980 = vmatmul.mubr.bf16.gmra.mxu0 %v942
        %v981 = vpop.f32.mrf.mxu0
        %v982 = vadd.f32 0.0, %v981
        %v983 = vpop.f32.mrf.mxu0
        %v984 = vpop.f32.mrf.mxu0
        %v985 = vpop.f32.mrf.mxu0
        %986 = vdwg.mxu0
        %v988 = vsel %vm940, %v937, 0
        %v991 = vsel %vm940, %v939, 0
        %993 = vmatprep.subr.bf16.mxu0 0
        %994 = vmatpush1.bf16.xpose.msra.mxu0 0
        %995 = vmatprep.subr.bf16.mxu0 0
        %996 = vmatpush1.bf16.xpose.msra.mxu0 0
        %997 = vmatprep.subr.bf16.mxu0 0
        %998 = vmatpush1.bf16.xpose.msra.mxu0 0
        %999 = vmatprep.subr.bf16.mxu0 0
        %1000 = vmatpush1.bf16.xpose.msra.mxu0 0
        %1001 = vmatprep.subr.bf16.mxu0 0
        %1002 = vmatpush1.bf16.xpose.msra.mxu0 0
        %1003 = vmatprep.subr.bf16.mxu0 0
        %1004 = vmatpush1.bf16.xpose.msra.mxu0 0
        %1005 = vmatprep.subr.bf16.mxu0 0
        %1006 = vmatpush1.bf16.xpose.msra.mxu0 0
        %1007 = vmatprep.subr.bf16.mxu0 0
        %1008 = vmatpush1.bf16.xpose.msra.mxu0 %v991
        %1009 = vmatprep.subr.bf16.mxu0 0
        %1010 = vmatpush2.bf16.xpose.msra.mxu0 0
        %1011 = vmatprep.subr.bf16.mxu0 0
        %1012 = vmatpush2.bf16.xpose.msra.mxu0 0
        %1013 = vmatprep.subr.bf16.mxu0 0
        %1014 = vmatpush2.bf16.xpose.msra.mxu0 0
        %1015 = vmatprep.subr.bf16.mxu0 0
        %1016 = vmatpush2.bf16.xpose.msra.mxu0 0
        %1017 = vmatprep.subr.bf16.mxu0 0
        %1018 = vmatpush2.bf16.xpose.msra.mxu0 0
        %1019 = vmatprep.subr.bf16.mxu0 0
        %1020 = vmatpush2.bf16.xpose.msra.mxu0 0
        %1021 = vmatprep.subr.bf16.mxu0 0
        %1022 = vmatpush2.bf16.xpose.msra.mxu0 0
        %1023 = vmatprep.subr.bf16.mxu0 0
        %1024 = vmatpush2.bf16.xpose.msra.mxu0 0
        %1025 = vmatprep.mubr.bf16.mxu0 0
        %1026 = vmatmul.mubr.bf16.gmra.mxu0 %v988
        %v1027 = vpop.f32.mrf.mxu0
        %v1028 = vadd.f32 0.0, %v1027
        %v1029 = vpop.f32.mrf.mxu0
        %v1030 = vpop.f32.mrf.mxu0
        %v1031 = vpop.f32.mrf.mxu0
        %1032 = vdwg.mxu0
        %v1033 = vmul.f32 %v982, 0.35355338
        %v1034 = vmul.f32 %v1028, 0.35355338
        %v1035 = vsel %vm940, %v1033, -inf
        %1036 = vmax.xlane.f32.xlu0 %v1035
        %v1037 = vpop.xlane.xlu0 %1036
        %v1038 = vsel %vm940, %v1034, -inf
        %1039 = vmax.xlane.f32.xlu0 %v1038
        %v1040 = vpop.xlane.xlu0 %1039
        %v1041 = vsub.f32 %v1033, %v1037
        %v1042 = vsub.f32 %v1034, %v1040
        %v1043 = vmul.f32 %v1041, 1.442695
        %v1044 = vpow.pop %v1043
        %v1045 = vmul.f32 %v1042, 1.442695
        %v1046 = vpow.pop %v1045
        %v1047 = vsel %vm940, %v1044, 0.0
        %1048 = vadd.xlane.f32.xlu0 %v1047
        %v1049 = vpop.xlane.xlu0 %1048
        %v1050 = vsel %vm940, %v1046, 0.0
        %1051 = vadd.xlane.f32.xlu0 %v1050
        %v1052 = vpop.xlane.xlu0 %1051
        %v1053 = vrcp.pop %v1049
        %v1054 = vrcp.pop %v1052
        %v1055 = vmul.f32 %v1044, %v1053
        %v1056 = vmul.f32 %v1046, %v1054
        %v1057 = vpack.c.bf16 %v1055, %v1055
        %v1058 = vpack.c.bf16 %v1056, %v1056
        %v1059 = vpack.c.bf16 %v930, %v930
        %v1060 = vpack.c.bf16 %v933, %v933
        %v1062 = vsel %vm940, %v1057, 0
        %vm1064 = vcmask 1043456
        %v1066 = vsel %vm1064, %v1059, 0
        %1068 = vmatprep.subr.bf16.mxu0 0
        %1069 = vmatpush1.bf16.msra.mxu0 0
        %1070 = vmatprep.subr.bf16.mxu0 0
        %1071 = vmatpush1.bf16.msra.mxu0 0
        %1072 = vmatprep.subr.bf16.mxu0 0
        %1073 = vmatpush1.bf16.msra.mxu0 0
        %1074 = vmatprep.subr.bf16.mxu0 0
        %1075 = vmatpush1.bf16.msra.mxu0 0
        %1076 = vmatprep.subr.bf16.mxu0 0
        %1077 = vmatpush1.bf16.msra.mxu0 0
        %1078 = vmatprep.subr.bf16.mxu0 0
        %1079 = vmatpush1.bf16.msra.mxu0 0
        %1080 = vmatprep.subr.bf16.mxu0 0
        %1081 = vmatpush1.bf16.msra.mxu0 0
        %1082 = vmatprep.subr.bf16.mxu0 0
        %1083 = vmatpush1.bf16.msra.mxu0 %v1066
        %1084 = vmatprep.subr.bf16.mxu0 0
        %1085 = vmatpush2.bf16.msra.mxu0 0
        %1086 = vmatprep.subr.bf16.mxu0 0
        %1087 = vmatpush2.bf16.msra.mxu0 0
        %1088 = vmatprep.subr.bf16.mxu0 0
        %1089 = vmatpush2.bf16.msra.mxu0 0
        %1090 = vmatprep.subr.bf16.mxu0 0
        %1091 = vmatpush2.bf16.msra.mxu0 0
        %1092 = vmatprep.subr.bf16.mxu0 0
        %1093 = vmatpush2.bf16.msra.mxu0 0
        %1094 = vmatprep.subr.bf16.mxu0 0
        %1095 = vmatpush2.bf16.msra.mxu0 0
        %1096 = vmatprep.subr.bf16.mxu0 0
        %1097 = vmatpush2.bf16.msra.mxu0 0
        %1098 = vmatprep.subr.bf16.mxu0 0
        %1099 = vmatpush2.bf16.msra.mxu0 0
        %1100 = vmatprep.mubr.bf16.mxu0 0
        %1101 = vmatmul.mubr.bf16.gmra.mxu0 %v1062
        %v1102 = vpop.f32.mrf.mxu0
        %v1103 = vadd.f32 0.0, %v1102
        %v1104 = vpop.f32.mrf.mxu0
        %v1105 = vpop.f32.mrf.mxu0
        %v1106 = vpop.f32.mrf.mxu0
        %1107 = vdwg.mxu0
        %v1109 = vsel %vm940, %v1058, 0
        %v1112 = vsel %vm1064, %v1060, 0
        %1114 = vmatprep.subr.bf16.mxu0 0
        %1115 = vmatpush1.bf16.msra.mxu0 0
        %1116 = vmatprep.subr.bf16.mxu0 0
        %1117 = vmatpush1.bf16.msra.mxu0 0
        %1118 = vmatprep.subr.bf16.mxu0 0
        %1119 = vmatpush1.bf16.msra.mxu0 0
        %1120 = vmatprep.subr.bf16.mxu0 0
        %1121 = vmatpush1.bf16.msra.mxu0 0
        %1122 = vmatprep.subr.bf16.mxu0 0
        %1123 = vmatpush1.bf16.msra.mxu0 0
        %1124 = vmatprep.subr.bf16.mxu0 0
        %1125 = vmatpush1.bf16.msra.mxu0 0
        %1126 = vmatprep.subr.bf16.mxu0 0
        %1127 = vmatpush1.bf16.msra.mxu0 0
        %1128 = vmatprep.subr.bf16.mxu0 0
        %1129 = vmatpush1.bf16.msra.mxu0 %v1112
        %1130 = vmatprep.subr.bf16.mxu0 0
        %1131 = vmatpush2.bf16.msra.mxu0 0
        %1132 = vmatprep.subr.bf16.mxu0 0
        %1133 = vmatpush2.bf16.msra.mxu0 0
        %1134 = vmatprep.subr.bf16.mxu0 0
        %1135 = vmatpush2.bf16.msra.mxu0 0
        %1136 = vmatprep.subr.bf16.mxu0 0
        %1137 = vmatpush2.bf16.msra.mxu0 0
        %1138 = vmatprep.subr.bf16.mxu0 0
        %1139 = vmatpush2.bf16.msra.mxu0 0
        %1140 = vmatprep.subr.bf16.mxu0 0
        %1141 = vmatpush2.bf16.msra.mxu0 0
        %1142 = vmatprep.subr.bf16.mxu0 0
        %1143 = vmatpush2.bf16.msra.mxu0 0
        %1144 = vmatprep.subr.bf16.mxu0 0
        %1145 = vmatpush2.bf16.msra.mxu0 0
        %1146 = vmatprep.mubr.bf16.mxu0 0
        %1147 = vmatmul.mubr.bf16.gmra.mxu0 %v1109
        %v1148 = vpop.f32.mrf.mxu0
        %v1149 = vadd.f32 0.0, %v1148
        %v1150 = vpop.f32.mrf.mxu0
        %v1151 = vpop.f32.mrf.mxu0
        %v1152 = vpop.f32.mrf.mxu0
        %1153 = vdwg.mxu0
        %v1154 = vpack.c.bf16 %v1149, %v1103
        %v1155 = vld [vmem:[%s616] sm:$0xf]
        %s1156 = scalar_lea.vmem %s589, 16
        %v1157 = vld [vmem:[%s1156] sm:$0xf]
        %v1158 = vld [vmem:[%s1156 + $0x4] sm:$0xf]
        %v1159 = vld [vmem:[%s1156 + $0x8] sm:$0xf]
        %v1160 = vld [vmem:[%s1156 + $0xc] sm:$0xf]
        %s1161 = scalar_lea.vmem %s593, 1
        %v1162 = vld [vmem:[%s1161] sm:$0x1]
        %v1164 = vlaneseq
        %v1165 = vshrl.u32 %v1164, 7
        %v1166 = vsub.s32 0, %v1165
        %v1167 = vrot.slane %v1162, %v1166
        %v1173 = vunpack.c.l.b16 %v1157
        %v1174 = vunpack.c.l.b16 %v1158
        %v1175 = vunpack.c.l.b16 %v1159
        %v1176 = vunpack.c.l.b16 %v1160
        %v1177 = vpack.c.b16 %v1174, %v1173
        %v1178 = vpack.c.b16 %v1176, %v1175
        %1181 = vmatprep.subr.bf16.mxu0 0
        %1182 = vmatpush1.bf16.msra.mxu0 0
        %1183 = vmatprep.subr.bf16.mxu0 0
        %1184 = vmatpush1.bf16.msra.mxu0 0
        %1185 = vmatprep.subr.bf16.mxu0 0
        %1186 = vmatpush1.bf16.msra.mxu0 0
        %1187 = vmatprep.subr.bf16.mxu0 0
        %1188 = vmatpush1.bf16.msra.mxu0 0
        %1189 = vmatprep.subr.bf16.mxu0 0
        %1190 = vmatpush1.bf16.msra.mxu0 0
        %1191 = vmatprep.subr.bf16.mxu0 0
        %1192 = vmatpush1.bf16.msra.mxu0 0
        %1193 = vmatprep.subr.bf16.mxu0 0
        %1194 = vmatpush1.bf16.msra.mxu0 %v1178
        %1195 = vmatprep.subr.bf16.mxu0 0
        %1196 = vmatpush1.bf16.msra.mxu0 %v1177
        %1197 = vmatprep.subr.bf16.mxu0 0
        %1198 = vmatpush2.bf16.msra.mxu0 0
        %1199 = vmatprep.subr.bf16.mxu0 0
        %1200 = vmatpush2.bf16.msra.mxu0 0
        %1201 = vmatprep.subr.bf16.mxu0 0
        %1202 = vmatpush2.bf16.msra.mxu0 0
        %1203 = vmatprep.subr.bf16.mxu0 0
        %1204 = vmatpush2.bf16.msra.mxu0 0
        %1205 = vmatprep.subr.bf16.mxu0 0
        %1206 = vmatpush2.bf16.msra.mxu0 0
        %1207 = vmatprep.subr.bf16.mxu0 0
        %1208 = vmatpush2.bf16.msra.mxu0 0
        %1209 = vmatprep.subr.bf16.mxu0 0
        %1210 = vmatpush2.bf16.msra.mxu0 0
        %1211 = vmatprep.subr.bf16.mxu0 0
        %1212 = vmatpush2.bf16.msra.mxu0 0
        %1213 = vmatprep.mubr.bf16.mxu0 0
        %1214 = vmatmul.mubr.bf16.gmra.mxu0 %v765
        %v1215 = vpop.f32.mrf.mxu0
        %v1216 = vadd.f32 %v1167, %v1215
        %v1217 = vpop.f32.mrf.mxu0
        %v1218 = vpop.f32.mrf.mxu0
        %v1219 = vadd.f32 %v1167, %v1218
        %v1220 = vpop.f32.mrf.mxu0
        %1221 = vdwg.mxu0
        %s1222 = scalar_lea.vmem %s598, 16
        %v1223 = vld [vmem:[%s1222] sm:$0xf]
        %v1224 = vld [vmem:[%s1222 + $0x4] sm:$0xf]
        %v1225 = vld [vmem:[%s1222 + $0x8] sm:$0xf]
        %v1226 = vld [vmem:[%s1222 + $0xc] sm:$0xf]
        %s1227 = scalar_lea.vmem %s602, 1
        %v1228 = vld [vmem:[%s1227] sm:$0x1]
        %v1230 = vlaneseq
        %v1231 = vshrl.u32 %v1230, 7
        %v1232 = vsub.s32 0, %v1231
        %v1233 = vrot.slane %v1228, %v1232
        %v1239 = vunpack.c.l.b16 %v1223
        %v1240 = vunpack.c.l.b16 %v1224
        %v1241 = vunpack.c.l.b16 %v1225
        %v1242 = vunpack.c.l.b16 %v1226
        %v1243 = vpack.c.b16 %v1240, %v1239
        %v1244 = vpack.c.b16 %v1242, %v1241
        %1247 = vmatprep.subr.bf16.mxu0 0
        %1248 = vmatpush1.bf16.msra.mxu0 0
        %1249 = vmatprep.subr.bf16.mxu0 0
        %1250 = vmatpush1.bf16.msra.mxu0 0
        %1251 = vmatprep.subr.bf16.mxu0 0
        %1252 = vmatpush1.bf16.msra.mxu0 0
        %1253 = vmatprep.subr.bf16.mxu0 0
        %1254 = vmatpush1.bf16.msra.mxu0 0
        %1255 = vmatprep.subr.bf16.mxu0 0
        %1256 = vmatpush1.bf16.msra.mxu0 0
        %1257 = vmatprep.subr.bf16.mxu0 0
        %1258 = vmatpush1.bf16.msra.mxu0 0
        %1259 = vmatprep.subr.bf16.mxu0 0
        %1260 = vmatpush1.bf16.msra.mxu0 %v1244
        %1261 = vmatprep.subr.bf16.mxu0 0
        %1262 = vmatpush1.bf16.msra.mxu0 %v1243
        %1263 = vmatprep.subr.bf16.mxu0 0
        %1264 = vmatpush2.bf16.msra.mxu0 0
        %1265 = vmatprep.subr.bf16.mxu0 0
        %1266 = vmatpush2.bf16.msra.mxu0 0
        %1267 = vmatprep.subr.bf16.mxu0 0
        %1268 = vmatpush2.bf16.msra.mxu0 0
        %1269 = vmatprep.subr.bf16.mxu0 0
        %1270 = vmatpush2.bf16.msra.mxu0 0
        %1271 = vmatprep.subr.bf16.mxu0 0
        %1272 = vmatpush2.bf16.msra.mxu0 0
        %1273 = vmatprep.subr.bf16.mxu0 0
        %1274 = vmatpush2.bf16.msra.mxu0 0
        %1275 = vmatprep.subr.bf16.mxu0 0
        %1276 = vmatpush2.bf16.msra.mxu0 0
        %1277 = vmatprep.subr.bf16.mxu0 0
        %1278 = vmatpush2.bf16.msra.mxu0 0
        %1279 = vmatprep.mubr.bf16.mxu0 0
        %1280 = vmatmul.mubr.bf16.gmra.mxu0 %v765
        %v1281 = vpop.f32.mrf.mxu0
        %v1282 = vadd.f32 %v1233, %v1281
        %v1283 = vpop.f32.mrf.mxu0
        %v1284 = vpop.f32.mrf.mxu0
        %v1285 = vadd.f32 %v1233, %v1284
        %v1286 = vpop.f32.mrf.mxu0
        %1287 = vdwg.mxu0
        %s1288 = scalar_lea.vmem %s607, 16
        %v1289 = vld [vmem:[%s1288] sm:$0xf]
        %v1290 = vld [vmem:[%s1288 + $0x4] sm:$0xf]
        %v1291 = vld [vmem:[%s1288 + $0x8] sm:$0xf]
        %v1292 = vld [vmem:[%s1288 + $0xc] sm:$0xf]
        %s1293 = scalar_lea.vmem %s611, 1
        %v1294 = vld [vmem:[%s1293] sm:$0x1]
        %v1296 = vlaneseq
        %v1297 = vshrl.u32 %v1296, 7
        %v1298 = vsub.s32 0, %v1297
        %v1299 = vrot.slane %v1294, %v1298
        %v1305 = vunpack.c.l.b16 %v1289
        %v1306 = vunpack.c.l.b16 %v1290
        %v1307 = vunpack.c.l.b16 %v1291
        %v1308 = vunpack.c.l.b16 %v1292
        %v1309 = vpack.c.b16 %v1306, %v1305
        %v1310 = vpack.c.b16 %v1308, %v1307
        %1313 = vmatprep.subr.bf16.mxu0 0
        %1314 = vmatpush1.bf16.msra.mxu0 0
        %1315 = vmatprep.subr.bf16.mxu0 0
        %1316 = vmatpush1.bf16.msra.mxu0 0
        %1317 = vmatprep.subr.bf16.mxu0 0
        %1318 = vmatpush1.bf16.msra.mxu0 0
        %1319 = vmatprep.subr.bf16.mxu0 0
        %1320 = vmatpush1.bf16.msra.mxu0 0
        %1321 = vmatprep.subr.bf16.mxu0 0
        %1322 = vmatpush1.bf16.msra.mxu0 0
        %1323 = vmatprep.subr.bf16.mxu0 0
        %1324 = vmatpush1.bf16.msra.mxu0 0
        %1325 = vmatprep.subr.bf16.mxu0 0
        %1326 = vmatpush1.bf16.msra.mxu0 %v1310
        %1327 = vmatprep.subr.bf16.mxu0 0
        %1328 = vmatpush1.bf16.msra.mxu0 %v1309
        %1329 = vmatprep.subr.bf16.mxu0 0
        %1330 = vmatpush2.bf16.msra.mxu0 0
        %1331 = vmatprep.subr.bf16.mxu0 0
        %1332 = vmatpush2.bf16.msra.mxu0 0
        %1333 = vmatprep.subr.bf16.mxu0 0
        %1334 = vmatpush2.bf16.msra.mxu0 0
        %1335 = vmatprep.subr.bf16.mxu0 0
        %1336 = vmatpush2.bf16.msra.mxu0 0
        %1337 = vmatprep.subr.bf16.mxu0 0
        %1338 = vmatpush2.bf16.msra.mxu0 0
        %1339 = vmatprep.subr.bf16.mxu0 0
        %1340 = vmatpush2.bf16.msra.mxu0 0
        %1341 = vmatprep.subr.bf16.mxu0 0
        %1342 = vmatpush2.bf16.msra.mxu0 0
        %1343 = vmatprep.subr.bf16.mxu0 0
        %1344 = vmatpush2.bf16.msra.mxu0 0
        %1345 = vmatprep.mubr.bf16.mxu0 0
        %1346 = vmatmul.mubr.bf16.gmra.mxu0 %v765
        %v1347 = vpop.f32.mrf.mxu0
        %v1348 = vadd.f32 %v1299, %v1347
        %v1349 = vpop.f32.mrf.mxu0
        %v1350 = vpop.f32.mrf.mxu0
        %v1351 = vadd.f32 %v1299, %v1350
        %v1352 = vpop.f32.mrf.mxu0
        %1353 = vdwg.mxu0
        %v1354 = vpack.c.bf16 %v1216, %v1216
        %v1355 = vpack.c.bf16 %v1219, %v1219
        %v1356 = vpack.c.bf16 %v1282, %v1282
        %v1357 = vpack.c.bf16 %v1285, %v1285
        %v1359 = vsel %vm940, %v1354, 0
        %v1362 = vsel %vm940, %v1356, 0
        %1364 = vmatprep.subr.bf16.mxu0 0
        %1365 = vmatpush1.bf16.xpose.msra.mxu0 0
        %1366 = vmatprep.subr.bf16.mxu0 0
        %1367 = vmatpush1.bf16.xpose.msra.mxu0 0
        %1368 = vmatprep.subr.bf16.mxu0 0
        %1369 = vmatpush1.bf16.xpose.msra.mxu0 0
        %1370 = vmatprep.subr.bf16.mxu0 0
        %1371 = vmatpush1.bf16.xpose.msra.mxu0 0
        %1372 = vmatprep.subr.bf16.mxu0 0
        %1373 = vmatpush1.bf16.xpose.msra.mxu0 0
        %1374 = vmatprep.subr.bf16.mxu0 0
        %1375 = vmatpush1.bf16.xpose.msra.mxu0 0
        %1376 = vmatprep.subr.bf16.mxu0 0
        %1377 = vmatpush1.bf16.xpose.msra.mxu0 0
        %1378 = vmatprep.subr.bf16.mxu0 0
        %1379 = vmatpush1.bf16.xpose.msra.mxu0 %v1362
        %1380 = vmatprep.subr.bf16.mxu0 0
        %1381 = vmatpush2.bf16.xpose.msra.mxu0 0
        %1382 = vmatprep.subr.bf16.mxu0 0
        %1383 = vmatpush2.bf16.xpose.msra.mxu0 0
        %1384 = vmatprep.subr.bf16.mxu0 0
        %1385 = vmatpush2.bf16.xpose.msra.mxu0 0
        %1386 = vmatprep.subr.bf16.mxu0 0
        %1387 = vmatpush2.bf16.xpose.msra.mxu0 0
        %1388 = vmatprep.subr.bf16.mxu0 0
        %1389 = vmatpush2.bf16.xpose.msra.mxu0 0
        %1390 = vmatprep.subr.bf16.mxu0 0
        %1391 = vmatpush2.bf16.xpose.msra.mxu0 0
        %1392 = vmatprep.subr.bf16.mxu0 0
        %1393 = vmatpush2.bf16.xpose.msra.mxu0 0
        %1394 = vmatprep.subr.bf16.mxu0 0
        %1395 = vmatpush2.bf16.xpose.msra.mxu0 0
        %1396 = vmatprep.mubr.bf16.mxu0 0
        %1397 = vmatmul.mubr.bf16.gmra.mxu0 %v1359
        %v1398 = vpop.f32.mrf.mxu0
        %v1399 = vadd.f32 0.0, %v1398
        %v1400 = vpop.f32.mrf.mxu0
        %v1401 = vpop.f32.mrf.mxu0
        %v1402 = vpop.f32.mrf.mxu0
        %1403 = vdwg.mxu0
        %v1405 = vsel %vm940, %v1355, 0
        %v1408 = vsel %vm940, %v1357, 0
        %1410 = vmatprep.subr.bf16.mxu0 0
        %1411 = vmatpush1.bf16.xpose.msra.mxu0 0
        %1412 = vmatprep.subr.bf16.mxu0 0
        %1413 = vmatpush1.bf16.xpose.msra.mxu0 0
        %1414 = vmatprep.subr.bf16.mxu0 0
        %1415 = vmatpush1.bf16.xpose.msra.mxu0 0
        %1416 = vmatprep.subr.bf16.mxu0 0
        %1417 = vmatpush1.bf16.xpose.msra.mxu0 0
        %1418 = vmatprep.subr.bf16.mxu0 0
        %1419 = vmatpush1.bf16.xpose.msra.mxu0 0
        %1420 = vmatprep.subr.bf16.mxu0 0
        %1421 = vmatpush1.bf16.xpose.msra.mxu0 0
        %1422 = vmatprep.subr.bf16.mxu0 0
        %1423 = vmatpush1.bf16.xpose.msra.mxu0 0
        %1424 = vmatprep.subr.bf16.mxu0 0
        %1425 = vmatpush1.bf16.xpose.msra.mxu0 %v1408
        %1426 = vmatprep.subr.bf16.mxu0 0
        %1427 = vmatpush2.bf16.xpose.msra.mxu0 0
        %1428 = vmatprep.subr.bf16.mxu0 0
        %1429 = vmatpush2.bf16.xpose.msra.mxu0 0
        %1430 = vmatprep.subr.bf16.mxu0 0
        %1431 = vmatpush2.bf16.xpose.msra.mxu0 0
        %1432 = vmatprep.subr.bf16.mxu0 0
        %1433 = vmatpush2.bf16.xpose.msra.mxu0 0
        %1434 = vmatprep.subr.bf16.mxu0 0
        %1435 = vmatpush2.bf16.xpose.msra.mxu0 0
        %1436 = vmatprep.subr.bf16.mxu0 0
        %1437 = vmatpush2.bf16.xpose.msra.mxu0 0
        %1438 = vmatprep.subr.bf16.mxu0 0
        %1439 = vmatpush2.bf16.xpose.msra.mxu0 0
        %1440 = vmatprep.subr.bf16.mxu0 0
        %1441 = vmatpush2.bf16.xpose.msra.mxu0 0
        %1442 = vmatprep.mubr.bf16.mxu0 0
        %1443 = vmatmul.mubr.bf16.gmra.mxu0 %v1405
        %v1444 = vpop.f32.mrf.mxu0
        %v1445 = vadd.f32 0.0, %v1444
        %v1446 = vpop.f32.mrf.mxu0
        %v1447 = vpop.f32.mrf.mxu0
        %v1448 = vpop.f32.mrf.mxu0
        %1449 = vdwg.mxu0
        %v1450 = vmul.f32 %v1399, 0.35355338
        %v1451 = vmul.f32 %v1445, 0.35355338
        %v1452 = vsel %vm940, %v1450, -inf
        %1453 = vmax.xlane.f32.xlu0 %v1452
        %v1454 = vpop.xlane.xlu0 %1453
        %v1455 = vsel %vm940, %v1451, -inf
        %1456 = vmax.xlane.f32.xlu0 %v1455
        %v1457 = vpop.xlane.xlu0 %1456
        %v1458 = vsub.f32 %v1450, %v1454
        %v1459 = vsub.f32 %v1451, %v1457
        %v1460 = vmul.f32 %v1458, 1.442695
        %v1461 = vpow.pop %v1460
        %v1462 = vmul.f32 %v1459, 1.442695
        %v1463 = vpow.pop %v1462
        %v1464 = vsel %vm940, %v1461, 0.0
        %1465 = vadd.xlane.f32.xlu0 %v1464
        %v1466 = vpop.xlane.xlu0 %1465
        %v1467 = vsel %vm940, %v1463, 0.0
        %1468 = vadd.xlane.f32.xlu0 %v1467
        %v1469 = vpop.xlane.xlu0 %1468
        %v1470 = vrcp.pop %v1466
        %v1471 = vrcp.pop %v1469
        %v1472 = vmul.f32 %v1461, %v1470
        %v1473 = vmul.f32 %v1463, %v1471
        %v1474 = vpack.c.bf16 %v1472, %v1472
        %v1475 = vpack.c.bf16 %v1473, %v1473
        %v1476 = vpack.c.bf16 %v1348, %v1348
        %v1477 = vpack.c.bf16 %v1351, %v1351
        %v1479 = vsel %vm940, %v1474, 0
        %v1482 = vsel %vm1064, %v1476, 0
        %1484 = vmatprep.subr.bf16.mxu0 0
        %1485 = vmatpush1.bf16.msra.mxu0 0
        %1486 = vmatprep.subr.bf16.mxu0 0
        %1487 = vmatpush1.bf16.msra.mxu0 0
        %1488 = vmatprep.subr.bf16.mxu0 0
        %1489 = vmatpush1.bf16.msra.mxu0 0
        %1490 = vmatprep.subr.bf16.mxu0 0
        %1491 = vmatpush1.bf16.msra.mxu0 0
        %1492 = vmatprep.subr.bf16.mxu0 0
        %1493 = vmatpush1.bf16.msra.mxu0 0
        %1494 = vmatprep.subr.bf16.mxu0 0
        %1495 = vmatpush1.bf16.msra.mxu0 0
        %1496 = vmatprep.subr.bf16.mxu0 0
        %1497 = vmatpush1.bf16.msra.mxu0 0
        %1498 = vmatprep.subr.bf16.mxu0 0
        %1499 = vmatpush1.bf16.msra.mxu0 %v1482
        %1500 = vmatprep.subr.bf16.mxu0 0
        %1501 = vmatpush2.bf16.msra.mxu0 0
        %1502 = vmatprep.subr.bf16.mxu0 0
        %1503 = vmatpush2.bf16.msra.mxu0 0
        %1504 = vmatprep.subr.bf16.mxu0 0
        %1505 = vmatpush2.bf16.msra.mxu0 0
        %1506 = vmatprep.subr.bf16.mxu0 0
        %1507 = vmatpush2.bf16.msra.mxu0 0
        %1508 = vmatprep.subr.bf16.mxu0 0
        %1509 = vmatpush2.bf16.msra.mxu0 0
        %1510 = vmatprep.subr.bf16.mxu0 0
        %1511 = vmatpush2.bf16.msra.mxu0 0
        %1512 = vmatprep.subr.bf16.mxu0 0
        %1513 = vmatpush2.bf16.msra.mxu0 0
        %1514 = vmatprep.subr.bf16.mxu0 0
        %1515 = vmatpush2.bf16.msra.mxu0 0
        %1516 = vmatprep.mubr.bf16.mxu0 0
        %1517 = vmatmul.mubr.bf16.gmra.mxu0 %v1479
        %v1518 = vpop.f32.mrf.mxu0
        %v1519 = vadd.f32 0.0, %v1518
        %v1520 = vpop.f32.mrf.mxu0
        %v1521 = vpop.f32.mrf.mxu0
        %v1522 = vpop.f32.mrf.mxu0
        %1523 = vdwg.mxu0
        %v1525 = vsel %vm940, %v1475, 0
        %v1528 = vsel %vm1064, %v1477, 0
        %1530 = vmatprep.subr.bf16.mxu0 0
        %1531 = vmatpush1.bf16.msra.mxu0 0
        %1532 = vmatprep.subr.bf16.mxu0 0
        %1533 = vmatpush1.bf16.msra.mxu0 0
        %1534 = vmatprep.subr.bf16.mxu0 0
        %1535 = vmatpush1.bf16.msra.mxu0 0
        %1536 = vmatprep.subr.bf16.mxu0 0
        %1537 = vmatpush1.bf16.msra.mxu0 0
        %1538 = vmatprep.subr.bf16.mxu0 0
        %1539 = vmatpush1.bf16.msra.mxu0 0
        %1540 = vmatprep.subr.bf16.mxu0 0
        %1541 = vmatpush1.bf16.msra.mxu0 0
        %1542 = vmatprep.subr.bf16.mxu0 0
        %1543 = vmatpush1.bf16.msra.mxu0 0
        %1544 = vmatprep.subr.bf16.mxu0 0
        %1545 = vmatpush1.bf16.msra.mxu0 %v1528
        %1546 = vmatprep.subr.bf16.mxu0 0
        %1547 = vmatpush2.bf16.msra.mxu0 0
        %1548 = vmatprep.subr.bf16.mxu0 0
        %1549 = vmatpush2.bf16.msra.mxu0 0
        %1550 = vmatprep.subr.bf16.mxu0 0
        %1551 = vmatpush2.bf16.msra.mxu0 0
        %1552 = vmatprep.subr.bf16.mxu0 0
        %1553 = vmatpush2.bf16.msra.mxu0 0
        %1554 = vmatprep.subr.bf16.mxu0 0
        %1555 = vmatpush2.bf16.msra.mxu0 0
        %1556 = vmatprep.subr.bf16.mxu0 0
        %1557 = vmatpush2.bf16.msra.mxu0 0
        %1558 = vmatprep.subr.bf16.mxu0 0
        %1559 = vmatpush2.bf16.msra.mxu0 0
        %1560 = vmatprep.subr.bf16.mxu0 0
        %1561 = vmatpush2.bf16.msra.mxu0 0
        %1562 = vmatprep.mubr.bf16.mxu0 0
        %1563 = vmatmul.mubr.bf16.gmra.mxu0 %v1525
        %v1564 = vpop.f32.mrf.mxu0
        %v1565 = vadd.f32 0.0, %v1564
        %v1566 = vpop.f32.mrf.mxu0
        %v1567 = vpop.f32.mrf.mxu0
        %v1568 = vpop.f32.mrf.mxu0
        %1569 = vdwg.mxu0
        %v1570 = vpack.c.bf16 %v1565, %v1519
        %s1571 = scalar_lea.vmem %s616, 4
        %v1572 = vld [vmem:[%s1571] sm:$0xf]
        %v1574 = vsel %vm940, %v1570, 0
        %v1577 = vsel %vm1064, %v1572, 0
        %1579 = vmatprep.subr.bf16.mxu0 0
        %1580 = vmatpush1.bf16.msra.mxu0 0
        %1581 = vmatprep.subr.bf16.mxu0 0
        %1582 = vmatpush1.bf16.msra.mxu0 0
        %1583 = vmatprep.subr.bf16.mxu0 0
        %1584 = vmatpush1.bf16.msra.mxu0 0
        %1585 = vmatprep.subr.bf16.mxu0 0
        %1586 = vmatpush1.bf16.msra.mxu0 0
        %1587 = vmatprep.subr.bf16.mxu0 0
        %1588 = vmatpush1.bf16.msra.mxu0 0
        %1589 = vmatprep.subr.bf16.mxu0 0
        %1590 = vmatpush1.bf16.msra.mxu0 0
        %1591 = vmatprep.subr.bf16.mxu0 0
        %1592 = vmatpush1.bf16.msra.mxu0 0
        %1593 = vmatprep.subr.bf16.mxu0 0
        %1594 = vmatpush1.bf16.msra.mxu0 %v1577
        %1595 = vmatprep.subr.bf16.mxu0 0
        %1596 = vmatpush2.bf16.msra.mxu0 0
        %1597 = vmatprep.subr.bf16.mxu0 0
        %1598 = vmatpush2.bf16.msra.mxu0 0
        %1599 = vmatprep.subr.bf16.mxu0 0
        %1600 = vmatpush2.bf16.msra.mxu0 0
        %1601 = vmatprep.subr.bf16.mxu0 0
        %1602 = vmatpush2.bf16.msra.mxu0 0
        %1603 = vmatprep.subr.bf16.mxu0 0
        %1604 = vmatpush2.bf16.msra.mxu0 0
        %1605 = vmatprep.subr.bf16.mxu0 0
        %1606 = vmatpush2.bf16.msra.mxu0 0
        %1607 = vmatprep.subr.bf16.mxu0 0
        %1608 = vmatpush2.bf16.msra.mxu0 0
        %1609 = vmatprep.subr.bf16.mxu0 0
        %1610 = vmatpush2.bf16.msra.mxu0 0
        %1611 = vmatprep.mubr.bf16.mxu0 0
        %1612 = vmatmul.mubr.bf16.gmra.mxu0 %v1574
        %v1613 = vpop.f32.mrf.mxu0
        %v1614 = vadd.f32 0.0, %v1613
        %v1615 = vpop.f32.mrf.mxu0
        %v1616 = vpop.f32.mrf.mxu0
        %v1617 = vadd.f32 0.0, %v1616
        %v1618 = vpop.f32.mrf.mxu0
        %1619 = vdwg.mxu0
        %v1621 = vsel %vm940, %v1154, 0
        %v1624 = vsel %vm1064, %v1155, 0
        %1626 = vmatprep.subr.bf16.mxu0 0
        %1627 = vmatpush1.bf16.msra.mxu0 0
        %1628 = vmatprep.subr.bf16.mxu0 0
        %1629 = vmatpush1.bf16.msra.mxu0 0
        %1630 = vmatprep.subr.bf16.mxu0 0
        %1631 = vmatpush1.bf16.msra.mxu0 0
        %1632 = vmatprep.subr.bf16.mxu0 0
        %1633 = vmatpush1.bf16.msra.mxu0 0
        %1634 = vmatprep.subr.bf16.mxu0 0
        %1635 = vmatpush1.bf16.msra.mxu0 0
        %1636 = vmatprep.subr.bf16.mxu0 0
        %1637 = vmatpush1.bf16.msra.mxu0 0
        %1638 = vmatprep.subr.bf16.mxu0 0
        %1639 = vmatpush1.bf16.msra.mxu0 0
        %1640 = vmatprep.subr.bf16.mxu0 0
        %1641 = vmatpush1.bf16.msra.mxu0 %v1624
        %1642 = vmatprep.subr.bf16.mxu0 0
        %1643 = vmatpush2.bf16.msra.mxu0 0
        %1644 = vmatprep.subr.bf16.mxu0 0
        %1645 = vmatpush2.bf16.msra.mxu0 0
        %1646 = vmatprep.subr.bf16.mxu0 0
        %1647 = vmatpush2.bf16.msra.mxu0 0
        %1648 = vmatprep.subr.bf16.mxu0 0
        %1649 = vmatpush2.bf16.msra.mxu0 0
        %1650 = vmatprep.subr.bf16.mxu0 0
        %1651 = vmatpush2.bf16.msra.mxu0 0
        %1652 = vmatprep.subr.bf16.mxu0 0
        %1653 = vmatpush2.bf16.msra.mxu0 0
        %1654 = vmatprep.subr.bf16.mxu0 0
        %1655 = vmatpush2.bf16.msra.mxu0 0
        %1656 = vmatprep.subr.bf16.mxu0 0
        %1657 = vmatpush2.bf16.msra.mxu0 0
        %1658 = vmatprep.mubr.bf16.mxu0 0
        %1659 = vmatmul.mubr.bf16.gmra.mxu0 %v1621
        %v1660 = vpop.f32.mrf.mxu0
        %v1661 = vadd.f32 %v1614, %v1660
        %v1662 = vpop.f32.mrf.mxu0
        %v1663 = vpop.f32.mrf.mxu0
        %v1664 = vadd.f32 %v1617, %v1663
        %v1665 = vpop.f32.mrf.mxu0
        %1666 = vdwg.mxu0
        %s1667 = scalar_lea.vmem %s589, 32
        %v1668 = vld [vmem:[%s1667] sm:$0xf]
        %v1669 = vld [vmem:[%s1667 + $0x4] sm:$0xf]
        %v1670 = vld [vmem:[%s1667 + $0x8] sm:$0xf]
        %v1671 = vld [vmem:[%s1667 + $0xc] sm:$0xf]
        %s1672 = scalar_lea.vmem %s593, 2
        %v1673 = vld [vmem:[%s1672] sm:$0x1]
        %v1675 = vlaneseq
        %v1676 = vshrl.u32 %v1675, 7
        %v1677 = vsub.s32 0, %v1676
        %v1678 = vrot.slane %v1673, %v1677
        %v1684 = vunpack.c.l.b16 %v1668
        %v1685 = vunpack.c.l.b16 %v1669
        %v1686 = vunpack.c.l.b16 %v1670
        %v1687 = vunpack.c.l.b16 %v1671
        %v1688 = vpack.c.b16 %v1685, %v1684
        %v1689 = vpack.c.b16 %v1687, %v1686
        %1692 = vmatprep.subr.bf16.mxu0 0
        %1693 = vmatpush1.bf16.msra.mxu0 0
        %1694 = vmatprep.subr.bf16.mxu0 0
        %1695 = vmatpush1.bf16.msra.mxu0 0
        %1696 = vmatprep.subr.bf16.mxu0 0
        %1697 = vmatpush1.bf16.msra.mxu0 0
        %1698 = vmatprep.subr.bf16.mxu0 0
        %1699 = vmatpush1.bf16.msra.mxu0 0
        %1700 = vmatprep.subr.bf16.mxu0 0
        %1701 = vmatpush1.bf16.msra.mxu0 0
        %1702 = vmatprep.subr.bf16.mxu0 0
        %1703 = vmatpush1.bf16.msra.mxu0 0
        %1704 = vmatprep.subr.bf16.mxu0 0
        %1705 = vmatpush1.bf16.msra.mxu0 %v1689
        %1706 = vmatprep.subr.bf16.mxu0 0
        %1707 = vmatpush1.bf16.msra.mxu0 %v1688
        %1708 = vmatprep.subr.bf16.mxu0 0
        %1709 = vmatpush2.bf16.msra.mxu0 0
        %1710 = vmatprep.subr.bf16.mxu0 0
        %1711 = vmatpush2.bf16.msra.mxu0 0
        %1712 = vmatprep.subr.bf16.mxu0 0
        %1713 = vmatpush2.bf16.msra.mxu0 0
        %1714 = vmatprep.subr.bf16.mxu0 0
        %1715 = vmatpush2.bf16.msra.mxu0 0
        %1716 = vmatprep.subr.bf16.mxu0 0
        %1717 = vmatpush2.bf16.msra.mxu0 0
        %1718 = vmatprep.subr.bf16.mxu0 0
        %1719 = vmatpush2.bf16.msra.mxu0 0
        %1720 = vmatprep.subr.bf16.mxu0 0
        %1721 = vmatpush2.bf16.msra.mxu0 0
        %1722 = vmatprep.subr.bf16.mxu0 0
        %1723 = vmatpush2.bf16.msra.mxu0 0
        %1724 = vmatprep.mubr.bf16.mxu0 0
        %1725 = vmatmul.mubr.bf16.gmra.mxu0 %v765
        %v1726 = vpop.f32.mrf.mxu0
        %v1727 = vadd.f32 %v1678, %v1726
        %v1728 = vpop.f32.mrf.mxu0
        %v1729 = vpop.f32.mrf.mxu0
        %v1730 = vadd.f32 %v1678, %v1729
        %v1731 = vpop.f32.mrf.mxu0
        %1732 = vdwg.mxu0
        %s1733 = scalar_lea.vmem %s598, 32
        %v1734 = vld [vmem:[%s1733] sm:$0xf]
        %v1735 = vld [vmem:[%s1733 + $0x4] sm:$0xf]
        %v1736 = vld [vmem:[%s1733 + $0x8] sm:$0xf]
        %v1737 = vld [vmem:[%s1733 + $0xc] sm:$0xf]
        %s1738 = scalar_lea.vmem %s602, 2
        %v1739 = vld [vmem:[%s1738] sm:$0x1]
        %v1741 = vlaneseq
        %v1742 = vshrl.u32 %v1741, 7
        %v1743 = vsub.s32 0, %v1742
        %v1744 = vrot.slane %v1739, %v1743
        %v1750 = vunpack.c.l.b16 %v1734
        %v1751 = vunpack.c.l.b16 %v1735
        %v1752 = vunpack.c.l.b16 %v1736
        %v1753 = vunpack.c.l.b16 %v1737
        %v1754 = vpack.c.b16 %v1751, %v1750
        %v1755 = vpack.c.b16 %v1753, %v1752
        %1758 = vmatprep.subr.bf16.mxu0 0
        %1759 = vmatpush1.bf16.msra.mxu0 0
        %1760 = vmatprep.subr.bf16.mxu0 0
        %1761 = vmatpush1.bf16.msra.mxu0 0
        %1762 = vmatprep.subr.bf16.mxu0 0
        %1763 = vmatpush1.bf16.msra.mxu0 0
        %1764 = vmatprep.subr.bf16.mxu0 0
        %1765 = vmatpush1.bf16.msra.mxu0 0
        %1766 = vmatprep.subr.bf16.mxu0 0
        %1767 = vmatpush1.bf16.msra.mxu0 0
        %1768 = vmatprep.subr.bf16.mxu0 0
        %1769 = vmatpush1.bf16.msra.mxu0 0
        %1770 = vmatprep.subr.bf16.mxu0 0
        %1771 = vmatpush1.bf16.msra.mxu0 %v1755
        %1772 = vmatprep.subr.bf16.mxu0 0
        %1773 = vmatpush1.bf16.msra.mxu0 %v1754
        %1774 = vmatprep.subr.bf16.mxu0 0
        %1775 = vmatpush2.bf16.msra.mxu0 0
        %1776 = vmatprep.subr.bf16.mxu0 0
        %1777 = vmatpush2.bf16.msra.mxu0 0
        %1778 = vmatprep.subr.bf16.mxu0 0
        %1779 = vmatpush2.bf16.msra.mxu0 0
        %1780 = vmatprep.subr.bf16.mxu0 0
        %1781 = vmatpush2.bf16.msra.mxu0 0
        %1782 = vmatprep.subr.bf16.mxu0 0
        %1783 = vmatpush2.bf16.msra.mxu0 0
        %1784 = vmatprep.subr.bf16.mxu0 0
        %1785 = vmatpush2.bf16.msra.mxu0 0
        %1786 = vmatprep.subr.bf16.mxu0 0
        %1787 = vmatpush2.bf16.msra.mxu0 0
        %1788 = vmatprep.subr.bf16.mxu0 0
        %1789 = vmatpush2.bf16.msra.mxu0 0
        %1790 = vmatprep.mubr.bf16.mxu0 0
        %1791 = vmatmul.mubr.bf16.gmra.mxu0 %v765
        %v1792 = vpop.f32.mrf.mxu0
        %v1793 = vadd.f32 %v1744, %v1792
        %v1794 = vpop.f32.mrf.mxu0
        %v1795 = vpop.f32.mrf.mxu0
        %v1796 = vadd.f32 %v1744, %v1795
        %v1797 = vpop.f32.mrf.mxu0
        %1798 = vdwg.mxu0
        %s1799 = scalar_lea.vmem %s607, 32
        %v1800 = vld [vmem:[%s1799] sm:$0xf]
        %v1801 = vld [vmem:[%s1799 + $0x4] sm:$0xf]
        %v1802 = vld [vmem:[%s1799 + $0x8] sm:$0xf]
        %v1803 = vld [vmem:[%s1799 + $0xc] sm:$0xf]
        %s1804 = scalar_lea.vmem %s611, 2
        %v1805 = vld [vmem:[%s1804] sm:$0x1]
        %v1807 = vlaneseq
        %v1808 = vshrl.u32 %v1807, 7
        %v1809 = vsub.s32 0, %v1808
        %v1810 = vrot.slane %v1805, %v1809
        %v1816 = vunpack.c.l.b16 %v1800
        %v1817 = vunpack.c.l.b16 %v1801
        %v1818 = vunpack.c.l.b16 %v1802
        %v1819 = vunpack.c.l.b16 %v1803
        %v1820 = vpack.c.b16 %v1817, %v1816
        %v1821 = vpack.c.b16 %v1819, %v1818
        %1824 = vmatprep.subr.bf16.mxu0 0
        %1825 = vmatpush1.bf16.msra.mxu0 0
        %1826 = vmatprep.subr.bf16.mxu0 0
        %1827 = vmatpush1.bf16.msra.mxu0 0
        %1828 = vmatprep.subr.bf16.mxu0 0
        %1829 = vmatpush1.bf16.msra.mxu0 0
        %1830 = vmatprep.subr.bf16.mxu0 0
        %1831 = vmatpush1.bf16.msra.mxu0 0
        %1832 = vmatprep.subr.bf16.mxu0 0
        %1833 = vmatpush1.bf16.msra.mxu0 0
        %1834 = vmatprep.subr.bf16.mxu0 0
        %1835 = vmatpush1.bf16.msra.mxu0 0
        %1836 = vmatprep.subr.bf16.mxu0 0
        %1837 = vmatpush1.bf16.msra.mxu0 %v1821
        %1838 = vmatprep.subr.bf16.mxu0 0
        %1839 = vmatpush1.bf16.msra.mxu0 %v1820
        %1840 = vmatprep.subr.bf16.mxu0 0
        %1841 = vmatpush2.bf16.msra.mxu0 0
        %1842 = vmatprep.subr.bf16.mxu0 0
        %1843 = vmatpush2.bf16.msra.mxu0 0
        %1844 = vmatprep.subr.bf16.mxu0 0
        %1845 = vmatpush2.bf16.msra.mxu0 0
        %1846 = vmatprep.subr.bf16.mxu0 0
        %1847 = vmatpush2.bf16.msra.mxu0 0
        %1848 = vmatprep.subr.bf16.mxu0 0
        %1849 = vmatpush2.bf16.msra.mxu0 0
        %1850 = vmatprep.subr.bf16.mxu0 0
        %1851 = vmatpush2.bf16.msra.mxu0 0
        %1852 = vmatprep.subr.bf16.mxu0 0
        %1853 = vmatpush2.bf16.msra.mxu0 0
        %1854 = vmatprep.subr.bf16.mxu0 0
        %1855 = vmatpush2.bf16.msra.mxu0 0
        %1856 = vmatprep.mubr.bf16.mxu0 0
        %1857 = vmatmul.mubr.bf16.gmra.mxu0 %v765
        %v1858 = vpop.f32.mrf.mxu0
        %v1859 = vadd.f32 %v1810, %v1858
        %v1860 = vpop.f32.mrf.mxu0
        %v1861 = vpop.f32.mrf.mxu0
        %v1862 = vadd.f32 %v1810, %v1861
        %v1863 = vpop.f32.mrf.mxu0
        %1864 = vdwg.mxu0
        %v1865 = vpack.c.bf16 %v1727, %v1727
        %v1866 = vpack.c.bf16 %v1730, %v1730
        %v1867 = vpack.c.bf16 %v1793, %v1793
        %v1868 = vpack.c.bf16 %v1796, %v1796
        %v1870 = vsel %vm940, %v1865, 0
        %v1873 = vsel %vm940, %v1867, 0
        %1875 = vmatprep.subr.bf16.mxu0 0
        %1876 = vmatpush1.bf16.xpose.msra.mxu0 0
        %1877 = vmatprep.subr.bf16.mxu0 0
        %1878 = vmatpush1.bf16.xpose.msra.mxu0 0
        %1879 = vmatprep.subr.bf16.mxu0 0
        %1880 = vmatpush1.bf16.xpose.msra.mxu0 0
        %1881 = vmatprep.subr.bf16.mxu0 0
        %1882 = vmatpush1.bf16.xpose.msra.mxu0 0
        %1883 = vmatprep.subr.bf16.mxu0 0
        %1884 = vmatpush1.bf16.xpose.msra.mxu0 0
        %1885 = vmatprep.subr.bf16.mxu0 0
        %1886 = vmatpush1.bf16.xpose.msra.mxu0 0
        %1887 = vmatprep.subr.bf16.mxu0 0
        %1888 = vmatpush1.bf16.xpose.msra.mxu0 0
        %1889 = vmatprep.subr.bf16.mxu0 0
        %1890 = vmatpush1.bf16.xpose.msra.mxu0 %v1873
        %1891 = vmatprep.subr.bf16.mxu0 0
        %1892 = vmatpush2.bf16.xpose.msra.mxu0 0
        %1893 = vmatprep.subr.bf16.mxu0 0
        %1894 = vmatpush2.bf16.xpose.msra.mxu0 0
        %1895 = vmatprep.subr.bf16.mxu0 0
        %1896 = vmatpush2.bf16.xpose.msra.mxu0 0
        %1897 = vmatprep.subr.bf16.mxu0 0
        %1898 = vmatpush2.bf16.xpose.msra.mxu0 0
        %1899 = vmatprep.subr.bf16.mxu0 0
        %1900 = vmatpush2.bf16.xpose.msra.mxu0 0
        %1901 = vmatprep.subr.bf16.mxu0 0
        %1902 = vmatpush2.bf16.xpose.msra.mxu0 0
        %1903 = vmatprep.subr.bf16.mxu0 0
        %1904 = vmatpush2.bf16.xpose.msra.mxu0 0
        %1905 = vmatprep.subr.bf16.mxu0 0
        %1906 = vmatpush2.bf16.xpose.msra.mxu0 0
        %1907 = vmatprep.mubr.bf16.mxu0 0
        %1908 = vmatmul.mubr.bf16.gmra.mxu0 %v1870
        %v1909 = vpop.f32.mrf.mxu0
        %v1910 = vadd.f32 0.0, %v1909
        %v1911 = vpop.f32.mrf.mxu0
        %v1912 = vpop.f32.mrf.mxu0
        %v1913 = vpop.f32.mrf.mxu0
        %1914 = vdwg.mxu0
        %v1916 = vsel %vm940, %v1866, 0
        %v1919 = vsel %vm940, %v1868, 0
        %1921 = vmatprep.subr.bf16.mxu0 0
        %1922 = vmatpush1.bf16.xpose.msra.mxu0 0
        %1923 = vmatprep.subr.bf16.mxu0 0
        %1924 = vmatpush1.bf16.xpose.msra.mxu0 0
        %1925 = vmatprep.subr.bf16.mxu0 0
        %1926 = vmatpush1.bf16.xpose.msra.mxu0 0
        %1927 = vmatprep.subr.bf16.mxu0 0
        %1928 = vmatpush1.bf16.xpose.msra.mxu0 0
        %1929 = vmatprep.subr.bf16.mxu0 0
        %1930 = vmatpush1.bf16.xpose.msra.mxu0 0
        %1931 = vmatprep.subr.bf16.mxu0 0
        %1932 = vmatpush1.bf16.xpose.msra.mxu0 0
        %1933 = vmatprep.subr.bf16.mxu0 0
        %1934 = vmatpush1.bf16.xpose.msra.mxu0 0
        %1935 = vmatprep.subr.bf16.mxu0 0
        %1936 = vmatpush1.bf16.xpose.msra.mxu0 %v1919
        %1937 = vmatprep.subr.bf16.mxu0 0
        %1938 = vmatpush2.bf16.xpose.msra.mxu0 0
        %1939 = vmatprep.subr.bf16.mxu0 0
        %1940 = vmatpush2.bf16.xpose.msra.mxu0 0
        %1941 = vmatprep.subr.bf16.mxu0 0
        %1942 = vmatpush2.bf16.xpose.msra.mxu0 0
        %1943 = vmatprep.subr.bf16.mxu0 0
        %1944 = vmatpush2.bf16.xpose.msra.mxu0 0
        %1945 = vmatprep.subr.bf16.mxu0 0
        %1946 = vmatpush2.bf16.xpose.msra.mxu0 0
        %1947 = vmatprep.subr.bf16.mxu0 0
        %1948 = vmatpush2.bf16.xpose.msra.mxu0 0
        %1949 = vmatprep.subr.bf16.mxu0 0
        %1950 = vmatpush2.bf16.xpose.msra.mxu0 0
        %1951 = vmatprep.subr.bf16.mxu0 0
        %1952 = vmatpush2.bf16.xpose.msra.mxu0 0
        %1953 = vmatprep.mubr.bf16.mxu0 0
        %1954 = vmatmul.mubr.bf16.gmra.mxu0 %v1916
        %v1955 = vpop.f32.mrf.mxu0
        %v1956 = vadd.f32 0.0, %v1955
        %v1957 = vpop.f32.mrf.mxu0
        %v1958 = vpop.f32.mrf.mxu0
        %v1959 = vpop.f32.mrf.mxu0
        %1960 = vdwg.mxu0
        %v1961 = vmul.f32 %v1910, 0.35355338
        %v1962 = vmul.f32 %v1956, 0.35355338
        %v1963 = vsel %vm940, %v1961, -inf
        %1964 = vmax.xlane.f32.xlu0 %v1963
        %v1965 = vpop.xlane.xlu0 %1964
        %v1966 = vsel %vm940, %v1962, -inf
        %1967 = vmax.xlane.f32.xlu0 %v1966
        %v1968 = vpop.xlane.xlu0 %1967
        %v1969 = vsub.f32 %v1961, %v1965
        %v1970 = vsub.f32 %v1962, %v1968
        %v1971 = vmul.f32 %v1969, 1.442695
        %v1972 = vpow.pop %v1971
        %v1973 = vmul.f32 %v1970, 1.442695
        %v1974 = vpow.pop %v1973
        %v1975 = vsel %vm940, %v1972, 0.0
        %1976 = vadd.xlane.f32.xlu0 %v1975
        %v1977 = vpop.xlane.xlu0 %1976
        %v1978 = vsel %vm940, %v1974, 0.0
        %1979 = vadd.xlane.f32.xlu0 %v1978
        %v1980 = vpop.xlane.xlu0 %1979
        %v1981 = vrcp.pop %v1977
        %v1982 = vrcp.pop %v1980
        %v1983 = vmul.f32 %v1972, %v1981
        %v1984 = vmul.f32 %v1974, %v1982
        %v1985 = vpack.c.bf16 %v1983, %v1983
        %v1986 = vpack.c.bf16 %v1984, %v1984
        %v1987 = vpack.c.bf16 %v1859, %v1859
        %v1988 = vpack.c.bf16 %v1862, %v1862
        %v1990 = vsel %vm940, %v1985, 0
        %v1993 = vsel %vm1064, %v1987, 0
        %1995 = vmatprep.subr.bf16.mxu0 0
        %1996 = vmatpush1.bf16.msra.mxu0 0
        %1997 = vmatprep.subr.bf16.mxu0 0
        %1998 = vmatpush1.bf16.msra.mxu0 0
        %1999 = vmatprep.subr.bf16.mxu0 0
        %2000 = vmatpush1.bf16.msra.mxu0 0
        %2001 = vmatprep.subr.bf16.mxu0 0
        %2002 = vmatpush1.bf16.msra.mxu0 0
        %2003 = vmatprep.subr.bf16.mxu0 0
        %2004 = vmatpush1.bf16.msra.mxu0 0
        %2005 = vmatprep.subr.bf16.mxu0 0
        %2006 = vmatpush1.bf16.msra.mxu0 0
        %2007 = vmatprep.subr.bf16.mxu0 0
        %2008 = vmatpush1.bf16.msra.mxu0 0
        %2009 = vmatprep.subr.bf16.mxu0 0
        %2010 = vmatpush1.bf16.msra.mxu0 %v1993
        %2011 = vmatprep.subr.bf16.mxu0 0
        %2012 = vmatpush2.bf16.msra.mxu0 0
        %2013 = vmatprep.subr.bf16.mxu0 0
        %2014 = vmatpush2.bf16.msra.mxu0 0
        %2015 = vmatprep.subr.bf16.mxu0 0
        %2016 = vmatpush2.bf16.msra.mxu0 0
        %2017 = vmatprep.subr.bf16.mxu0 0
        %2018 = vmatpush2.bf16.msra.mxu0 0
        %2019 = vmatprep.subr.bf16.mxu0 0
        %2020 = vmatpush2.bf16.msra.mxu0 0
        %2021 = vmatprep.subr.bf16.mxu0 0
        %2022 = vmatpush2.bf16.msra.mxu0 0
        %2023 = vmatprep.subr.bf16.mxu0 0
        %2024 = vmatpush2.bf16.msra.mxu0 0
        %2025 = vmatprep.subr.bf16.mxu0 0
        %2026 = vmatpush2.bf16.msra.mxu0 0
        %2027 = vmatprep.mubr.bf16.mxu0 0
        %2028 = vmatmul.mubr.bf16.gmra.mxu0 %v1990
        %v2029 = vpop.f32.mrf.mxu0
        %v2030 = vadd.f32 0.0, %v2029
        %v2031 = vpop.f32.mrf.mxu0
        %v2032 = vpop.f32.mrf.mxu0
        %v2033 = vpop.f32.mrf.mxu0
        %2034 = vdwg.mxu0
        %v2036 = vsel %vm940, %v1986, 0
        %v2039 = vsel %vm1064, %v1988, 0
        %2041 = vmatprep.subr.bf16.mxu0 0
        %2042 = vmatpush1.bf16.msra.mxu0 0
        %2043 = vmatprep.subr.bf16.mxu0 0
        %2044 = vmatpush1.bf16.msra.mxu0 0
        %2045 = vmatprep.subr.bf16.mxu0 0
        %2046 = vmatpush1.bf16.msra.mxu0 0
        %2047 = vmatprep.subr.bf16.mxu0 0
        %2048 = vmatpush1.bf16.msra.mxu0 0
        %2049 = vmatprep.subr.bf16.mxu0 0
        %2050 = vmatpush1.bf16.msra.mxu0 0
        %2051 = vmatprep.subr.bf16.mxu0 0
        %2052 = vmatpush1.bf16.msra.mxu0 0
        %2053 = vmatprep.subr.bf16.mxu0 0
        %2054 = vmatpush1.bf16.msra.mxu0 0
        %2055 = vmatprep.subr.bf16.mxu0 0
        %2056 = vmatpush1.bf16.msra.mxu0 %v2039
        %2057 = vmatprep.subr.bf16.mxu0 0
        %2058 = vmatpush2.bf16.msra.mxu0 0
        %2059 = vmatprep.subr.bf16.mxu0 0
        %2060 = vmatpush2.bf16.msra.mxu0 0
        %2061 = vmatprep.subr.bf16.mxu0 0
        %2062 = vmatpush2.bf16.msra.mxu0 0
        %2063 = vmatprep.subr.bf16.mxu0 0
        %2064 = vmatpush2.bf16.msra.mxu0 0
        %2065 = vmatprep.subr.bf16.mxu0 0
        %2066 = vmatpush2.bf16.msra.mxu0 0
        %2067 = vmatprep.subr.bf16.mxu0 0
        %2068 = vmatpush2.bf16.msra.mxu0 0
        %2069 = vmatprep.subr.bf16.mxu0 0
        %2070 = vmatpush2.bf16.msra.mxu0 0
        %2071 = vmatprep.subr.bf16.mxu0 0
        %2072 = vmatpush2.bf16.msra.mxu0 0
        %2073 = vmatprep.mubr.bf16.mxu0 0
        %2074 = vmatmul.mubr.bf16.gmra.mxu0 %v2036
        %v2075 = vpop.f32.mrf.mxu0
        %v2076 = vadd.f32 0.0, %v2075
        %v2077 = vpop.f32.mrf.mxu0
        %v2078 = vpop.f32.mrf.mxu0
        %v2079 = vpop.f32.mrf.mxu0
        %2080 = vdwg.mxu0
        %v2081 = vpack.c.bf16 %v2076, %v2030
        %s2082 = scalar_lea.vmem %s616, 8
        %v2083 = vld [vmem:[%s2082] sm:$0xf]
        %v2085 = vsel %vm940, %v2081, 0
        %v2088 = vsel %vm1064, %v2083, 0
        %2090 = vmatprep.subr.bf16.mxu0 0
        %2091 = vmatpush1.bf16.msra.mxu0 0
        %2092 = vmatprep.subr.bf16.mxu0 0
        %2093 = vmatpush1.bf16.msra.mxu0 0
        %2094 = vmatprep.subr.bf16.mxu0 0
        %2095 = vmatpush1.bf16.msra.mxu0 0
        %2096 = vmatprep.subr.bf16.mxu0 0
        %2097 = vmatpush1.bf16.msra.mxu0 0
        %2098 = vmatprep.subr.bf16.mxu0 0
        %2099 = vmatpush1.bf16.msra.mxu0 0
        %2100 = vmatprep.subr.bf16.mxu0 0
        %2101 = vmatpush1.bf16.msra.mxu0 0
        %2102 = vmatprep.subr.bf16.mxu0 0
        %2103 = vmatpush1.bf16.msra.mxu0 0
        %2104 = vmatprep.subr.bf16.mxu0 0
        %2105 = vmatpush1.bf16.msra.mxu0 %v2088
        %2106 = vmatprep.subr.bf16.mxu0 0
        %2107 = vmatpush2.bf16.msra.mxu0 0
        %2108 = vmatprep.subr.bf16.mxu0 0
        %2109 = vmatpush2.bf16.msra.mxu0 0
        %2110 = vmatprep.subr.bf16.mxu0 0
        %2111 = vmatpush2.bf16.msra.mxu0 0
        %2112 = vmatprep.subr.bf16.mxu0 0
        %2113 = vmatpush2.bf16.msra.mxu0 0
        %2114 = vmatprep.subr.bf16.mxu0 0
        %2115 = vmatpush2.bf16.msra.mxu0 0
        %2116 = vmatprep.subr.bf16.mxu0 0
        %2117 = vmatpush2.bf16.msra.mxu0 0
        %2118 = vmatprep.subr.bf16.mxu0 0
        %2119 = vmatpush2.bf16.msra.mxu0 0
        %2120 = vmatprep.subr.bf16.mxu0 0
        %2121 = vmatpush2.bf16.msra.mxu0 0
        %2122 = vmatprep.mubr.bf16.mxu0 0
        %2123 = vmatmul.mubr.bf16.gmra.mxu0 %v2085
        %v2124 = vpop.f32.mrf.mxu0
        %v2125 = vadd.f32 0.0, %v2124
        %v2126 = vpop.f32.mrf.mxu0
        %v2127 = vpop.f32.mrf.mxu0
        %v2128 = vadd.f32 0.0, %v2127
        %v2129 = vpop.f32.mrf.mxu0
        %2130 = vdwg.mxu0
        %v2131 = vadd.f32 %v1661, %v2125
        %v2132 = vadd.f32 %v1664, %v2128
        %s2133 = scalar_lea.vmem %s589, 48
        %v2134 = vld [vmem:[%s2133] sm:$0xf]
        %v2135 = vld [vmem:[%s2133 + $0x4] sm:$0xf]
        %v2136 = vld [vmem:[%s2133 + $0x8] sm:$0xf]
        %v2137 = vld [vmem:[%s2133 + $0xc] sm:$0xf]
        %s2138 = scalar_lea.vmem %s593, 3
        %v2139 = vld [vmem:[%s2138] sm:$0x1]
        %v2141 = vlaneseq
        %v2142 = vshrl.u32 %v2141, 7
        %v2143 = vsub.s32 0, %v2142
        %v2144 = vrot.slane %v2139, %v2143
        %v2150 = vunpack.c.l.b16 %v2134
        %v2151 = vunpack.c.l.b16 %v2135
        %v2152 = vunpack.c.l.b16 %v2136
        %v2153 = vunpack.c.l.b16 %v2137
        %v2154 = vpack.c.b16 %v2151, %v2150
        %v2155 = vpack.c.b16 %v2153, %v2152
        %2158 = vmatprep.subr.bf16.mxu0 0
        %2159 = vmatpush1.bf16.msra.mxu0 0
        %2160 = vmatprep.subr.bf16.mxu0 0
        %2161 = vmatpush1.bf16.msra.mxu0 0
        %2162 = vmatprep.subr.bf16.mxu0 0
        %2163 = vmatpush1.bf16.msra.mxu0 0
        %2164 = vmatprep.subr.bf16.mxu0 0
        %2165 = vmatpush1.bf16.msra.mxu0 0
        %2166 = vmatprep.subr.bf16.mxu0 0
        %2167 = vmatpush1.bf16.msra.mxu0 0
        %2168 = vmatprep.subr.bf16.mxu0 0
        %2169 = vmatpush1.bf16.msra.mxu0 0
        %2170 = vmatprep.subr.bf16.mxu0 0
        %2171 = vmatpush1.bf16.msra.mxu0 %v2155
        %2172 = vmatprep.subr.bf16.mxu0 0
        %2173 = vmatpush1.bf16.msra.mxu0 %v2154
        %2174 = vmatprep.subr.bf16.mxu0 0
        %2175 = vmatpush2.bf16.msra.mxu0 0
        %2176 = vmatprep.subr.bf16.mxu0 0
        %2177 = vmatpush2.bf16.msra.mxu0 0
        %2178 = vmatprep.subr.bf16.mxu0 0
        %2179 = vmatpush2.bf16.msra.mxu0 0
        %2180 = vmatprep.subr.bf16.mxu0 0
        %2181 = vmatpush2.bf16.msra.mxu0 0
        %2182 = vmatprep.subr.bf16.mxu0 0
        %2183 = vmatpush2.bf16.msra.mxu0 0
        %2184 = vmatprep.subr.bf16.mxu0 0
        %2185 = vmatpush2.bf16.msra.mxu0 0
        %2186 = vmatprep.subr.bf16.mxu0 0
        %2187 = vmatpush2.bf16.msra.mxu0 0
        %2188 = vmatprep.subr.bf16.mxu0 0
        %2189 = vmatpush2.bf16.msra.mxu0 0
        %2190 = vmatprep.mubr.bf16.mxu0 0
        %2191 = vmatmul.mubr.bf16.gmra.mxu0 %v765
        %v2192 = vpop.f32.mrf.mxu0
        %v2193 = vadd.f32 %v2144, %v2192
        %v2194 = vpop.f32.mrf.mxu0
        %v2195 = vpop.f32.mrf.mxu0
        %v2196 = vadd.f32 %v2144, %v2195
        %v2197 = vpop.f32.mrf.mxu0
        %2198 = vdwg.mxu0
        %s2199 = scalar_lea.vmem %s598, 48
        %v2200 = vld [vmem:[%s2199] sm:$0xf]
        %v2201 = vld [vmem:[%s2199 + $0x4] sm:$0xf]
        %v2202 = vld [vmem:[%s2199 + $0x8] sm:$0xf]
        %v2203 = vld [vmem:[%s2199 + $0xc] sm:$0xf]
        %s2204 = scalar_lea.vmem %s602, 3
        %v2205 = vld [vmem:[%s2204] sm:$0x1]
        %v2207 = vlaneseq
        %v2208 = vshrl.u32 %v2207, 7
        %v2209 = vsub.s32 0, %v2208
        %v2210 = vrot.slane %v2205, %v2209
        %v2216 = vunpack.c.l.b16 %v2200
        %v2217 = vunpack.c.l.b16 %v2201
        %v2218 = vunpack.c.l.b16 %v2202
        %v2219 = vunpack.c.l.b16 %v2203
        %v2220 = vpack.c.b16 %v2217, %v2216
        %v2221 = vpack.c.b16 %v2219, %v2218
        %2224 = vmatprep.subr.bf16.mxu0 0
        %2225 = vmatpush1.bf16.msra.mxu0 0
        %2226 = vmatprep.subr.bf16.mxu0 0
        %2227 = vmatpush1.bf16.msra.mxu0 0
        %2228 = vmatprep.subr.bf16.mxu0 0
        %2229 = vmatpush1.bf16.msra.mxu0 0
        %2230 = vmatprep.subr.bf16.mxu0 0
        %2231 = vmatpush1.bf16.msra.mxu0 0
        %2232 = vmatprep.subr.bf16.mxu0 0
        %2233 = vmatpush1.bf16.msra.mxu0 0
        %2234 = vmatprep.subr.bf16.mxu0 0
        %2235 = vmatpush1.bf16.msra.mxu0 0
        %2236 = vmatprep.subr.bf16.mxu0 0
        %2237 = vmatpush1.bf16.msra.mxu0 %v2221
        %2238 = vmatprep.subr.bf16.mxu0 0
        %2239 = vmatpush1.bf16.msra.mxu0 %v2220
        %2240 = vmatprep.subr.bf16.mxu0 0
        %2241 = vmatpush2.bf16.msra.mxu0 0
        %2242 = vmatprep.subr.bf16.mxu0 0
        %2243 = vmatpush2.bf16.msra.mxu0 0
        %2244 = vmatprep.subr.bf16.mxu0 0
        %2245 = vmatpush2.bf16.msra.mxu0 0
        %2246 = vmatprep.subr.bf16.mxu0 0
        %2247 = vmatpush2.bf16.msra.mxu0 0
        %2248 = vmatprep.subr.bf16.mxu0 0
        %2249 = vmatpush2.bf16.msra.mxu0 0
        %2250 = vmatprep.subr.bf16.mxu0 0
        %2251 = vmatpush2.bf16.msra.mxu0 0
        %2252 = vmatprep.subr.bf16.mxu0 0
        %2253 = vmatpush2.bf16.msra.mxu0 0
        %2254 = vmatprep.subr.bf16.mxu0 0
        %2255 = vmatpush2.bf16.msra.mxu0 0
        %2256 = vmatprep.mubr.bf16.mxu0 0
        %2257 = vmatmul.mubr.bf16.gmra.mxu0 %v765
        %v2258 = vpop.f32.mrf.mxu0
        %v2259 = vadd.f32 %v2210, %v2258
        %v2260 = vpop.f32.mrf.mxu0
        %v2261 = vpop.f32.mrf.mxu0
        %v2262 = vadd.f32 %v2210, %v2261
        %v2263 = vpop.f32.mrf.mxu0
        %2264 = vdwg.mxu0
        %s2265 = scalar_lea.vmem %s607, 48
        %v2266 = vld [vmem:[%s2265] sm:$0xf]
        %v2267 = vld [vmem:[%s2265 + $0x4] sm:$0xf]
        %v2268 = vld [vmem:[%s2265 + $0x8] sm:$0xf]
        %v2269 = vld [vmem:[%s2265 + $0xc] sm:$0xf]
        %s2270 = scalar_lea.vmem %s611, 3
        %v2271 = vld [vmem:[%s2270] sm:$0x1]
        %v2273 = vlaneseq
        %v2274 = vshrl.u32 %v2273, 7
        %v2275 = vsub.s32 0, %v2274
        %v2276 = vrot.slane %v2271, %v2275
        %v2282 = vunpack.c.l.b16 %v2266
        %v2283 = vunpack.c.l.b16 %v2267
        %v2284 = vunpack.c.l.b16 %v2268
        %v2285 = vunpack.c.l.b16 %v2269
        %v2286 = vpack.c.b16 %v2283, %v2282
        %v2287 = vpack.c.b16 %v2285, %v2284
        %2290 = vmatprep.subr.bf16.mxu0 0
        %2291 = vmatpush1.bf16.msra.mxu0 0
        %2292 = vmatprep.subr.bf16.mxu0 0
        %2293 = vmatpush1.bf16.msra.mxu0 0
        %2294 = vmatprep.subr.bf16.mxu0 0
        %2295 = vmatpush1.bf16.msra.mxu0 0
        %2296 = vmatprep.subr.bf16.mxu0 0
        %2297 = vmatpush1.bf16.msra.mxu0 0
        %2298 = vmatprep.subr.bf16.mxu0 0
        %2299 = vmatpush1.bf16.msra.mxu0 0
        %2300 = vmatprep.subr.bf16.mxu0 0
        %2301 = vmatpush1.bf16.msra.mxu0 0
        %2302 = vmatprep.subr.bf16.mxu0 0
        %2303 = vmatpush1.bf16.msra.mxu0 %v2287
        %2304 = vmatprep.subr.bf16.mxu0 0
        %2305 = vmatpush1.bf16.msra.mxu0 %v2286
        %2306 = vmatprep.subr.bf16.mxu0 0
        %2307 = vmatpush2.bf16.msra.mxu0 0
        %2308 = vmatprep.subr.bf16.mxu0 0
        %2309 = vmatpush2.bf16.msra.mxu0 0
        %2310 = vmatprep.subr.bf16.mxu0 0
        %2311 = vmatpush2.bf16.msra.mxu0 0
        %2312 = vmatprep.subr.bf16.mxu0 0
        %2313 = vmatpush2.bf16.msra.mxu0 0
        %2314 = vmatprep.subr.bf16.mxu0 0
        %2315 = vmatpush2.bf16.msra.mxu0 0
        %2316 = vmatprep.subr.bf16.mxu0 0
        %2317 = vmatpush2.bf16.msra.mxu0 0
        %2318 = vmatprep.subr.bf16.mxu0 0
        %2319 = vmatpush2.bf16.msra.mxu0 0
        %2320 = vmatprep.subr.bf16.mxu0 0
        %2321 = vmatpush2.bf16.msra.mxu0 0
        %2322 = vmatprep.mubr.bf16.mxu0 0
        %2323 = vmatmul.mubr.bf16.gmra.mxu0 %v765
        %v2324 = vpop.f32.mrf.mxu0
        %v2325 = vadd.f32 %v2276, %v2324
        %v2326 = vpop.f32.mrf.mxu0
        %v2327 = vpop.f32.mrf.mxu0
        %v2328 = vadd.f32 %v2276, %v2327
        %v2329 = vpop.f32.mrf.mxu0
        %2330 = vdwg.mxu0
        %v2331 = vpack.c.bf16 %v2193, %v2193
        %v2332 = vpack.c.bf16 %v2196, %v2196
        %v2333 = vpack.c.bf16 %v2259, %v2259
        %v2334 = vpack.c.bf16 %v2262, %v2262
        %v2336 = vsel %vm940, %v2331, 0
        %v2339 = vsel %vm940, %v2333, 0
        %2341 = vmatprep.subr.bf16.mxu0 0
        %2342 = vmatpush1.bf16.xpose.msra.mxu0 0
        %2343 = vmatprep.subr.bf16.mxu0 0
        %2344 = vmatpush1.bf16.xpose.msra.mxu0 0
        %2345 = vmatprep.subr.bf16.mxu0 0
        %2346 = vmatpush1.bf16.xpose.msra.mxu0 0
        %2347 = vmatprep.subr.bf16.mxu0 0
        %2348 = vmatpush1.bf16.xpose.msra.mxu0 0
        %2349 = vmatprep.subr.bf16.mxu0 0
        %2350 = vmatpush1.bf16.xpose.msra.mxu0 0
        %2351 = vmatprep.subr.bf16.mxu0 0
        %2352 = vmatpush1.bf16.xpose.msra.mxu0 0
        %2353 = vmatprep.subr.bf16.mxu0 0
        %2354 = vmatpush1.bf16.xpose.msra.mxu0 0
        %2355 = vmatprep.subr.bf16.mxu0 0
        %2356 = vmatpush1.bf16.xpose.msra.mxu0 %v2339
        %2357 = vmatprep.subr.bf16.mxu0 0
        %2358 = vmatpush2.bf16.xpose.msra.mxu0 0
        %2359 = vmatprep.subr.bf16.mxu0 0
        %2360 = vmatpush2.bf16.xpose.msra.mxu0 0
        %2361 = vmatprep.subr.bf16.mxu0 0
        %2362 = vmatpush2.bf16.xpose.msra.mxu0 0
        %2363 = vmatprep.subr.bf16.mxu0 0
        %2364 = vmatpush2.bf16.xpose.msra.mxu0 0
        %2365 = vmatprep.subr.bf16.mxu0 0
        %2366 = vmatpush2.bf16.xpose.msra.mxu0 0
        %2367 = vmatprep.subr.bf16.mxu0 0
        %2368 = vmatpush2.bf16.xpose.msra.mxu0 0
        %2369 = vmatprep.subr.bf16.mxu0 0
        %2370 = vmatpush2.bf16.xpose.msra.mxu0 0
        %2371 = vmatprep.subr.bf16.mxu0 0
        %2372 = vmatpush2.bf16.xpose.msra.mxu0 0
        %2373 = vmatprep.mubr.bf16.mxu0 0
        %2374 = vmatmul.mubr.bf16.gmra.mxu0 %v2336
        %v2375 = vpop.f32.mrf.mxu0
        %v2376 = vadd.f32 0.0, %v2375
        %v2377 = vpop.f32.mrf.mxu0
        %v2378 = vpop.f32.mrf.mxu0
        %v2379 = vpop.f32.mrf.mxu0
        %2380 = vdwg.mxu0
        %v2382 = vsel %vm940, %v2332, 0
        %v2385 = vsel %vm940, %v2334, 0
        %2387 = vmatprep.subr.bf16.mxu0 0
        %2388 = vmatpush1.bf16.xpose.msra.mxu0 0
        %2389 = vmatprep.subr.bf16.mxu0 0
        %2390 = vmatpush1.bf16.xpose.msra.mxu0 0
        %2391 = vmatprep.subr.bf16.mxu0 0
        %2392 = vmatpush1.bf16.xpose.msra.mxu0 0
        %2393 = vmatprep.subr.bf16.mxu0 0
        %2394 = vmatpush1.bf16.xpose.msra.mxu0 0
        %2395 = vmatprep.subr.bf16.mxu0 0
        %2396 = vmatpush1.bf16.xpose.msra.mxu0 0
        %2397 = vmatprep.subr.bf16.mxu0 0
        %2398 = vmatpush1.bf16.xpose.msra.mxu0 0
        %2399 = vmatprep.subr.bf16.mxu0 0
        %2400 = vmatpush1.bf16.xpose.msra.mxu0 0
        %2401 = vmatprep.subr.bf16.mxu0 0
        %2402 = vmatpush1.bf16.xpose.msra.mxu0 %v2385
        %2403 = vmatprep.subr.bf16.mxu0 0
        %2404 = vmatpush2.bf16.xpose.msra.mxu0 0
        %2405 = vmatprep.subr.bf16.mxu0 0
        %2406 = vmatpush2.bf16.xpose.msra.mxu0 0
        %2407 = vmatprep.subr.bf16.mxu0 0
        %2408 = vmatpush2.bf16.xpose.msra.mxu0 0
        %2409 = vmatprep.subr.bf16.mxu0 0
        %2410 = vmatpush2.bf16.xpose.msra.mxu0 0
        %2411 = vmatprep.subr.bf16.mxu0 0
        %2412 = vmatpush2.bf16.xpose.msra.mxu0 0
        %2413 = vmatprep.subr.bf16.mxu0 0
        %2414 = vmatpush2.bf16.xpose.msra.mxu0 0
        %2415 = vmatprep.subr.bf16.mxu0 0
        %2416 = vmatpush2.bf16.xpose.msra.mxu0 0
        %2417 = vmatprep.subr.bf16.mxu0 0
        %2418 = vmatpush2.bf16.xpose.msra.mxu0 0
        %2419 = vmatprep.mubr.bf16.mxu0 0
        %2420 = vmatmul.mubr.bf16.gmra.mxu0 %v2382
        %v2421 = vpop.f32.mrf.mxu0
        %v2422 = vadd.f32 0.0, %v2421
        %v2423 = vpop.f32.mrf.mxu0
        %v2424 = vpop.f32.mrf.mxu0
        %v2425 = vpop.f32.mrf.mxu0
        %2426 = vdwg.mxu0
        %v2427 = vmul.f32 %v2376, 0.35355338
        %v2428 = vmul.f32 %v2422, 0.35355338
        %v2429 = vsel %vm940, %v2427, -inf
        %2430 = vmax.xlane.f32.xlu0 %v2429
        %v2431 = vpop.xlane.xlu0 %2430
        %v2432 = vsel %vm940, %v2428, -inf
        %2433 = vmax.xlane.f32.xlu0 %v2432
        %v2434 = vpop.xlane.xlu0 %2433
        %v2435 = vsub.f32 %v2427, %v2431
        %v2436 = vsub.f32 %v2428, %v2434
        %v2437 = vmul.f32 %v2435, 1.442695
        %v2438 = vpow.pop %v2437
        %v2439 = vmul.f32 %v2436, 1.442695
        %v2440 = vpow.pop %v2439
        %v2441 = vsel %vm940, %v2438, 0.0
        %2442 = vadd.xlane.f32.xlu0 %v2441
        %v2443 = vpop.xlane.xlu0 %2442
        %v2444 = vsel %vm940, %v2440, 0.0
        %2445 = vadd.xlane.f32.xlu0 %v2444
        %v2446 = vpop.xlane.xlu0 %2445
        %v2447 = vrcp.pop %v2443
        %v2448 = vrcp.pop %v2446
        %v2449 = vmul.f32 %v2438, %v2447
        %v2450 = vmul.f32 %v2440, %v2448
        %v2451 = vpack.c.bf16 %v2449, %v2449
        %v2452 = vpack.c.bf16 %v2450, %v2450
        %v2453 = vpack.c.bf16 %v2325, %v2325
        %v2454 = vpack.c.bf16 %v2328, %v2328
        %v2456 = vsel %vm940, %v2451, 0
        %v2459 = vsel %vm1064, %v2453, 0
        %2461 = vmatprep.subr.bf16.mxu0 0
        %2462 = vmatpush1.bf16.msra.mxu0 0
        %2463 = vmatprep.subr.bf16.mxu0 0
        %2464 = vmatpush1.bf16.msra.mxu0 0
        %2465 = vmatprep.subr.bf16.mxu0 0
        %2466 = vmatpush1.bf16.msra.mxu0 0
        %2467 = vmatprep.subr.bf16.mxu0 0
        %2468 = vmatpush1.bf16.msra.mxu0 0
        %2469 = vmatprep.subr.bf16.mxu0 0
        %2470 = vmatpush1.bf16.msra.mxu0 0
        %2471 = vmatprep.subr.bf16.mxu0 0
        %2472 = vmatpush1.bf16.msra.mxu0 0
        %2473 = vmatprep.subr.bf16.mxu0 0
        %2474 = vmatpush1.bf16.msra.mxu0 0
        %2475 = vmatprep.subr.bf16.mxu0 0
        %2476 = vmatpush1.bf16.msra.mxu0 %v2459
        %2477 = vmatprep.subr.bf16.mxu0 0
        %2478 = vmatpush2.bf16.msra.mxu0 0
        %2479 = vmatprep.subr.bf16.mxu0 0
        %2480 = vmatpush2.bf16.msra.mxu0 0
        %2481 = vmatprep.subr.bf16.mxu0 0
        %2482 = vmatpush2.bf16.msra.mxu0 0
        %2483 = vmatprep.subr.bf16.mxu0 0
        %2484 = vmatpush2.bf16.msra.mxu0 0
        %2485 = vmatprep.subr.bf16.mxu0 0
        %2486 = vmatpush2.bf16.msra.mxu0 0
        %2487 = vmatprep.subr.bf16.mxu0 0
        %2488 = vmatpush2.bf16.msra.mxu0 0
        %2489 = vmatprep.subr.bf16.mxu0 0
        %2490 = vmatpush2.bf16.msra.mxu0 0
        %2491 = vmatprep.subr.bf16.mxu0 0
        %2492 = vmatpush2.bf16.msra.mxu0 0
        %2493 = vmatprep.mubr.bf16.mxu0 0
        %2494 = vmatmul.mubr.bf16.gmra.mxu0 %v2456
        %v2495 = vpop.f32.mrf.mxu0
        %v2496 = vadd.f32 0.0, %v2495
        %v2497 = vpop.f32.mrf.mxu0
        %v2498 = vpop.f32.mrf.mxu0
        %v2499 = vpop.f32.mrf.mxu0
        %2500 = vdwg.mxu0
        %v2502 = vsel %vm940, %v2452, 0
        %v2505 = vsel %vm1064, %v2454, 0
        %2507 = vmatprep.subr.bf16.mxu0 0
        %2508 = vmatpush1.bf16.msra.mxu0 0
        %2509 = vmatprep.subr.bf16.mxu0 0
        %2510 = vmatpush1.bf16.msra.mxu0 0
        %2511 = vmatprep.subr.bf16.mxu0 0
        %2512 = vmatpush1.bf16.msra.mxu0 0
        %2513 = vmatprep.subr.bf16.mxu0 0
        %2514 = vmatpush1.bf16.msra.mxu0 0
        %2515 = vmatprep.subr.bf16.mxu0 0
        %2516 = vmatpush1.bf16.msra.mxu0 0
        %2517 = vmatprep.subr.bf16.mxu0 0
        %2518 = vmatpush1.bf16.msra.mxu0 0
        %2519 = vmatprep.subr.bf16.mxu0 0
        %2520 = vmatpush1.bf16.msra.mxu0 0
        %2521 = vmatprep.subr.bf16.mxu0 0
        %2522 = vmatpush1.bf16.msra.mxu0 %v2505
        %2523 = vmatprep.subr.bf16.mxu0 0
        %2524 = vmatpush2.bf16.msra.mxu0 0
        %2525 = vmatprep.subr.bf16.mxu0 0
        %2526 = vmatpush2.bf16.msra.mxu0 0
        %2527 = vmatprep.subr.bf16.mxu0 0
        %2528 = vmatpush2.bf16.msra.mxu0 0
        %2529 = vmatprep.subr.bf16.mxu0 0
        %2530 = vmatpush2.bf16.msra.mxu0 0
        %2531 = vmatprep.subr.bf16.mxu0 0
        %2532 = vmatpush2.bf16.msra.mxu0 0
        %2533 = vmatprep.subr.bf16.mxu0 0
        %2534 = vmatpush2.bf16.msra.mxu0 0
        %2535 = vmatprep.subr.bf16.mxu0 0
        %2536 = vmatpush2.bf16.msra.mxu0 0
        %2537 = vmatprep.subr.bf16.mxu0 0
        %2538 = vmatpush2.bf16.msra.mxu0 0
        %2539 = vmatprep.mubr.bf16.mxu0 0
        %2540 = vmatmul.mubr.bf16.gmra.mxu0 %v2502
        %v2541 = vpop.f32.mrf.mxu0
        %v2542 = vadd.f32 0.0, %v2541
        %v2543 = vpop.f32.mrf.mxu0
        %v2544 = vpop.f32.mrf.mxu0
        %v2545 = vpop.f32.mrf.mxu0
        %2546 = vdwg.mxu0
        %v2547 = vpack.c.bf16 %v2542, %v2496
        %s2548 = scalar_lea.vmem %s616, 12
        %v2549 = vld [vmem:[%s2548] sm:$0xf]
        %v2551 = vsel %vm940, %v2547, 0
        %v2554 = vsel %vm1064, %v2549, 0
        %2556 = vmatprep.subr.bf16.mxu0 0
        %2557 = vmatpush1.bf16.msra.mxu0 0
        %2558 = vmatprep.subr.bf16.mxu0 0
        %2559 = vmatpush1.bf16.msra.mxu0 0
        %2560 = vmatprep.subr.bf16.mxu0 0
        %2561 = vmatpush1.bf16.msra.mxu0 0
        %2562 = vmatprep.subr.bf16.mxu0 0
        %2563 = vmatpush1.bf16.msra.mxu0 0
        %2564 = vmatprep.subr.bf16.mxu0 0
        %2565 = vmatpush1.bf16.msra.mxu0 0
        %2566 = vmatprep.subr.bf16.mxu0 0
        %2567 = vmatpush1.bf16.msra.mxu0 0
        %2568 = vmatprep.subr.bf16.mxu0 0
        %2569 = vmatpush1.bf16.msra.mxu0 0
        %2570 = vmatprep.subr.bf16.mxu0 0
        %2571 = vmatpush1.bf16.msra.mxu0 %v2554
        %2572 = vmatprep.subr.bf16.mxu0 0
        %2573 = vmatpush2.bf16.msra.mxu0 0
        %2574 = vmatprep.subr.bf16.mxu0 0
        %2575 = vmatpush2.bf16.msra.mxu0 0
        %2576 = vmatprep.subr.bf16.mxu0 0
        %2577 = vmatpush2.bf16.msra.mxu0 0
        %2578 = vmatprep.subr.bf16.mxu0 0
        %2579 = vmatpush2.bf16.msra.mxu0 0
        %2580 = vmatprep.subr.bf16.mxu0 0
        %2581 = vmatpush2.bf16.msra.mxu0 0
        %2582 = vmatprep.subr.bf16.mxu0 0
        %2583 = vmatpush2.bf16.msra.mxu0 0
        %2584 = vmatprep.subr.bf16.mxu0 0
        %2585 = vmatpush2.bf16.msra.mxu0 0
        %2586 = vmatprep.subr.bf16.mxu0 0
        %2587 = vmatpush2.bf16.msra.mxu0 0
        %2588 = vmatprep.mubr.bf16.mxu0 0
        %2589 = vmatmul.mubr.bf16.gmra.mxu0 %v2551
        %v2590 = vpop.f32.mrf.mxu0
        %v2591 = vadd.f32 0.0, %v2590
        %v2592 = vpop.f32.mrf.mxu0
        %v2593 = vpop.f32.mrf.mxu0
        %v2594 = vadd.f32 0.0, %v2593
        %v2595 = vpop.f32.mrf.mxu0
        %2596 = vdwg.mxu0
        %v2597 = vadd.f32 %v2131, %v2591
        %v2598 = vadd.f32 %v2132, %v2594
        %v2599 = vadd.f32 %v706, %v2597
        %v2600 = vadd.f32 %v707, %v2598
        %v2601 = vsel %vm710, %v2599, 0.0
        %v2602 = vsel %vm710, %v2600, 0.0
        %v2603 = vadd.f32 %v2601, %v2602
        %v2604 = vrot.slane %v2603, 4
        %v2605 = vadd.f32 %v2603, %v2604
        %v2606 = vrot.slane %v2605, 2
        %v2607 = vadd.f32 %v2605, %v2606
        %v2608 = vrot.slane %v2607, 1
        %v2609 = vadd.f32 %v2607, %v2608
        %v2610 = vmul.f32 %v2609, %v720
        %v2611 = vsub.f32 %v2599, %v2610
        %v2612 = vsub.f32 %v2600, %v2610
        %v2613 = vmul.f32 %v2611, %v2611
        %v2614 = vmul.f32 %v2612, %v2612
        %v2615 = vsel %vm710, %v2613, 0.0
        %v2616 = vsel %vm710, %v2614, 0.0
        %v2617 = vadd.f32 %v2615, %v2616
        %v2618 = vrot.slane %v2617, 4
        %v2619 = vadd.f32 %v2617, %v2618
        %v2620 = vrot.slane %v2619, 2
        %v2621 = vadd.f32 %v2619, %v2620
        %v2622 = vrot.slane %v2621, 1
        %v2623 = vadd.f32 %v2621, %v2622
        %v2624 = vmul.f32 %v2623, %v720
        %v2625 = vadd.f32 %v2624, 1e-05
        %v2626 = vrsqrt.pop %v2625
        %v2627 = vmul.f32 %v2611, %v2626
        %v2628 = vmul.f32 %v2612, %v2626
        %v2629 = vpack.c.bf16 %v2628, %v2627
        %v2630 = vld [vmem:[%s621] sm:$0xf]
        %v2631 = vld [vmem:[%s621 + $0x4] sm:$0xf]
        %v2632 = vld [vmem:[%s621 + $0x8] sm:$0xf]
        %v2633 = vld [vmem:[%s621 + $0xc] sm:$0xf]
        %v2634 = vld [vmem:[%s624] sm:$0x1]
        %v2636 = vlaneseq
        %v2637 = vshrl.u32 %v2636, 7
        %v2638 = vsub.s32 0, %v2637
        %v2639 = vrot.slane %v2634, %v2638
        %v2645 = vunpack.c.l.b16 %v2630
        %v2646 = vunpack.c.l.b16 %v2631
        %v2647 = vunpack.c.l.b16 %v2632
        %v2648 = vunpack.c.l.b16 %v2633
        %v2649 = vpack.c.b16 %v2646, %v2645
        %v2650 = vpack.c.b16 %v2648, %v2647
        %v2654 = vsel %vm710, %v2629, 0
        %2656 = vmatprep.subr.bf16.mxu0 0
        %2657 = vmatpush1.bf16.msra.mxu0 0
        %2658 = vmatprep.subr.bf16.mxu0 0
        %2659 = vmatpush1.bf16.msra.mxu0 0
        %2660 = vmatprep.subr.bf16.mxu0 0
        %2661 = vmatpush1.bf16.msra.mxu0 0
        %2662 = vmatprep.subr.bf16.mxu0 0
        %2663 = vmatpush1.bf16.msra.mxu0 0
        %2664 = vmatprep.subr.bf16.mxu0 0
        %2665 = vmatpush1.bf16.msra.mxu0 0
        %2666 = vmatprep.subr.bf16.mxu0 0
        %2667 = vmatpush1.bf16.msra.mxu0 0
        %2668 = vmatprep.subr.bf16.mxu0 0
        %2669 = vmatpush1.bf16.msra.mxu0 %v2650
        %2670 = vmatprep.subr.bf16.mxu0 0
        %2671 = vmatpush1.bf16.msra.mxu0 %v2649
        %2672 = vmatprep.subr.bf16.mxu0 0
        %2673 = vmatpush2.bf16.msra.mxu0 0
        %2674 = vmatprep.subr.bf16.mxu0 0
        %2675 = vmatpush2.bf16.msra.mxu0 0
        %2676 = vmatprep.subr.bf16.mxu0 0
        %2677 = vmatpush2.bf16.msra.mxu0 0
        %2678 = vmatprep.subr.bf16.mxu0 0
        %2679 = vmatpush2.bf16.msra.mxu0 0
        %2680 = vmatprep.subr.bf16.mxu0 0
        %2681 = vmatpush2.bf16.msra.mxu0 0
        %2682 = vmatprep.subr.bf16.mxu0 0
        %2683 = vmatpush2.bf16.msra.mxu0 0
        %2684 = vmatprep.subr.bf16.mxu0 0
        %2685 = vmatpush2.bf16.msra.mxu0 0
        %2686 = vmatprep.subr.bf16.mxu0 0
        %2687 = vmatpush2.bf16.msra.mxu0 0
        %2688 = vmatprep.mubr.bf16.mxu0 0
        %2689 = vmatmul.mubr.bf16.gmra.mxu0 %v2654
        %v2690 = vpop.f32.mrf.mxu0
        %v2691 = vadd.f32 %v2639, %v2690
        %v2692 = vpop.f32.mrf.mxu0
        %v2693 = vpop.f32.mrf.mxu0
        %v2694 = vadd.f32 %v2639, %v2693
        %v2695 = vpop.f32.mrf.mxu0
        %2696 = vdwg.mxu0
        %v2697 = vmul.f32 %v2691, 0.5
        %v2698 = vmul.f32 %v2694, 0.5
        %v2699 = vmul.f32 %v2691, 0.70710677
        %v2700 = vmul.f32 %v2694, 0.70710677
        %vm2701 = vcmp.lt.f32.partialorder %v2699, 0.0
        %vm2702 = vcmp.lt.f32.partialorder %v2700, 0.0
        %v2703 = vsel %vm2701, -1.0, 1.0
        %v2704 = vsel %vm2702, -1.0, 1.0
        %v2705 = vand.u32 2147483647, %v2699
        %v2706 = vand.u32 2147483647, %v2700
        %v2707 = vmul.f32 %v2705, 0.3275911
        %v2708 = vmul.f32 %v2706, 0.3275911
        %v2709 = vadd.f32 %v2707, 1.0
        %v2710 = vadd.f32 %v2708, 1.0
        %v2711 = vrcp.pop %v2709
        %v2712 = vmul.f32 1.0, %v2711
        %v2713 = vrcp.pop %v2710
        %v2714 = vmul.f32 1.0, %v2713
        %v2715 = vmul.f32 %v2712, 1.0614054
        %v2716 = vmul.f32 %v2714, 1.0614054
        %v2717 = vadd.f32 %v2715, -1.4531521
        %v2718 = vadd.f32 %v2716, -1.4531521
        %v2719 = vmul.f32 %v2717, %v2712
        %v2720 = vmul.f32 %v2718, %v2714
        %v2721 = vadd.f32 %v2719, 1.4214138
        %v2722 = vadd.f32 %v2720, 1.4214138
        %v2723 = vmul.f32 %v2721, %v2712
        %v2724 = vmul.f32 %v2722, %v2714
        %v2725 = vadd.f32 %v2723, -0.28449672
        %v2726 = vadd.f32 %v2724, -0.28449672
        %v2727 = vmul.f32 %v2725, %v2712
        %v2728 = vmul.f32 %v2726, %v2714
        %v2729 = vadd.f32 %v2727, 0.2548296
        %v2730 = vadd.f32 %v2728, 0.2548296
        %v2731 = vmul.f32 %v2729, %v2712
        %v2732 = vmul.f32 %v2730, %v2714
        %v2733 = vsub.f32 0.0, %v2705
        %v2734 = vsub.f32 0.0, %v2706
        %v2735 = vmul.f32 %v2733, %v2705
        %v2736 = vmul.f32 %v2734, %v2706
        %v2737 = vmul.f32 %v2735, 1.442695
        %v2738 = vpow.pop %v2737
        %v2739 = vmul.f32 %v2736, 1.442695
        %v2740 = vpow.pop %v2739
        %v2741 = vmul.f32 %v2731, %v2738
        %v2742 = vmul.f32 %v2732, %v2740
        %v2743 = vsub.f32 1.0, %v2741
        %v2744 = vsub.f32 1.0, %v2742
        %v2745 = vmul.f32 %v2703, %v2743
        %v2746 = vmul.f32 %v2704, %v2744
        %v2747 = vadd.f32 %v2745, 1.0
        %v2748 = vadd.f32 %v2746, 1.0
        %v2749 = vmul.f32 %v2697, %v2747
        %v2750 = vmul.f32 %v2698, %v2748
        %v2751 = vpack.c.bf16 %v2750, %v2749
        %v2752 = vld [vmem:[%s629] sm:$0xf]
        %v2753 = vld [vmem:[%s629 + $0x4] sm:$0xf]
        %v2754 = vld [vmem:[%s629 + $0x8] sm:$0xf]
        %v2755 = vld [vmem:[%s629 + $0xc] sm:$0xf]
        %v2756 = vld [vmem:[%s629 + $0x10] sm:$0xf]
        %v2757 = vld [vmem:[%s629 + $0x14] sm:$0xf]
        %v2758 = vld [vmem:[%s629 + $0x18] sm:$0xf]
        %v2759 = vld [vmem:[%s629 + $0x1c] sm:$0xf]
        %v2760 = vld [vmem:[%s632] sm:$0x1]
        %v2762 = vlaneseq
        %v2763 = vshrl.u32 %v2762, 7
        %v2764 = vsub.s32 0, %v2763
        %v2765 = vrot.slane %v2760, %v2764
        %v2775 = vunpack.c.l.b16 %v2752
        %v2776 = vunpack.c.l.b16 %v2753
        %v2777 = vunpack.c.l.b16 %v2754
        %v2778 = vunpack.c.l.b16 %v2755
        %v2779 = vunpack.c.l.b16 %v2756
        %v2780 = vunpack.c.l.b16 %v2757
        %v2781 = vunpack.c.l.b16 %v2758
        %v2782 = vunpack.c.l.b16 %v2759
        %v2783 = vpack.c.b16 %v2776, %v2775
        %v2784 = vpack.c.b16 %v2778, %v2777
        %v2785 = vpack.c.b16 %v2780, %v2779
        %v2786 = vpack.c.b16 %v2782, %v2781
        %vm2791 = vcmask 523264
        %v2793 = vsel %vm2791, %v2751, 0
        %2795 = vmatprep.subr.bf16.mxu0 0
        %2796 = vmatpush1.bf16.msra.mxu0 0
        %2797 = vmatprep.subr.bf16.mxu0 0
        %2798 = vmatpush1.bf16.msra.mxu0 0
        %2799 = vmatprep.subr.bf16.mxu0 0
        %2800 = vmatpush1.bf16.msra.mxu0 0
        %2801 = vmatprep.subr.bf16.mxu0 0
        %2802 = vmatpush1.bf16.msra.mxu0 0
        %2803 = vmatprep.subr.bf16.mxu0 0
        %2804 = vmatpush1.bf16.msra.mxu0 %v2786
        %2805 = vmatprep.subr.bf16.mxu0 0
        %2806 = vmatpush1.bf16.msra.mxu0 %v2785
        %2807 = vmatprep.subr.bf16.mxu0 0
        %2808 = vmatpush1.bf16.msra.mxu0 %v2784
        %2809 = vmatprep.subr.bf16.mxu0 0
        %2810 = vmatpush1.bf16.msra.mxu0 %v2783
        %2811 = vmatprep.subr.bf16.mxu0 0
        %2812 = vmatpush2.bf16.msra.mxu0 0
        %2813 = vmatprep.subr.bf16.mxu0 0
        %2814 = vmatpush2.bf16.msra.mxu0 0
        %2815 = vmatprep.subr.bf16.mxu0 0
        %2816 = vmatpush2.bf16.msra.mxu0 0
        %2817 = vmatprep.subr.bf16.mxu0 0
        %2818 = vmatpush2.bf16.msra.mxu0 0
        %2819 = vmatprep.subr.bf16.mxu0 0
        %2820 = vmatpush2.bf16.msra.mxu0 0
        %2821 = vmatprep.subr.bf16.mxu0 0
        %2822 = vmatpush2.bf16.msra.mxu0 0
        %2823 = vmatprep.subr.bf16.mxu0 0
        %2824 = vmatpush2.bf16.msra.mxu0 0
        %2825 = vmatprep.subr.bf16.mxu0 0
        %2826 = vmatpush2.bf16.msra.mxu0 0
        %2827 = vmatprep.mubr.bf16.mxu0 0
        %2828 = vmatmul.mubr.bf16.gmra.mxu0 %v2793
        %v2829 = vpop.f32.mrf.mxu0
        %v2830 = vadd.f32 %v2765, %v2829
        %v2831 = vpop.f32.mrf.mxu0
        %v2832 = vpop.f32.mrf.mxu0
        %v2833 = vadd.f32 %v2765, %v2832
        %v2834 = vpop.f32.mrf.mxu0
        %2835 = vdwg.mxu0
        %v2836 = vadd.f32 %v708, %v2830
        %v2837 = vadd.f32 %v709, %v2833
        %2838 = vst.msk [vmem:[#allocation2] sm:$0xff] %vm710, %v2599
        %2839 = vst.msk [vmem:[#allocation2 + $0x8] sm:$0xff] %vm710, %v2600
        %2840 = vst.msk [vmem:[#allocation3] sm:$0xff] %vm710, %v2836
        %2841 = vst.msk [vmem:[#allocation3 + $0x8] sm:$0xff] %vm710, %v2837
        %p2842 = scmp.eq.s32.totalorder %s26, 1
        // Predicated region
        $region81: #{tpu_custom_call.1} parent=75 // pred_check
          %p2843 = pneg %p2842
        $region82: #{tpu_custom_call.1} parent=75 // pred_check_branch
          %2845 = sbr.rel (%p2843) target = $region84
        $region83: #{tpu_custom_call.1} parent=75 // pred_region
          %2846 = vst.msk [vmem:[#allocation4] sm:$0xff] %vm710, %v2836
          %2847 = vst.msk [vmem:[#allocation4 + $0x8] sm:$0xff] %vm710, %v2837
        $region84: #{tpu_custom_call.1} parent=75 // pred_fallthru
          _
        // Predicated region
        $region85: #{tpu_custom_call.1} parent=75 // pred_check
          %p2848 = pneg %p388
        $region86: #{tpu_custom_call.1} parent=75 // pred_check_branch
          %2850 = sbr.rel (%p2848) target = $region88
        $region87: #{tpu_custom_call.1} parent=75 // pred_region
          %s2852 = ssub.s32 256, 256
          %2853 = vsyncadd [#allocation5], %s2852
          %s2854 = sshll.u32 [#allocation4], 4
          %s2855 = int_to_ptr.vmem [resolvable:$true] %s2854
          %2860 = dma.vmem_to_hbm [thread:$0]  %s2855, 256, %s14, [#allocation5], 128, 128, 8
        $region88: #{tpu_custom_call.1} parent=75 // pred_fallthru
          _
        // Predicated region
        $region89: #{tpu_custom_call.1} parent=75 // pred_check
          %p2861 = pneg %p388
        $region90: #{tpu_custom_call.1} parent=75 // pred_check_branch
          %2863 = sbr.rel (%p2861) target = $region92
        $region91: #{tpu_custom_call.1} parent=75 // pred_region
          %2864 = dma.done [#allocation5], 256
        $region92: #{tpu_custom_call.1} parent=75 // pred_fallthru
          _
      $region76: #{tpu_custom_call.1} parent=5 // pred_fallthru
        _
      %p2865 = scmp.le.s32.totalorder 2, %s21
      // Predicated region
      $region93: #{tpu_custom_call.1} parent=5 // pred_check
        %p2866 = pneg %p2865
      $region94: #{tpu_custom_call.1} parent=5 // pred_check_branch
        %2868 = sbr.rel (%p2866) target = $region96
      $region95: #{tpu_custom_call.1} parent=5 // pred_region
        %s2869 = ssub.s32 %s21, 2
      $region96: #{tpu_custom_call.1} parent=5 // pred_fallthru
        _
    $region6: #{tpu_custom_call.1} parent=1 // loop_footer
      %s25 = sadd.s32 1, %s21
    $region7: #{tpu_custom_call.1} parent=1 // loop_footer_branch
      %20 = sbr.rel target = $region3
    $region8: #{tpu_custom_call.1} parent=1 // loop_exit
      _
    %2870 = vsyncpa [#allocation5], 1
    %s2871 = scalar_lea.sflag [#allocation5], 1
    %2872 = vsyncpa %s2871, 1

</llo_original>
